<compile_context>
chip_gen: v7x
topology: tpu7x:2x2x1
jax: 0.10.0
libtpu: 0.0.40
codegen_flags: <defaults>
</compile_context>

<pallas_src>
import math
from functools import partial

import jax
import jax.numpy as jnp
from jax.experimental import pallas as pl
from jax.experimental.pallas import tpu as pltpu

EPS = 1e-5  # nn.BatchNorm2d default
_VMEM = pl.BlockSpec(memory_space=pltpu.MemorySpace.VMEM)


# ----------------------------- in-kernel helpers ---------------------------

def _bn_train(acc, gamma, beta):
    """Training-mode BatchNorm on an (M, C) f32 pre-activation (one-pass stats)."""
    m = acc.shape[0]
    inv_m = 1.0 / m
    mean = jnp.sum(acc, axis=0, keepdims=True) * inv_m
    ex2 = jnp.sum(acc * acc, axis=0, keepdims=True) * inv_m
    var = jnp.maximum(ex2 - mean * mean, 0.0)          # biased variance
    return (acc - mean) * jax.lax.rsqrt(var + EPS) * gamma + beta


def _shift_zero(y, axis, delta):
    """r[..., i, ...] = y[..., i + delta, ...], zero-filled out of range."""
    if delta == 0:
        return y
    n = y.shape[axis]
    zshape = list(y.shape)
    zshape[axis] = abs(delta)
    zeros = jnp.zeros(zshape, y.dtype)
    sl = [slice(None)] * y.ndim
    if delta > 0:
        sl[axis] = slice(delta, n)
        return jnp.concatenate([y[tuple(sl)], zeros], axis=axis)
    sl[axis] = slice(0, n + delta)
    return jnp.concatenate([zeros, y[tuple(sl)]], axis=axis)


def _taps_3x3(y4, planes):
    """y4: (N, H, W, P) bf16 -> (N*H*W, 9*P) im2col for 3x3 / stride 1 / pad 1."""
    n, h, w, _ = y4.shape
    taps = []
    for ky in range(3):
        for kx in range(3):
            taps.append(_shift_zero(_shift_zero(y4, 2, kx - 1), 1, ky - 1))
    return jnp.concatenate(taps, axis=-1).reshape(n * h * w, 9 * planes)


# ------------------------------ Pallas kernels -----------------------------

def _bottleneck_fused_kernel(*refs, n, h, w, has_ds):
    """Whole bottleneck block (stride == 1) in a single kernel."""
    if has_ds:
        (x_ref, w1_ref, g1_ref, b1_ref, w2_ref, g2_ref, b2_ref,
         w3_ref, g3_ref, b3_ref, wd_ref, gd_ref, bd_ref, out_ref) = refs
    else:
        (x_ref, w1_ref, g1_ref, b1_ref, w2_ref, g2_ref, b2_ref,
         w3_ref, g3_ref, b3_ref, out_ref) = refs
        wd_ref = gd_ref = bd_ref = None

    planes = w1_ref.shape[1]
    x = x_ref[...]                                   # (M, Cin) f32
    xb = x.astype(jnp.bfloat16)

    # conv1 (1x1) -> bn1 -> relu
    a1 = jnp.dot(xb, w1_ref[...], preferred_element_type=jnp.float32)
    y1 = jnp.maximum(_bn_train(a1, g1_ref[...], b1_ref[...]), 0.0)

    # conv2 (3x3, stride 1, pad 1) as ONE GEMM over in-kernel im2col taps
    y1b = y1.astype(jnp.bfloat16).reshape(n, h, w, planes)
    taps = _taps_3x3(y1b, planes)                    # (M, 9*P) bf16
    a2 = jnp.dot(taps, w2_ref[...], preferred_element_type=jnp.float32)
    y2 = jnp.maximum(_bn_train(a2, g2_ref[...], b2_ref[...]), 0.0)

    # conv3 (1x1, expansion) -> bn3
    a3 = jnp.dot(y2.astype(jnp.bfloat16), w3_ref[...],
                 preferred_element_type=jnp.float32)
    y3 = _bn_train(a3, g3_ref[...], b3_ref[...])

    # residual branch
    if has_ds:
        ad = jnp.dot(xb, wd_ref[...], preferred_element_type=jnp.float32)
        res = _bn_train(ad, gd_ref[...], bd_ref[...])
    else:
        res = x                                      # identity (Cin == 4*planes)

    out_ref[...] = jnp.maximum(y3 + res, 0.0)


def _conv1_bn_relu_kernel(x_ref, w_ref, g_ref, b_ref, o_ref):
    """conv1x1 -> bn -> relu (used only for the stride>1 split path)."""
    a = jnp.dot(x_ref[...].astype(jnp.bfloat16), w_ref[...],
                preferred_element_type=jnp.float32)
    o_ref[...] = jnp.maximum(_bn_train(a, g_ref[...], b_ref[...]),
                             0.0).astype(o_ref.dtype)


def _tail_kernel(taps_ref, w2_ref, g2_ref, b2_ref, w3_ref, g3_ref, b3_ref,
                 xds_ref, wd_ref, gd_ref, bd_ref, out_ref):
    """conv2(GEMM)+bn2+relu + conv3+bn3 + downsample(1x1+bn) + add + relu."""
    a2 = jnp.dot(taps_ref[...], w2_ref[...], preferred_element_type=jnp.float32)
    y2 = jnp.maximum(_bn_train(a2, g2_ref[...], b2_ref[...]), 0.0)
    a3 = jnp.dot(y2.astype(jnp.bfloat16), w3_ref[...],
                 preferred_element_type=jnp.float32)
    y3 = _bn_train(a3, g3_ref[...], b3_ref[...])
    ad = jnp.dot(xds_ref[...], wd_ref[...], preferred_element_type=jnp.float32)
    res = _bn_train(ad, gd_ref[...], bd_ref[...])
    out_ref[...] = jnp.maximum(y3 + res, 0.0)


# ------------------------------ JAX wrapper ---------------------------------

def _im2col_taps(y, ksize, stride, padding):
    """y: (N, H, W, C) -> (N*Ho*Wo, k*k*C). Pure static slicing glue."""
    n, h, w, c = y.shape
    ho = (h + 2 * padding - ksize) // stride + 1
    wo = (w + 2 * padding - ksize) // stride + 1
    yp = jnp.pad(y, ((0, 0), (padding, padding), (padding, padding), (0, 0)))
    taps = []
    for ky in range(ksize):
        for kx in range(ksize):
            t = yp[:, ky:ky + stride * (ho - 1) + 1:stride,
                      kx:kx + stride * (wo - 1) + 1:stride, :]
            taps.append(t.reshape(n * ho * wo, c))
    return jnp.concatenate(taps, axis=-1), (ho, wo)


def bottleneck_forward(params, x_nchw, *, stride=1):
    """BottleneckMeta.forward. x: (N, Cin, H, W) NCHW. Returns (N, 4*planes, Ho, Wo)."""
    n, cin, h, w = x_nchw.shape
    planes = params["w1"].shape[1]
    cout = params["w3"].shape[1]
    has_ds = "wd" in params
    x = jnp.transpose(x_nchw, (0, 2, 3, 1)).astype(jnp.float32)   # NHWC
    m = n * h * w

    if stride == 1:
        if not has_ds:
            assert cin == cout, "identity residual needs inplanes == 4*planes"
        inputs = [x.reshape(m, cin),
                  params["w1"], params["g1"], params["b1"],
                  params["w2"], params["g2"], params["b2"],
                  params["w3"], params["g3"], params["b3"]]
        if has_ds:
            inputs += [params["wd"], params["gd"], params["bd"]]
        out = pl.pallas_call(
            partial(_bottleneck_fused_kernel, n=n, h=h, w=w, has_ds=has_ds),
            out_shape=jax.ShapeDtypeStruct((m, cout), jnp.float32),
            in_specs=[_VMEM] * len(inputs),
            out_specs=_VMEM,
        )(*inputs)
        return jnp.transpose(out.reshape(n, h, w, cout), (0, 3, 1, 2))

    # stride > 1: requires the downsample projection (as in PyTorch usage).
    assert has_ds, "stride > 1 requires a downsample branch"
    y1 = pl.pallas_call(
        _conv1_bn_relu_kernel,
        out_shape=jax.ShapeDtypeStruct((m, planes), jnp.bfloat16),
        in_specs=[_VMEM] * 4, out_specs=_VMEM,
    )(x.reshape(m, cin), params["w1"], params["g1"], params["b1"])

    taps, (ho, wo) = _im2col_taps(y1.reshape(n, h, w, planes), 3, stride, 1)
    m2 = n * ho * wo
    xds = x[:, ::stride, ::stride, :].reshape(m2, cin).astype(jnp.bfloat16)
    out = pl.pallas_call(
        _tail_kernel,
        out_shape=jax.ShapeDtypeStruct((m2, cout), jnp.float32),
        in_specs=[_VMEM] * 11, out_specs=_VMEM,
    )(taps, params["w2"], params["g2"], params["b2"],
      params["w3"], params["g3"], params["b3"],
      xds, params["wd"], params["gd"], params["bd"])
    return jnp.transpose(out.reshape(n, ho, wo, cout), (0, 3, 1, 2))


# --------------------------- parameter creation -----------------------------

def make_bottleneck_params(key, inplanes, planes, *, has_downsample):
    """Conv weights folded to (k*k*Cin, Cout) bf16 (tap-major rows); BN params f32."""
    cout = 4 * planes
    ks = iter(jax.random.split(key, 8))

    def conv_w(k, cin, co, ksize):
        bound = 1.0 / math.sqrt(cin * ksize * ksize)        # kaiming_uniform(a=sqrt(5))
        wt = jax.random.uniform(k, (co, cin, ksize, ksize), jnp.float32,
                                minval=-bound, maxval=bound)
        return jnp.transpose(wt, (2, 3, 1, 0)).reshape(
            ksize * ksize * cin, co).astype(jnp.bfloat16)

    p = {
        "w1": conv_w(next(ks), inplanes, planes, 1),
        "g1": jnp.ones((1, planes), jnp.float32),
        "b1": jnp.zeros((1, planes), jnp.float32),
        "w2": conv_w(next(ks), planes, planes, 3),
        "g2": jnp.ones((1, planes), jnp.float32),
        "b2": jnp.zeros((1, planes), jnp.float32),
        "w3": conv_w(next(ks), planes, cout, 1),
        "g3": jnp.ones((1, cout), jnp.float32),
        "b3": jnp.zeros((1, cout), jnp.float32),
    }
    if has_downsample:
        p["wd"] = conv_w(next(ks), inplanes, cout, 1)
        p["gd"] = jnp.ones((1, cout), jnp.float32)
        p["bd"] = jnp.zeros((1, cout), jnp.float32)
    return p


# ---------------------------------- main -------------------------------------

if __name__ == "__main__":
    key = jax.random.PRNGKey(0)
    kp1, kp2, kd1, kd2 = jax.random.split(key, 4)
    n, h, w = 2, 16, 16

    # Case A: default-style block (stride=1, downsample=None, inplanes=4*planes)
    inplanes_a, planes_a = 64, 16
    params_a = make_bottleneck_params(kp1, inplanes_a, planes_a, has_downsample=False)
    x_a = jax.random.normal(kd1, (n, inplanes_a, h, w), jnp.float32)
    fwd_a = jax.jit(partial(bottleneck_forward, stride=1))
    out_a = fwd_a(params_a, x_a)
    jax.block_until_ready(out_a)
    assert out_a.shape == (n, 4 * planes_a, h, w)
    assert bool(jnp.all(jnp.isfinite(out_a)))
    assert bool(jnp.all(out_a >= 0.0))                     # final ReLU

    # Case B: stage-head block (stride=2 + 1x1-conv+BN downsample)
    inplanes_b, planes_b, stride_b = 32, 16, 2
    params_b = make_bottleneck_params(kp2, inplanes_b, planes_b, has_downsample=True)
    x_b = jax.random.normal(kd2, (n, inplanes_b, h, w), jnp.float32)
    fwd_b = jax.jit(partial(bottleneck_forward, stride=stride_b))
    out_b = fwd_b(params_b, x_b)
    jax.block_until_ready(out_b)
    assert out_b.shape == (n, 4 * planes_b, h // stride_b, w // stride_b)
    assert bool(jnp.all(jnp.isfinite(out_b)))
    assert bool(jnp.all(out_b >= 0.0))

    print("KERNEL_OK")
</pallas_src>

<mosaic_0001>
module attributes {stable_mosaic.version = 11 : i64} {
  func.func @_bottleneck_fused_kernel(%arg0: memref<512x64xf32, #tpu.memory_space<vmem>>, %arg1: memref<64x16xbf16, #tpu.memory_space<vmem>>, %arg2: memref<1x16xf32, #tpu.memory_space<vmem>>, %arg3: memref<1x16xf32, #tpu.memory_space<vmem>>, %arg4: memref<144x16xbf16, #tpu.memory_space<vmem>>, %arg5: memref<1x16xf32, #tpu.memory_space<vmem>>, %arg6: memref<1x16xf32, #tpu.memory_space<vmem>>, %arg7: memref<16x64xbf16, #tpu.memory_space<vmem>>, %arg8: memref<1x64xf32, #tpu.memory_space<vmem>>, %arg9: memref<1x64xf32, #tpu.memory_space<vmem>>, %arg10: memref<512x64xf32, #tpu.memory_space<vmem>>) attributes {dimension_semantics = [], scalar_prefetch = 0 : i64, scratch_operands = 0 : i64, tpu.core_type = #tpu.core_type<tc>} {
    %c0 = arith.constant 0 : index
    %c0_0 = arith.constant 0 : index
    %0 = vector.load %arg0[%c0, %c0_0] : memref<512x64xf32, #tpu.memory_space<vmem>>, vector<512x64xf32>
    %1 = arith.truncf %0 : vector<512x64xf32> to vector<512x64xbf16>
    %c0_1 = arith.constant 0 : index
    %c0_2 = arith.constant 0 : index
    %2 = vector.load %arg1[%c0_1, %c0_2] : memref<64x16xbf16, #tpu.memory_space<vmem>>, vector<64x16xbf16>
    %cst = arith.constant dense<0.000000e+00> : vector<512x16xf32>
    %3 = tpu.matmul %1, %2, %cst {dimension_numbers = #tpu.dot_dimension_numbers<[1], [0], [0], [1], [0, 0, 1, 1], [], []>} : vector<512x64xbf16>, vector<64x16xbf16>, vector<512x16xf32> -> vector<512x16xf32>
    %c0_3 = arith.constant 0 : index
    %c0_4 = arith.constant 0 : index
    %4 = vector.load %arg2[%c0_3, %c0_4] : memref<1x16xf32, #tpu.memory_space<vmem>>, vector<1x16xf32>
    %c0_5 = arith.constant 0 : index
    %c0_6 = arith.constant 0 : index
    %5 = vector.load %arg3[%c0_5, %c0_6] : memref<1x16xf32, #tpu.memory_space<vmem>>, vector<1x16xf32>
    %cst_7 = arith.constant dense<0.000000e+00> : vector<16xf32>
    %6 = vector.multi_reduction <add>, %3, %cst_7 [0] : vector<512x16xf32> to vector<16xf32>
    %7 = vector.shape_cast %6 : vector<16xf32> to vector<1x16xf32>
    %cst_8 = arith.constant 0.001953125 : f32
    %8 = vector.broadcast %cst_8 : f32 to vector<1x16xf32>
    %9 = arith.mulf %7, %8 : vector<1x16xf32>
    %10 = arith.mulf %3, %3 : vector<512x16xf32>
    %cst_9 = arith.constant dense<0.000000e+00> : vector<16xf32>
    %11 = vector.multi_reduction <add>, %10, %cst_9 [0] : vector<512x16xf32> to vector<16xf32>
    %12 = vector.shape_cast %11 : vector<16xf32> to vector<1x16xf32>
    %cst_10 = arith.constant 0.001953125 : f32
    %13 = vector.broadcast %cst_10 : f32 to vector<1x16xf32>
    %14 = arith.mulf %12, %13 : vector<1x16xf32>
    %15 = arith.mulf %9, %9 : vector<1x16xf32>
    %16 = arith.subf %14, %15 : vector<1x16xf32>
    %cst_11 = arith.constant 0.000000e+00 : f32
    %17 = vector.broadcast %cst_11 : f32 to vector<1x16xf32>
    %18 = arith.maximumf %16, %17 : vector<1x16xf32>
    %19 = vector.broadcast %9 : vector<1x16xf32> to vector<512x16xf32>
    %20 = arith.subf %3, %19 : vector<512x16xf32>
    %cst_12 = arith.constant 9.99999974E-6 : f32
    %21 = vector.broadcast %cst_12 : f32 to vector<1x16xf32>
    %22 = arith.addf %18, %21 : vector<1x16xf32>
    %23 = math.rsqrt %22 : vector<1x16xf32>
    %24 = vector.broadcast %23 : vector<1x16xf32> to vector<512x16xf32>
    %25 = arith.mulf %20, %24 : vector<512x16xf32>
    %26 = vector.broadcast %4 : vector<1x16xf32> to vector<512x16xf32>
    %27 = arith.mulf %25, %26 : vector<512x16xf32>
    %28 = vector.broadcast %5 : vector<1x16xf32> to vector<512x16xf32>
    %29 = arith.addf %27, %28 : vector<512x16xf32>
    %cst_13 = arith.constant 0.000000e+00 : f32
    %30 = vector.broadcast %cst_13 : f32 to vector<512x16xf32>
    %31 = arith.maximumf %29, %30 : vector<512x16xf32>
    %32 = arith.truncf %31 : vector<512x16xf32> to vector<512x16xbf16>
    %33 = vector.shape_cast %32 : vector<512x16xbf16> to vector<2x16x16x16xbf16>
    %cst_14 = arith.constant 0.000000e+00 : bf16
    %34 = vector.broadcast %cst_14 : bf16 to vector<2x16x1x16xbf16>
    %35 = vector.extract_strided_slice %33 {offsets = [0, 0, 0, 0], sizes = [2, 16, 15, 16], strides = [1, 1, 1, 1]} : vector<2x16x16x16xbf16> to vector<2x16x15x16xbf16>
    %36 = tpu.concatenate %34, %35 in 2 : vector<2x16x1x16xbf16>, vector<2x16x15x16xbf16> -> vector<2x16x16x16xbf16>
    %cst_15 = arith.constant 0.000000e+00 : bf16
    %37 = vector.broadcast %cst_15 : bf16 to vector<2x1x16x16xbf16>
    %38 = vector.extract_strided_slice %36 {offsets = [0, 0, 0, 0], sizes = [2, 15, 16, 16], strides = [1, 1, 1, 1]} : vector<2x16x16x16xbf16> to vector<2x15x16x16xbf16>
    %39 = tpu.concatenate %37, %38 in 1 : vector<2x1x16x16xbf16>, vector<2x15x16x16xbf16> -> vector<2x16x16x16xbf16>
    %cst_16 = arith.constant 0.000000e+00 : bf16
    %40 = vector.broadcast %cst_16 : bf16 to vector<2x1x16x16xbf16>
    %41 = vector.extract_strided_slice %33 {offsets = [0, 0, 0, 0], sizes = [2, 15, 16, 16], strides = [1, 1, 1, 1]} : vector<2x16x16x16xbf16> to vector<2x15x16x16xbf16>
    %42 = tpu.concatenate %40, %41 in 1 : vector<2x1x16x16xbf16>, vector<2x15x16x16xbf16> -> vector<2x16x16x16xbf16>
    %cst_17 = arith.constant 0.000000e+00 : bf16
    %43 = vector.broadcast %cst_17 : bf16 to vector<2x16x1x16xbf16>
    %44 = vector.extract_strided_slice %33 {offsets = [0, 0, 1, 0], sizes = [2, 16, 15, 16], strides = [1, 1, 1, 1]} : vector<2x16x16x16xbf16> to vector<2x16x15x16xbf16>
    %45 = tpu.concatenate %44, %43 in 2 : vector<2x16x15x16xbf16>, vector<2x16x1x16xbf16> -> vector<2x16x16x16xbf16>
    %cst_18 = arith.constant 0.000000e+00 : bf16
    %46 = vector.broadcast %cst_18 : bf16 to vector<2x1x16x16xbf16>
    %47 = vector.extract_strided_slice %45 {offsets = [0, 0, 0, 0], sizes = [2, 15, 16, 16], strides = [1, 1, 1, 1]} : vector<2x16x16x16xbf16> to vector<2x15x16x16xbf16>
    %48 = tpu.concatenate %46, %47 in 1 : vector<2x1x16x16xbf16>, vector<2x15x16x16xbf16> -> vector<2x16x16x16xbf16>
    %cst_19 = arith.constant 0.000000e+00 : bf16
    %49 = vector.broadcast %cst_19 : bf16 to vector<2x16x1x16xbf16>
    %50 = vector.extract_strided_slice %33 {offsets = [0, 0, 0, 0], sizes = [2, 16, 15, 16], strides = [1, 1, 1, 1]} : vector<2x16x16x16xbf16> to vector<2x16x15x16xbf16>
    %51 = tpu.concatenate %49, %50 in 2 : vector<2x16x1x16xbf16>, vector<2x16x15x16xbf16> -> vector<2x16x16x16xbf16>
    %cst_20 = arith.constant 0.000000e+00 : bf16
    %52 = vector.broadcast %cst_20 : bf16 to vector<2x16x1x16xbf16>
    %53 = vector.extract_strided_slice %33 {offsets = [0, 0, 1, 0], sizes = [2, 16, 15, 16], strides = [1, 1, 1, 1]} : vector<2x16x16x16xbf16> to vector<2x16x15x16xbf16>
    %54 = tpu.concatenate %53, %52 in 2 : vector<2x16x15x16xbf16>, vector<2x16x1x16xbf16> -> vector<2x16x16x16xbf16>
    %cst_21 = arith.constant 0.000000e+00 : bf16
    %55 = vector.broadcast %cst_21 : bf16 to vector<2x16x1x16xbf16>
    %56 = vector.extract_strided_slice %33 {offsets = [0, 0, 0, 0], sizes = [2, 16, 15, 16], strides = [1, 1, 1, 1]} : vector<2x16x16x16xbf16> to vector<2x16x15x16xbf16>
    %57 = tpu.concatenate %55, %56 in 2 : vector<2x16x1x16xbf16>, vector<2x16x15x16xbf16> -> vector<2x16x16x16xbf16>
    %cst_22 = arith.constant 0.000000e+00 : bf16
    %58 = vector.broadcast %cst_22 : bf16 to vector<2x1x16x16xbf16>
    %59 = vector.extract_strided_slice %57 {offsets = [0, 1, 0, 0], sizes = [2, 15, 16, 16], strides = [1, 1, 1, 1]} : vector<2x16x16x16xbf16> to vector<2x15x16x16xbf16>
    %60 = tpu.concatenate %59, %58 in 1 : vector<2x15x16x16xbf16>, vector<2x1x16x16xbf16> -> vector<2x16x16x16xbf16>
    %cst_23 = arith.constant 0.000000e+00 : bf16
    %61 = vector.broadcast %cst_23 : bf16 to vector<2x1x16x16xbf16>
    %62 = vector.extract_strided_slice %33 {offsets = [0, 1, 0, 0], sizes = [2, 15, 16, 16], strides = [1, 1, 1, 1]} : vector<2x16x16x16xbf16> to vector<2x15x16x16xbf16>
    %63 = tpu.concatenate %62, %61 in 1 : vector<2x15x16x16xbf16>, vector<2x1x16x16xbf16> -> vector<2x16x16x16xbf16>
    %cst_24 = arith.constant 0.000000e+00 : bf16
    %64 = vector.broadcast %cst_24 : bf16 to vector<2x16x1x16xbf16>
    %65 = vector.extract_strided_slice %33 {offsets = [0, 0, 1, 0], sizes = [2, 16, 15, 16], strides = [1, 1, 1, 1]} : vector<2x16x16x16xbf16> to vector<2x16x15x16xbf16>
    %66 = tpu.concatenate %65, %64 in 2 : vector<2x16x15x16xbf16>, vector<2x16x1x16xbf16> -> vector<2x16x16x16xbf16>
    %cst_25 = arith.constant 0.000000e+00 : bf16
    %67 = vector.broadcast %cst_25 : bf16 to vector<2x1x16x16xbf16>
    %68 = vector.extract_strided_slice %66 {offsets = [0, 1, 0, 0], sizes = [2, 15, 16, 16], strides = [1, 1, 1, 1]} : vector<2x16x16x16xbf16> to vector<2x15x16x16xbf16>
    %69 = tpu.concatenate %68, %67 in 1 : vector<2x15x16x16xbf16>, vector<2x1x16x16xbf16> -> vector<2x16x16x16xbf16>
    %70 = tpu.concatenate %39, %42, %48, %51, %33, %54, %60, %63, %69 in 3 : vector<2x16x16x16xbf16>, vector<2x16x16x16xbf16>, vector<2x16x16x16xbf16>, vector<2x16x16x16xbf16>, vector<2x16x16x16xbf16>, vector<2x16x16x16xbf16>, vector<2x16x16x16xbf16>, vector<2x16x16x16xbf16>, vector<2x16x16x16xbf16> -> vector<2x16x16x144xbf16>
    %71 = vector.shape_cast %70 : vector<2x16x16x144xbf16> to vector<512x144xbf16>
    %c0_26 = arith.constant 0 : index
    %c0_27 = arith.constant 0 : index
    %72 = vector.load %arg4[%c0_26, %c0_27] : memref<144x16xbf16, #tpu.memory_space<vmem>>, vector<144x16xbf16>
    %cst_28 = arith.constant dense<0.000000e+00> : vector<512x16xf32>
    %73 = tpu.matmul %71, %72, %cst_28 {dimension_numbers = #tpu.dot_dimension_numbers<[1], [0], [0], [1], [0, 0, 1, 1], [], []>} : vector<512x144xbf16>, vector<144x16xbf16>, vector<512x16xf32> -> vector<512x16xf32>
    %c0_29 = arith.constant 0 : index
    %c0_30 = arith.constant 0 : index
    %74 = vector.load %arg5[%c0_29, %c0_30] : memref<1x16xf32, #tpu.memory_space<vmem>>, vector<1x16xf32>
    %c0_31 = arith.constant 0 : index
    %c0_32 = arith.constant 0 : index
    %75 = vector.load %arg6[%c0_31, %c0_32] : memref<1x16xf32, #tpu.memory_space<vmem>>, vector<1x16xf32>
    %cst_33 = arith.constant dense<0.000000e+00> : vector<16xf32>
    %76 = vector.multi_reduction <add>, %73, %cst_33 [0] : vector<512x16xf32> to vector<16xf32>
    %77 = vector.shape_cast %76 : vector<16xf32> to vector<1x16xf32>
    %cst_34 = arith.constant 0.001953125 : f32
    %78 = vector.broadcast %cst_34 : f32 to vector<1x16xf32>
    %79 = arith.mulf %77, %78 : vector<1x16xf32>
    %80 = arith.mulf %73, %73 : vector<512x16xf32>
    %cst_35 = arith.constant dense<0.000000e+00> : vector<16xf32>
    %81 = vector.multi_reduction <add>, %80, %cst_35 [0] : vector<512x16xf32> to vector<16xf32>
    %82 = vector.shape_cast %81 : vector<16xf32> to vector<1x16xf32>
    %cst_36 = arith.constant 0.001953125 : f32
    %83 = vector.broadcast %cst_36 : f32 to vector<1x16xf32>
    %84 = arith.mulf %82, %83 : vector<1x16xf32>
    %85 = arith.mulf %79, %79 : vector<1x16xf32>
    %86 = arith.subf %84, %85 : vector<1x16xf32>
    %cst_37 = arith.constant 0.000000e+00 : f32
    %87 = vector.broadcast %cst_37 : f32 to vector<1x16xf32>
    %88 = arith.maximumf %86, %87 : vector<1x16xf32>
    %89 = vector.broadcast %79 : vector<1x16xf32> to vector<512x16xf32>
    %90 = arith.subf %73, %89 : vector<512x16xf32>
    %cst_38 = arith.constant 9.99999974E-6 : f32
    %91 = vector.broadcast %cst_38 : f32 to vector<1x16xf32>
    %92 = arith.addf %88, %91 : vector<1x16xf32>
    %93 = math.rsqrt %92 : vector<1x16xf32>
    %94 = vector.broadcast %93 : vector<1x16xf32> to vector<512x16xf32>
    %95 = arith.mulf %90, %94 : vector<512x16xf32>
    %96 = vector.broadcast %74 : vector<1x16xf32> to vector<512x16xf32>
    %97 = arith.mulf %95, %96 : vector<512x16xf32>
    %98 = vector.broadcast %75 : vector<1x16xf32> to vector<512x16xf32>
    %99 = arith.addf %97, %98 : vector<512x16xf32>
    %cst_39 = arith.constant 0.000000e+00 : f32
    %100 = vector.broadcast %cst_39 : f32 to vector<512x16xf32>
    %101 = arith.maximumf %99, %100 : vector<512x16xf32>
    %102 = arith.truncf %101 : vector<512x16xf32> to vector<512x16xbf16>
    %c0_40 = arith.constant 0 : index
    %c0_41 = arith.constant 0 : index
    %103 = vector.load %arg7[%c0_40, %c0_41] : memref<16x64xbf16, #tpu.memory_space<vmem>>, vector<16x64xbf16>
    %cst_42 = arith.constant dense<0.000000e+00> : vector<512x64xf32>
    %104 = tpu.matmul %102, %103, %cst_42 {dimension_numbers = #tpu.dot_dimension_numbers<[1], [0], [0], [1], [0, 0, 1, 1], [], []>} : vector<512x16xbf16>, vector<16x64xbf16>, vector<512x64xf32> -> vector<512x64xf32>
    %c0_43 = arith.constant 0 : index
    %c0_44 = arith.constant 0 : index
    %105 = vector.load %arg8[%c0_43, %c0_44] : memref<1x64xf32, #tpu.memory_space<vmem>>, vector<1x64xf32>
    %c0_45 = arith.constant 0 : index
    %c0_46 = arith.constant 0 : index
    %106 = vector.load %arg9[%c0_45, %c0_46] : memref<1x64xf32, #tpu.memory_space<vmem>>, vector<1x64xf32>
    %cst_47 = arith.constant dense<0.000000e+00> : vector<64xf32>
    %107 = vector.multi_reduction <add>, %104, %cst_47 [0] : vector<512x64xf32> to vector<64xf32>
    %108 = vector.shape_cast %107 : vector<64xf32> to vector<1x64xf32>
    %cst_48 = arith.constant 0.001953125 : f32
    %109 = vector.broadcast %cst_48 : f32 to vector<1x64xf32>
    %110 = arith.mulf %108, %109 : vector<1x64xf32>
    %111 = arith.mulf %104, %104 : vector<512x64xf32>
    %cst_49 = arith.constant dense<0.000000e+00> : vector<64xf32>
    %112 = vector.multi_reduction <add>, %111, %cst_49 [0] : vector<512x64xf32> to vector<64xf32>
    %113 = vector.shape_cast %112 : vector<64xf32> to vector<1x64xf32>
    %cst_50 = arith.constant 0.001953125 : f32
    %114 = vector.broadcast %cst_50 : f32 to vector<1x64xf32>
    %115 = arith.mulf %113, %114 : vector<1x64xf32>
    %116 = arith.mulf %110, %110 : vector<1x64xf32>
    %117 = arith.subf %115, %116 : vector<1x64xf32>
    %cst_51 = arith.constant 0.000000e+00 : f32
    %118 = vector.broadcast %cst_51 : f32 to vector<1x64xf32>
    %119 = arith.maximumf %117, %118 : vector<1x64xf32>
    %120 = vector.broadcast %110 : vector<1x64xf32> to vector<512x64xf32>
    %121 = arith.subf %104, %120 : vector<512x64xf32>
    %cst_52 = arith.constant 9.99999974E-6 : f32
    %122 = vector.broadcast %cst_52 : f32 to vector<1x64xf32>
    %123 = arith.addf %119, %122 : vector<1x64xf32>
    %124 = math.rsqrt %123 : vector<1x64xf32>
    %125 = vector.broadcast %124 : vector<1x64xf32> to vector<512x64xf32>
    %126 = arith.mulf %121, %125 : vector<512x64xf32>
    %127 = vector.broadcast %105 : vector<1x64xf32> to vector<512x64xf32>
    %128 = arith.mulf %126, %127 : vector<512x64xf32>
    %129 = vector.broadcast %106 : vector<1x64xf32> to vector<512x64xf32>
    %130 = arith.addf %128, %129 : vector<512x64xf32>
    %131 = arith.addf %130, %0 : vector<512x64xf32>
    %cst_53 = arith.constant 0.000000e+00 : f32
    %132 = vector.broadcast %cst_53 : f32 to vector<512x64xf32>
    %133 = arith.maximumf %131, %132 : vector<512x64xf32>
    %c0_54 = arith.constant 0 : index
    %c0_55 = arith.constant 0 : index
    %134 = vector.load %arg10[%c0_54, %c0_55] : memref<512x64xf32, #tpu.memory_space<vmem>>, vector<512x64xf32>
    tpu.vector_store %arg10[%c0_54, %c0_55], %133 {strides = array<i32>} : memref<512x64xf32, #tpu.memory_space<vmem>>, vector<512x64xf32>,
    return
  }
}

</mosaic_0001>

<llo_original>
// kernel: bottleneck_forward.1
$region0: #{bottleneck_forward.1}
  #allocation0 [shape = 'u32[]', space=smem, size = 0x4, offset = 0x4, fixed_abs, tag = 'smem constant byte address 0x4 - core index']
  #allocation1 [shape = 'u32[144,128]{1,0:T(1,128)}', space=vmem, size = 0x12000, scoped, tag = 'internal scratch']
  %s0 = inlined_call_operand.hbm [shape: f32[512,64], index: 0, kind: input, shape index: {}]
  %s1 = inlined_call_operand.vmem [shape: bf16[64,16], index: 1, kind: input, shape index: {}]
  %s2 = inlined_call_operand.vmem [shape: f32[1,16], index: 2, kind: input, shape index: {}]
  %s3 = inlined_call_operand.vmem [shape: f32[1,16], index: 3, kind: input, shape index: {}]
  %s4 = inlined_call_operand.vmem [shape: bf16[144,16], index: 4, kind: input, shape index: {}]
  %s5 = inlined_call_operand.vmem [shape: f32[1,16], index: 5, kind: input, shape index: {}]
  %s6 = inlined_call_operand.vmem [shape: f32[1,16], index: 6, kind: input, shape index: {}]
  %s7 = inlined_call_operand.vmem [shape: bf16[16,64], index: 7, kind: input, shape index: {}]
  %s8 = inlined_call_operand.vmem [shape: f32[1,64], index: 8, kind: input, shape index: {}]
  %s9 = inlined_call_operand.vmem [shape: f32[1,64], index: 9, kind: input, shape index: {}]
  %s10 = inlined_call_operand.hbm [shape: f32[512,64], index: 10, kind: output, shape index: {}]
  %s11 = sld [smem:[#allocation0]]
  $region54: #{bottleneck_forward.1} parent=0
    _
  %s13 = ssub.s32 1, %s11
  %s14 = scalar_select 0, %s13, %s11
  $region1: #{bottleneck_forward.1} parent=0
    #allocation2 [shape = 'u8[262144]{0}', space=vmem, size = 0x40000, scoped, tag = 'input window, operand 0, single buffered']
    #allocation3 [shape = 's32[1]{0}', space=sflag, size = 0x4, scoped, tag = 'scoped memory for bottleneck_forward.1']
    #allocation4 [shape = 's32[1]{0}', space=sflag, size = 0x4, scoped, tag = 'scoped memory for bottleneck_forward.1']
    #allocation5 [shape = 'u8[262144]{0}', space=vmem, size = 0x40000, scoped, tag = 'output window, operand 0, single buffered']
    %15 = vsyncpa [#allocation3], 0
    %16 = vsyncpa [#allocation4], 0
    // Predicated region
    $region2: #{bottleneck_forward.1} parent=1 // pred_check
      _
    $region3: #{bottleneck_forward.1} parent=1 // pred_check_branch
      %18 = sbr.rel (0) target = $region5
    $region4: #{bottleneck_forward.1} parent=1 // pred_region
      %s20 = ssub.s32 8192, 8192
      %21 = vsyncadd [#allocation3], %s20
      %s22 = sshll.u32 [#allocation2], 4
      %s23 = int_to_ptr.vmem [resolvable:$true] %s22
      %28 = dma.hbm_to_vmem [thread:$0]  %s0, 8192, %s23, [#allocation3], 128, 128, 8
    $region5: #{bottleneck_forward.1} parent=1 // pred_fallthru
      _
    // Predicated region
    $region6: #{bottleneck_forward.1} parent=1 // pred_check
      _
    $region7: #{bottleneck_forward.1} parent=1 // pred_check_branch
      %30 = sbr.rel (0) target = $region9
    $region8: #{bottleneck_forward.1} parent=1 // pred_region
      _
    $region9: #{bottleneck_forward.1} parent=1 // pred_fallthru
      _
    // Predicated region
    $region10: #{bottleneck_forward.1} parent=1 // pred_check
      _
    $region11: #{bottleneck_forward.1} parent=1 // pred_check_branch
      %32 = sbr.rel (0) target = $region13
    $region12: #{bottleneck_forward.1} parent=1 // pred_region
      _
    $region13: #{bottleneck_forward.1} parent=1 // pred_fallthru
      _
    // Predicated region
    $region14: #{bottleneck_forward.1} parent=1 // pred_check
      _
    $region15: #{bottleneck_forward.1} parent=1 // pred_check_branch
      %34 = sbr.rel (0) target = $region17
    $region16: #{bottleneck_forward.1} parent=1 // pred_region
      _
    $region17: #{bottleneck_forward.1} parent=1 // pred_fallthru
      _
    // Predicated region
    $region18: #{bottleneck_forward.1} parent=1 // pred_check
      _
    $region19: #{bottleneck_forward.1} parent=1 // pred_check_branch
      %36 = sbr.rel (0) target = $region21
    $region20: #{bottleneck_forward.1} parent=1 // pred_region
      _
    $region21: #{bottleneck_forward.1} parent=1 // pred_fallthru
      _
    // Predicated region
    $region22: #{bottleneck_forward.1} parent=1 // pred_check
      _
    $region23: #{bottleneck_forward.1} parent=1 // pred_check_branch
      %38 = sbr.rel (0) target = $region25
    $region24: #{bottleneck_forward.1} parent=1 // pred_region
      _
    $region25: #{bottleneck_forward.1} parent=1 // pred_fallthru
      _
    // Predicated region
    $region26: #{bottleneck_forward.1} parent=1 // pred_check
      _
    $region27: #{bottleneck_forward.1} parent=1 // pred_check_branch
      %40 = sbr.rel (0) target = $region29
    $region28: #{bottleneck_forward.1} parent=1 // pred_region
      _
    $region29: #{bottleneck_forward.1} parent=1 // pred_fallthru
      _
    // Predicated region
    $region30: #{bottleneck_forward.1} parent=1 // pred_check
      _
    $region31: #{bottleneck_forward.1} parent=1 // pred_check_branch
      %42 = sbr.rel (0) target = $region33
    $region32: #{bottleneck_forward.1} parent=1 // pred_region
      _
    $region33: #{bottleneck_forward.1} parent=1 // pred_fallthru
      _
    // Predicated region
    $region34: #{bottleneck_forward.1} parent=1 // pred_check
      _
    $region35: #{bottleneck_forward.1} parent=1 // pred_check_branch
      %44 = sbr.rel (0) target = $region37
    $region36: #{bottleneck_forward.1} parent=1 // pred_region
      _
    $region37: #{bottleneck_forward.1} parent=1 // pred_fallthru
      _
    // Predicated region
    $region38: #{bottleneck_forward.1} parent=1 // pred_check
      _
    $region39: #{bottleneck_forward.1} parent=1 // pred_check_branch
      %46 = sbr.rel (0) target = $region41
    $region40: #{bottleneck_forward.1} parent=1 // pred_region
      _
    $region41: #{bottleneck_forward.1} parent=1 // pred_fallthru
      _
    // Predicated region
    $region42: #{bottleneck_forward.1} parent=1 // pred_check
      _
    $region43: #{bottleneck_forward.1} parent=1 // pred_check_branch
      %48 = sbr.rel (0) target = $region45
    $region44: #{bottleneck_forward.1} parent=1 // pred_region
      %49 = dma.done [#allocation3], 8192
    $region45: #{bottleneck_forward.1} parent=1 // pred_fallthru
      _
    %v51 = vld [vmem:[#allocation2] sm:$0xff]
    %v52 = vld [vmem:[#allocation2 + $0x8] sm:$0xff]
    %v53 = vld [vmem:[#allocation2 + $0x10] sm:$0xff]
    %v54 = vld [vmem:[#allocation2 + $0x18] sm:$0xff]
    %v55 = vld [vmem:[#allocation2 + $0x20] sm:$0xff]
    %v56 = vld [vmem:[#allocation2 + $0x28] sm:$0xff]
    %v57 = vld [vmem:[#allocation2 + $0x30] sm:$0xff]
    %v58 = vld [vmem:[#allocation2 + $0x38] sm:$0xff]
    %v59 = vld [vmem:[#allocation2 + $0x40] sm:$0xff]
    %v60 = vld [vmem:[#allocation2 + $0x48] sm:$0xff]
    %v61 = vld [vmem:[#allocation2 + $0x50] sm:$0xff]
    %v62 = vld [vmem:[#allocation2 + $0x58] sm:$0xff]
    %v63 = vld [vmem:[#allocation2 + $0x60] sm:$0xff]
    %v64 = vld [vmem:[#allocation2 + $0x68] sm:$0xff]
    %v65 = vld [vmem:[#allocation2 + $0x70] sm:$0xff]
    %v66 = vld [vmem:[#allocation2 + $0x78] sm:$0xff]
    %v67 = vld [vmem:[#allocation2 + $0x80] sm:$0xff]
    %v68 = vld [vmem:[#allocation2 + $0x88] sm:$0xff]
    %v69 = vld [vmem:[#allocation2 + $0x90] sm:$0xff]
    %v70 = vld [vmem:[#allocation2 + $0x98] sm:$0xff]
    %v71 = vld [vmem:[#allocation2 + $0xa0] sm:$0xff]
    %v72 = vld [vmem:[#allocation2 + $0xa8] sm:$0xff]
    %v73 = vld [vmem:[#allocation2 + $0xb0] sm:$0xff]
    %v74 = vld [vmem:[#allocation2 + $0xb8] sm:$0xff]
    %v75 = vld [vmem:[#allocation2 + $0xc0] sm:$0xff]
    %v76 = vld [vmem:[#allocation2 + $0xc8] sm:$0xff]
    %v77 = vld [vmem:[#allocation2 + $0xd0] sm:$0xff]
    %v78 = vld [vmem:[#allocation2 + $0xd8] sm:$0xff]
    %v79 = vld [vmem:[#allocation2 + $0xe0] sm:$0xff]
    %v80 = vld [vmem:[#allocation2 + $0xe8] sm:$0xff]
    %v81 = vld [vmem:[#allocation2 + $0xf0] sm:$0xff]
    %v82 = vld [vmem:[#allocation2 + $0xf8] sm:$0xff]
    %v83 = vld [vmem:[#allocation2 + $0x100] sm:$0xff]
    %v84 = vld [vmem:[#allocation2 + $0x108] sm:$0xff]
    %v85 = vld [vmem:[#allocation2 + $0x110] sm:$0xff]
    %v86 = vld [vmem:[#allocation2 + $0x118] sm:$0xff]
    %v87 = vld [vmem:[#allocation2 + $0x120] sm:$0xff]
    %v88 = vld [vmem:[#allocation2 + $0x128] sm:$0xff]
    %v89 = vld [vmem:[#allocation2 + $0x130] sm:$0xff]
    %v90 = vld [vmem:[#allocation2 + $0x138] sm:$0xff]
    %v91 = vld [vmem:[#allocation2 + $0x140] sm:$0xff]
    %v92 = vld [vmem:[#allocation2 + $0x148] sm:$0xff]
    %v93 = vld [vmem:[#allocation2 + $0x150] sm:$0xff]
    %v94 = vld [vmem:[#allocation2 + $0x158] sm:$0xff]
    %v95 = vld [vmem:[#allocation2 + $0x160] sm:$0xff]
    %v96 = vld [vmem:[#allocation2 + $0x168] sm:$0xff]
    %v97 = vld [vmem:[#allocation2 + $0x170] sm:$0xff]
    %v98 = vld [vmem:[#allocation2 + $0x178] sm:$0xff]
    %v99 = vld [vmem:[#allocation2 + $0x180] sm:$0xff]
    %v100 = vld [vmem:[#allocation2 + $0x188] sm:$0xff]
    %v101 = vld [vmem:[#allocation2 + $0x190] sm:$0xff]
    %v102 = vld [vmem:[#allocation2 + $0x198] sm:$0xff]
    %v103 = vld [vmem:[#allocation2 + $0x1a0] sm:$0xff]
    %v104 = vld [vmem:[#allocation2 + $0x1a8] sm:$0xff]
    %v105 = vld [vmem:[#allocation2 + $0x1b0] sm:$0xff]
    %v106 = vld [vmem:[#allocation2 + $0x1b8] sm:$0xff]
    %v107 = vld [vmem:[#allocation2 + $0x1c0] sm:$0xff]
    %v108 = vld [vmem:[#allocation2 + $0x1c8] sm:$0xff]
    %v109 = vld [vmem:[#allocation2 + $0x1d0] sm:$0xff]
    %v110 = vld [vmem:[#allocation2 + $0x1d8] sm:$0xff]
    %v111 = vld [vmem:[#allocation2 + $0x1e0] sm:$0xff]
    %v112 = vld [vmem:[#allocation2 + $0x1e8] sm:$0xff]
    %v113 = vld [vmem:[#allocation2 + $0x1f0] sm:$0xff]
    %v114 = vld [vmem:[#allocation2 + $0x1f8] sm:$0xff]
    %v115 = vpack.c.bf16 %v52, %v51
    %v116 = vpack.c.bf16 %v54, %v53
    %v117 = vpack.c.bf16 %v56, %v55
    %v118 = vpack.c.bf16 %v58, %v57
    %v119 = vpack.c.bf16 %v60, %v59
    %v120 = vpack.c.bf16 %v62, %v61
    %v121 = vpack.c.bf16 %v64, %v63
    %v122 = vpack.c.bf16 %v66, %v65
    %v123 = vpack.c.bf16 %v68, %v67
    %v124 = vpack.c.bf16 %v70, %v69
    %v125 = vpack.c.bf16 %v72, %v71
    %v126 = vpack.c.bf16 %v74, %v73
    %v127 = vpack.c.bf16 %v76, %v75
    %v128 = vpack.c.bf16 %v78, %v77
    %v129 = vpack.c.bf16 %v80, %v79
    %v130 = vpack.c.bf16 %v82, %v81
    %v131 = vpack.c.bf16 %v84, %v83
    %v132 = vpack.c.bf16 %v86, %v85
    %v133 = vpack.c.bf16 %v88, %v87
    %v134 = vpack.c.bf16 %v90, %v89
    %v135 = vpack.c.bf16 %v92, %v91
    %v136 = vpack.c.bf16 %v94, %v93
    %v137 = vpack.c.bf16 %v96, %v95
    %v138 = vpack.c.bf16 %v98, %v97
    %v139 = vpack.c.bf16 %v100, %v99
    %v140 = vpack.c.bf16 %v102, %v101
    %v141 = vpack.c.bf16 %v104, %v103
    %v142 = vpack.c.bf16 %v106, %v105
    %v143 = vpack.c.bf16 %v108, %v107
    %v144 = vpack.c.bf16 %v110, %v109
    %v145 = vpack.c.bf16 %v112, %v111
    %v146 = vpack.c.bf16 %v114, %v113
    %v147 = vld [vmem:[%s1] sm:$0xf]
    %v148 = vld [vmem:[%s1 + $0x4] sm:$0xf]
    %v149 = vld [vmem:[%s1 + $0x8] sm:$0xf]
    %v150 = vld [vmem:[%s1 + $0xc] sm:$0xf]
    %v151 = vld [vmem:[%s1 + $0x10] sm:$0xf]
    %v152 = vld [vmem:[%s1 + $0x14] sm:$0xf]
    %v153 = vld [vmem:[%s1 + $0x18] sm:$0xf]
    %v154 = vld [vmem:[%s1 + $0x1c] sm:$0xf]
    %v163 = vunpack.c.l.b16 %v147
    %v164 = vunpack.c.l.b16 %v148
    %v165 = vunpack.c.l.b16 %v149
    %v166 = vunpack.c.l.b16 %v150
    %v167 = vunpack.c.l.b16 %v151
    %v168 = vunpack.c.l.b16 %v152
    %v169 = vunpack.c.l.b16 %v153
    %v170 = vunpack.c.l.b16 %v154
    %v171 = vpack.c.b16 %v164, %v163
    %v172 = vpack.c.b16 %v166, %v165
    %v173 = vpack.c.b16 %v168, %v167
    %v174 = vpack.c.b16 %v170, %v169
    %vm179 = vcmask 523264
    %v181 = vsel %vm179, %v115, 0
    %v184 = vsel %vm179, %v116, 0
    %v187 = vsel %vm179, %v117, 0
    %v190 = vsel %vm179, %v118, 0
    %v193 = vsel %vm179, %v119, 0
    %v196 = vsel %vm179, %v120, 0
    %v199 = vsel %vm179, %v121, 0
    %v202 = vsel %vm179, %v122, 0
    %v205 = vsel %vm179, %v123, 0
    %v208 = vsel %vm179, %v124, 0
    %v211 = vsel %vm179, %v125, 0
    %v214 = vsel %vm179, %v126, 0
    %v217 = vsel %vm179, %v127, 0
    %v220 = vsel %vm179, %v128, 0
    %v223 = vsel %vm179, %v129, 0
    %v226 = vsel %vm179, %v130, 0
    %v229 = vsel %vm179, %v131, 0
    %v232 = vsel %vm179, %v132, 0
    %v235 = vsel %vm179, %v133, 0
    %v238 = vsel %vm179, %v134, 0
    %v241 = vsel %vm179, %v135, 0
    %v244 = vsel %vm179, %v136, 0
    %v247 = vsel %vm179, %v137, 0
    %v250 = vsel %vm179, %v138, 0
    %v253 = vsel %vm179, %v139, 0
    %v256 = vsel %vm179, %v140, 0
    %v259 = vsel %vm179, %v141, 0
    %v262 = vsel %vm179, %v142, 0
    %v265 = vsel %vm179, %v143, 0
    %v268 = vsel %vm179, %v144, 0
    %v271 = vsel %vm179, %v145, 0
    %v274 = vsel %vm179, %v146, 0
    %276 = vmatprep.subr.bf16.mxu0 0
    %277 = vmatpush1.bf16.msra.mxu0 %v171
    %278 = vmatprep.subr.bf16.mxu0 0
    %279 = vmatpush1.bf16.msra.mxu0 %v172
    %280 = vmatprep.subr.bf16.mxu0 0
    %281 = vmatpush1.bf16.msra.mxu0 %v173
    %282 = vmatprep.subr.bf16.mxu0 0
    %283 = vmatpush1.bf16.msra.mxu0 %v174
    %284 = vmatprep.subr.bf16.mxu0 0
    %285 = vmatpush1.bf16.msra.mxu0 0
    %286 = vmatprep.subr.bf16.mxu0 0
    %287 = vmatpush1.bf16.msra.mxu0 0
    %288 = vmatprep.subr.bf16.mxu0 0
    %289 = vmatpush1.bf16.msra.mxu0 0
    %290 = vmatprep.subr.bf16.mxu0 0
    %291 = vmatpush1.bf16.msra.mxu0 0
    %292 = vmatprep.subr.bf16.mxu0 0
    %293 = vmatpush1.bf16.msra.mxu0 0
    %294 = vmatprep.subr.bf16.mxu0 0
    %295 = vmatpush1.bf16.msra.mxu0 0
    %296 = vmatprep.subr.bf16.mxu0 0
    %297 = vmatpush1.bf16.msra.mxu0 0
    %298 = vmatprep.subr.bf16.mxu0 0
    %299 = vmatpush1.bf16.msra.mxu0 0
    %300 = vmatprep.subr.bf16.mxu0 0
    %301 = vmatpush1.bf16.msra.mxu0 0
    %302 = vmatprep.subr.bf16.mxu0 0
    %303 = vmatpush1.bf16.msra.mxu0 0
    %304 = vmatprep.subr.bf16.mxu0 0
    %305 = vmatpush1.bf16.msra.mxu0 0
    %306 = vmatprep.subr.bf16.mxu0 0
    %307 = vmatpush1.bf16.msra.mxu0 0
    %308 = vmatprep.mubr.bf16.mxu0 0
    %309 = vmatmul.mubr.bf16.gmra.mrb[0].mxu0 %v181
    %v310 = vpop.f32.mrb[0].mxu0
    %v311 = vadd.f32 0.0, %v310
    %v312 = vpop.f32.mrb[0].mxu0
    %v313 = vpop.f32.mrb[0].mxu0
    %v314 = vadd.f32 0.0, %v313
    %v315 = vpop.f32.mrb[0].mxu0
    %316 = vmatprep.mubr.bf16.mxu0 0
    %317 = vmatmul.mubr.bf16.gmra.mrb[0].mxu0 %v184
    %v318 = vpop.f32.mrb[0].mxu0
    %v319 = vadd.f32 0.0, %v318
    %v320 = vpop.f32.mrb[0].mxu0
    %v321 = vpop.f32.mrb[0].mxu0
    %v322 = vadd.f32 0.0, %v321
    %v323 = vpop.f32.mrb[0].mxu0
    %324 = vmatprep.mubr.bf16.mxu0 0
    %325 = vmatmul.mubr.bf16.gmra.mrb[0].mxu0 %v187
    %v326 = vpop.f32.mrb[0].mxu0
    %v327 = vadd.f32 0.0, %v326
    %v328 = vpop.f32.mrb[0].mxu0
    %v329 = vpop.f32.mrb[0].mxu0
    %v330 = vadd.f32 0.0, %v329
    %v331 = vpop.f32.mrb[0].mxu0
    %332 = vmatprep.mubr.bf16.mxu0 0
    %333 = vmatmul.mubr.bf16.gmra.mrb[0].mxu0 %v190
    %v334 = vpop.f32.mrb[0].mxu0
    %v335 = vadd.f32 0.0, %v334
    %v336 = vpop.f32.mrb[0].mxu0
    %v337 = vpop.f32.mrb[0].mxu0
    %v338 = vadd.f32 0.0, %v337
    %v339 = vpop.f32.mrb[0].mxu0
    %340 = vmatprep.mubr.bf16.mxu0 0
    %341 = vmatmul.mubr.bf16.gmra.mrb[0].mxu0 %v193
    %v342 = vpop.f32.mrb[0].mxu0
    %v343 = vadd.f32 0.0, %v342
    %v344 = vpop.f32.mrb[0].mxu0
    %v345 = vpop.f32.mrb[0].mxu0
    %v346 = vadd.f32 0.0, %v345
    %v347 = vpop.f32.mrb[0].mxu0
    %348 = vmatprep.mubr.bf16.mxu0 0
    %349 = vmatmul.mubr.bf16.gmra.mrb[0].mxu0 %v196
    %v350 = vpop.f32.mrb[0].mxu0
    %v351 = vadd.f32 0.0, %v350
    %v352 = vpop.f32.mrb[0].mxu0
    %v353 = vpop.f32.mrb[0].mxu0
    %v354 = vadd.f32 0.0, %v353
    %v355 = vpop.f32.mrb[0].mxu0
    %356 = vmatprep.mubr.bf16.mxu0 0
    %357 = vmatmul.mubr.bf16.gmra.mrb[0].mxu0 %v199
    %v358 = vpop.f32.mrb[0].mxu0
    %v359 = vadd.f32 0.0, %v358
    %v360 = vpop.f32.mrb[0].mxu0
    %v361 = vpop.f32.mrb[0].mxu0
    %v362 = vadd.f32 0.0, %v361
    %v363 = vpop.f32.mrb[0].mxu0
    %364 = vmatprep.mubr.bf16.mxu0 0
    %365 = vmatmul.mubr.bf16.gmra.mrb[0].mxu0 %v202
    %v366 = vpop.f32.mrb[0].mxu0
    %v367 = vadd.f32 0.0, %v366
    %v368 = vpop.f32.mrb[0].mxu0
    %v369 = vpop.f32.mrb[0].mxu0
    %v370 = vadd.f32 0.0, %v369
    %v371 = vpop.f32.mrb[0].mxu0
    %372 = vmatprep.mubr.bf16.mxu0 0
    %373 = vmatmul.mubr.bf16.gmra.mrb[0].mxu0 %v205
    %v374 = vpop.f32.mrb[0].mxu0
    %v375 = vadd.f32 0.0, %v374
    %v376 = vpop.f32.mrb[0].mxu0
    %v377 = vpop.f32.mrb[0].mxu0
    %v378 = vadd.f32 0.0, %v377
    %v379 = vpop.f32.mrb[0].mxu0
    %380 = vmatprep.mubr.bf16.mxu0 0
    %381 = vmatmul.mubr.bf16.gmra.mrb[0].mxu0 %v208
    %v382 = vpop.f32.mrb[0].mxu0
    %v383 = vadd.f32 0.0, %v382
    %v384 = vpop.f32.mrb[0].mxu0
    %v385 = vpop.f32.mrb[0].mxu0
    %v386 = vadd.f32 0.0, %v385
    %v387 = vpop.f32.mrb[0].mxu0
    %388 = vmatprep.mubr.bf16.mxu0 0
    %389 = vmatmul.mubr.bf16.gmra.mrb[0].mxu0 %v211
    %v390 = vpop.f32.mrb[0].mxu0
    %v391 = vadd.f32 0.0, %v390
    %v392 = vpop.f32.mrb[0].mxu0
    %v393 = vpop.f32.mrb[0].mxu0
    %v394 = vadd.f32 0.0, %v393
    %v395 = vpop.f32.mrb[0].mxu0
    %396 = vmatprep.mubr.bf16.mxu0 0
    %397 = vmatmul.mubr.bf16.gmra.mrb[0].mxu0 %v214
    %v398 = vpop.f32.mrb[0].mxu0
    %v399 = vadd.f32 0.0, %v398
    %v400 = vpop.f32.mrb[0].mxu0
    %v401 = vpop.f32.mrb[0].mxu0
    %v402 = vadd.f32 0.0, %v401
    %v403 = vpop.f32.mrb[0].mxu0
    %404 = vmatprep.mubr.bf16.mxu0 0
    %405 = vmatmul.mubr.bf16.gmra.mrb[0].mxu0 %v217
    %v406 = vpop.f32.mrb[0].mxu0
    %v407 = vadd.f32 0.0, %v406
    %v408 = vpop.f32.mrb[0].mxu0
    %v409 = vpop.f32.mrb[0].mxu0
    %v410 = vadd.f32 0.0, %v409
    %v411 = vpop.f32.mrb[0].mxu0
    %412 = vmatprep.mubr.bf16.mxu0 0
    %413 = vmatmul.mubr.bf16.gmra.mrb[0].mxu0 %v220
    %v414 = vpop.f32.mrb[0].mxu0
    %v415 = vadd.f32 0.0, %v414
    %v416 = vpop.f32.mrb[0].mxu0
    %v417 = vpop.f32.mrb[0].mxu0
    %v418 = vadd.f32 0.0, %v417
    %v419 = vpop.f32.mrb[0].mxu0
    %420 = vmatprep.mubr.bf16.mxu0 0
    %421 = vmatmul.mubr.bf16.gmra.mrb[0].mxu0 %v223
    %v422 = vpop.f32.mrb[0].mxu0
    %v423 = vadd.f32 0.0, %v422
    %v424 = vpop.f32.mrb[0].mxu0
    %v425 = vpop.f32.mrb[0].mxu0
    %v426 = vadd.f32 0.0, %v425
    %v427 = vpop.f32.mrb[0].mxu0
    %428 = vmatprep.mubr.bf16.mxu0 0
    %429 = vmatmul.mubr.bf16.gmra.mrb[0].mxu0 %v226
    %v430 = vpop.f32.mrb[0].mxu0
    %v431 = vadd.f32 0.0, %v430
    %v432 = vpop.f32.mrb[0].mxu0
    %v433 = vpop.f32.mrb[0].mxu0
    %v434 = vadd.f32 0.0, %v433
    %v435 = vpop.f32.mrb[0].mxu0
    %436 = vmatprep.mubr.bf16.mxu0 0
    %437 = vmatmul.mubr.bf16.gmra.mrb[0].mxu0 %v229
    %v438 = vpop.f32.mrb[0].mxu0
    %v439 = vadd.f32 0.0, %v438
    %v440 = vpop.f32.mrb[0].mxu0
    %v441 = vpop.f32.mrb[0].mxu0
    %v442 = vadd.f32 0.0, %v441
    %v443 = vpop.f32.mrb[0].mxu0
    %444 = vmatprep.mubr.bf16.mxu0 0
    %445 = vmatmul.mubr.bf16.gmra.mrb[0].mxu0 %v232
    %v446 = vpop.f32.mrb[0].mxu0
    %v447 = vadd.f32 0.0, %v446
    %v448 = vpop.f32.mrb[0].mxu0
    %v449 = vpop.f32.mrb[0].mxu0
    %v450 = vadd.f32 0.0, %v449
    %v451 = vpop.f32.mrb[0].mxu0
    %452 = vmatprep.mubr.bf16.mxu0 0
    %453 = vmatmul.mubr.bf16.gmra.mrb[0].mxu0 %v235
    %v454 = vpop.f32.mrb[0].mxu0
    %v455 = vadd.f32 0.0, %v454
    %v456 = vpop.f32.mrb[0].mxu0
    %v457 = vpop.f32.mrb[0].mxu0
    %v458 = vadd.f32 0.0, %v457
    %v459 = vpop.f32.mrb[0].mxu0
    %460 = vmatprep.mubr.bf16.mxu0 0
    %461 = vmatmul.mubr.bf16.gmra.mrb[0].mxu0 %v238
    %v462 = vpop.f32.mrb[0].mxu0
    %v463 = vadd.f32 0.0, %v462
    %v464 = vpop.f32.mrb[0].mxu0
    %v465 = vpop.f32.mrb[0].mxu0
    %v466 = vadd.f32 0.0, %v465
    %v467 = vpop.f32.mrb[0].mxu0
    %468 = vmatprep.mubr.bf16.mxu0 0
    %469 = vmatmul.mubr.bf16.gmra.mrb[0].mxu0 %v241
    %v470 = vpop.f32.mrb[0].mxu0
    %v471 = vadd.f32 0.0, %v470
    %v472 = vpop.f32.mrb[0].mxu0
    %v473 = vpop.f32.mrb[0].mxu0
    %v474 = vadd.f32 0.0, %v473
    %v475 = vpop.f32.mrb[0].mxu0
    %476 = vmatprep.mubr.bf16.mxu0 0
    %477 = vmatmul.mubr.bf16.gmra.mrb[0].mxu0 %v244
    %v478 = vpop.f32.mrb[0].mxu0
    %v479 = vadd.f32 0.0, %v478
    %v480 = vpop.f32.mrb[0].mxu0
    %v481 = vpop.f32.mrb[0].mxu0
    %v482 = vadd.f32 0.0, %v481
    %v483 = vpop.f32.mrb[0].mxu0
    %484 = vmatprep.mubr.bf16.mxu0 0
    %485 = vmatmul.mubr.bf16.gmra.mrb[0].mxu0 %v247
    %v486 = vpop.f32.mrb[0].mxu0
    %v487 = vadd.f32 0.0, %v486
    %v488 = vpop.f32.mrb[0].mxu0
    %v489 = vpop.f32.mrb[0].mxu0
    %v490 = vadd.f32 0.0, %v489
    %v491 = vpop.f32.mrb[0].mxu0
    %492 = vmatprep.mubr.bf16.mxu0 0
    %493 = vmatmul.mubr.bf16.gmra.mrb[0].mxu0 %v250
    %v494 = vpop.f32.mrb[0].mxu0
    %v495 = vadd.f32 0.0, %v494
    %v496 = vpop.f32.mrb[0].mxu0
    %v497 = vpop.f32.mrb[0].mxu0
    %v498 = vadd.f32 0.0, %v497
    %v499 = vpop.f32.mrb[0].mxu0
    %500 = vmatprep.mubr.bf16.mxu0 0
    %501 = vmatmul.mubr.bf16.gmra.mrb[0].mxu0 %v253
    %v502 = vpop.f32.mrb[0].mxu0
    %v503 = vadd.f32 0.0, %v502
    %v504 = vpop.f32.mrb[0].mxu0
    %v505 = vpop.f32.mrb[0].mxu0
    %v506 = vadd.f32 0.0, %v505
    %v507 = vpop.f32.mrb[0].mxu0
    %508 = vmatprep.mubr.bf16.mxu0 0
    %509 = vmatmul.mubr.bf16.gmra.mrb[0].mxu0 %v256
    %v510 = vpop.f32.mrb[0].mxu0
    %v511 = vadd.f32 0.0, %v510
    %v512 = vpop.f32.mrb[0].mxu0
    %v513 = vpop.f32.mrb[0].mxu0
    %v514 = vadd.f32 0.0, %v513
    %v515 = vpop.f32.mrb[0].mxu0
    %516 = vmatprep.mubr.bf16.mxu0 0
    %517 = vmatmul.mubr.bf16.gmra.mrb[0].mxu0 %v259
    %v518 = vpop.f32.mrb[0].mxu0
    %v519 = vadd.f32 0.0, %v518
    %v520 = vpop.f32.mrb[0].mxu0
    %v521 = vpop.f32.mrb[0].mxu0
    %v522 = vadd.f32 0.0, %v521
    %v523 = vpop.f32.mrb[0].mxu0
    %524 = vmatprep.mubr.bf16.mxu0 0
    %525 = vmatmul.mubr.bf16.gmra.mrb[0].mxu0 %v262
    %v526 = vpop.f32.mrb[0].mxu0
    %v527 = vadd.f32 0.0, %v526
    %v528 = vpop.f32.mrb[0].mxu0
    %v529 = vpop.f32.mrb[0].mxu0
    %v530 = vadd.f32 0.0, %v529
    %v531 = vpop.f32.mrb[0].mxu0
    %532 = vmatprep.mubr.bf16.mxu0 0
    %533 = vmatmul.mubr.bf16.gmra.mrb[0].mxu0 %v265
    %v534 = vpop.f32.mrb[0].mxu0
    %v535 = vadd.f32 0.0, %v534
    %v536 = vpop.f32.mrb[0].mxu0
    %v537 = vpop.f32.mrb[0].mxu0
    %v538 = vadd.f32 0.0, %v537
    %v539 = vpop.f32.mrb[0].mxu0
    %540 = vmatprep.mubr.bf16.mxu0 0
    %541 = vmatmul.mubr.bf16.gmra.mrb[0].mxu0 %v268
    %v542 = vpop.f32.mrb[0].mxu0
    %v543 = vadd.f32 0.0, %v542
    %v544 = vpop.f32.mrb[0].mxu0
    %v545 = vpop.f32.mrb[0].mxu0
    %v546 = vadd.f32 0.0, %v545
    %v547 = vpop.f32.mrb[0].mxu0
    %548 = vmatprep.mubr.bf16.mxu0 0
    %549 = vmatmul.mubr.bf16.gmra.mrb[0].mxu0 %v271
    %v550 = vpop.f32.mrb[0].mxu0
    %v551 = vadd.f32 0.0, %v550
    %v552 = vpop.f32.mrb[0].mxu0
    %v553 = vpop.f32.mrb[0].mxu0
    %v554 = vadd.f32 0.0, %v553
    %v555 = vpop.f32.mrb[0].mxu0
    %556 = vmatprep.mubr.bf16.mxu0 0
    %557 = vmatmul.mubr.bf16.gmra.mrb[0].mxu0 %v274
    %v558 = vpop.f32.mrb[0].mxu0
    %v559 = vadd.f32 0.0, %v558
    %v560 = vpop.f32.mrb[0].mxu0
    %v561 = vpop.f32.mrb[0].mxu0
    %v562 = vadd.f32 0.0, %v561
    %v563 = vpop.f32.mrb[0].mxu0
    %564 = vdwg.mxu0
    %v565 = vld [vmem:[%s2] sm:$0x1]
    %v566 = vld [vmem:[%s3] sm:$0x1]
    %vm567 = vcmask 130048
    %v568 = vsel %vm567, %v311, 0.0
    %v569 = vsel %vm567, %v314, 0.0
    %v570 = vadd.f32 %v568, %v569
    %v571 = vsel %vm567, %v319, 0.0
    %v572 = vadd.f32 %v570, %v571
    %v573 = vsel %vm567, %v322, 0.0
    %v574 = vadd.f32 %v572, %v573
    %v575 = vsel %vm567, %v327, 0.0
    %v576 = vadd.f32 %v574, %v575
    %v577 = vsel %vm567, %v330, 0.0
    %v578 = vadd.f32 %v576, %v577
    %v579 = vsel %vm567, %v335, 0.0
    %v580 = vadd.f32 %v578, %v579
    %v581 = vsel %vm567, %v338, 0.0
    %v582 = vadd.f32 %v580, %v581
    %v583 = vsel %vm567, %v343, 0.0
    %v584 = vadd.f32 %v582, %v583
    %v585 = vsel %vm567, %v346, 0.0
    %v586 = vadd.f32 %v584, %v585
    %v587 = vsel %vm567, %v351, 0.0
    %v588 = vadd.f32 %v586, %v587
    %v589 = vsel %vm567, %v354, 0.0
    %v590 = vadd.f32 %v588, %v589
    %v591 = vsel %vm567, %v359, 0.0
    %v592 = vadd.f32 %v590, %v591
    %v593 = vsel %vm567, %v362, 0.0
    %v594 = vadd.f32 %v592, %v593
    %v595 = vsel %vm567, %v367, 0.0
    %v596 = vadd.f32 %v594, %v595
    %v597 = vsel %vm567, %v370, 0.0
    %v598 = vadd.f32 %v596, %v597
    %v599 = vsel %vm567, %v375, 0.0
    %v600 = vadd.f32 %v598, %v599
    %v601 = vsel %vm567, %v378, 0.0
    %v602 = vadd.f32 %v600, %v601
    %v603 = vsel %vm567, %v383, 0.0
    %v604 = vadd.f32 %v602, %v603
    %v605 = vsel %vm567, %v386, 0.0
    %v606 = vadd.f32 %v604, %v605
    %v607 = vsel %vm567, %v391, 0.0
    %v608 = vadd.f32 %v606, %v607
    %v609 = vsel %vm567, %v394, 0.0
    %v610 = vadd.f32 %v608, %v609
    %v611 = vsel %vm567, %v399, 0.0
    %v612 = vadd.f32 %v610, %v611
    %v613 = vsel %vm567, %v402, 0.0
    %v614 = vadd.f32 %v612, %v613
    %v615 = vsel %vm567, %v407, 0.0
    %v616 = vadd.f32 %v614, %v615
    %v617 = vsel %vm567, %v410, 0.0
    %v618 = vadd.f32 %v616, %v617
    %v619 = vsel %vm567, %v415, 0.0
    %v620 = vadd.f32 %v618, %v619
    %v621 = vsel %vm567, %v418, 0.0
    %v622 = vadd.f32 %v620, %v621
    %v623 = vsel %vm567, %v423, 0.0
    %v624 = vadd.f32 %v622, %v623
    %v625 = vsel %vm567, %v426, 0.0
    %v626 = vadd.f32 %v624, %v625
    %v627 = vsel %vm567, %v431, 0.0
    %v628 = vadd.f32 %v626, %v627
    %v629 = vsel %vm567, %v434, 0.0
    %v630 = vadd.f32 %v628, %v629
    %v631 = vsel %vm567, %v439, 0.0
    %v632 = vadd.f32 %v630, %v631
    %v633 = vsel %vm567, %v442, 0.0
    %v634 = vadd.f32 %v632, %v633
    %v635 = vsel %vm567, %v447, 0.0
    %v636 = vadd.f32 %v634, %v635
    %v637 = vsel %vm567, %v450, 0.0
    %v638 = vadd.f32 %v636, %v637
    %v639 = vsel %vm567, %v455, 0.0
    %v640 = vadd.f32 %v638, %v639
    %v641 = vsel %vm567, %v458, 0.0
    %v642 = vadd.f32 %v640, %v641
    %v643 = vsel %vm567, %v463, 0.0
    %v644 = vadd.f32 %v642, %v643
    %v645 = vsel %vm567, %v466, 0.0
    %v646 = vadd.f32 %v644, %v645
    %v647 = vsel %vm567, %v471, 0.0
    %v648 = vadd.f32 %v646, %v647
    %v649 = vsel %vm567, %v474, 0.0
    %v650 = vadd.f32 %v648, %v649
    %v651 = vsel %vm567, %v479, 0.0
    %v652 = vadd.f32 %v650, %v651
    %v653 = vsel %vm567, %v482, 0.0
    %v654 = vadd.f32 %v652, %v653
    %v655 = vsel %vm567, %v487, 0.0
    %v656 = vadd.f32 %v654, %v655
    %v657 = vsel %vm567, %v490, 0.0
    %v658 = vadd.f32 %v656, %v657
    %v659 = vsel %vm567, %v495, 0.0
    %v660 = vadd.f32 %v658, %v659
    %v661 = vsel %vm567, %v498, 0.0
    %v662 = vadd.f32 %v660, %v661
    %v663 = vsel %vm567, %v503, 0.0
    %v664 = vadd.f32 %v662, %v663
    %v665 = vsel %vm567, %v506, 0.0
    %v666 = vadd.f32 %v664, %v665
    %v667 = vsel %vm567, %v511, 0.0
    %v668 = vadd.f32 %v666, %v667
    %v669 = vsel %vm567, %v514, 0.0
    %v670 = vadd.f32 %v668, %v669
    %v671 = vsel %vm567, %v519, 0.0
    %v672 = vadd.f32 %v670, %v671
    %v673 = vsel %vm567, %v522, 0.0
    %v674 = vadd.f32 %v672, %v673
    %v675 = vsel %vm567, %v527, 0.0
    %v676 = vadd.f32 %v674, %v675
    %v677 = vsel %vm567, %v530, 0.0
    %v678 = vadd.f32 %v676, %v677
    %v679 = vsel %vm567, %v535, 0.0
    %v680 = vadd.f32 %v678, %v679
    %v681 = vsel %vm567, %v538, 0.0
    %v682 = vadd.f32 %v680, %v681
    %v683 = vsel %vm567, %v543, 0.0
    %v684 = vadd.f32 %v682, %v683
    %v685 = vsel %vm567, %v546, 0.0
    %v686 = vadd.f32 %v684, %v685
    %v687 = vsel %vm567, %v551, 0.0
    %v688 = vadd.f32 %v686, %v687
    %v689 = vsel %vm567, %v554, 0.0
    %v690 = vadd.f32 %v688, %v689
    %v691 = vsel %vm567, %v559, 0.0
    %v692 = vadd.f32 %v690, %v691
    %v693 = vsel %vm567, %v562, 0.0
    %v694 = vadd.f32 %v692, %v693
    %v695 = vrot.slane %v694, 4
    %v696 = vadd.f32 %v694, %v695
    %v697 = vrot.slane %v696, 2
    %v698 = vadd.f32 %v696, %v697
    %v699 = vrot.slane %v698, 1
    %v700 = vadd.f32 %v698, %v699
    %v701 = vmul.f32 %v700, 0.001953125
    %v702 = vmul.f32 %v311, %v311
    %v703 = vmul.f32 %v314, %v314
    %v704 = vmul.f32 %v319, %v319
    %v705 = vmul.f32 %v322, %v322
    %v706 = vmul.f32 %v327, %v327
    %v707 = vmul.f32 %v330, %v330
    %v708 = vmul.f32 %v335, %v335
    %v709 = vmul.f32 %v338, %v338
    %v710 = vmul.f32 %v343, %v343
    %v711 = vmul.f32 %v346, %v346
    %v712 = vmul.f32 %v351, %v351
    %v713 = vmul.f32 %v354, %v354
    %v714 = vmul.f32 %v359, %v359
    %v715 = vmul.f32 %v362, %v362
    %v716 = vmul.f32 %v367, %v367
    %v717 = vmul.f32 %v370, %v370
    %v718 = vmul.f32 %v375, %v375
    %v719 = vmul.f32 %v378, %v378
    %v720 = vmul.f32 %v383, %v383
    %v721 = vmul.f32 %v386, %v386
    %v722 = vmul.f32 %v391, %v391
    %v723 = vmul.f32 %v394, %v394
    %v724 = vmul.f32 %v399, %v399
    %v725 = vmul.f32 %v402, %v402
    %v726 = vmul.f32 %v407, %v407
    %v727 = vmul.f32 %v410, %v410
    %v728 = vmul.f32 %v415, %v415
    %v729 = vmul.f32 %v418, %v418
    %v730 = vmul.f32 %v423, %v423
    %v731 = vmul.f32 %v426, %v426
    %v732 = vmul.f32 %v431, %v431
    %v733 = vmul.f32 %v434, %v434
    %v734 = vmul.f32 %v439, %v439
    %v735 = vmul.f32 %v442, %v442
    %v736 = vmul.f32 %v447, %v447
    %v737 = vmul.f32 %v450, %v450
    %v738 = vmul.f32 %v455, %v455
    %v739 = vmul.f32 %v458, %v458
    %v740 = vmul.f32 %v463, %v463
    %v741 = vmul.f32 %v466, %v466
    %v742 = vmul.f32 %v471, %v471
    %v743 = vmul.f32 %v474, %v474
    %v744 = vmul.f32 %v479, %v479
    %v745 = vmul.f32 %v482, %v482
    %v746 = vmul.f32 %v487, %v487
    %v747 = vmul.f32 %v490, %v490
    %v748 = vmul.f32 %v495, %v495
    %v749 = vmul.f32 %v498, %v498
    %v750 = vmul.f32 %v503, %v503
    %v751 = vmul.f32 %v506, %v506
    %v752 = vmul.f32 %v511, %v511
    %v753 = vmul.f32 %v514, %v514
    %v754 = vmul.f32 %v519, %v519
    %v755 = vmul.f32 %v522, %v522
    %v756 = vmul.f32 %v527, %v527
    %v757 = vmul.f32 %v530, %v530
    %v758 = vmul.f32 %v535, %v535
    %v759 = vmul.f32 %v538, %v538
    %v760 = vmul.f32 %v543, %v543
    %v761 = vmul.f32 %v546, %v546
    %v762 = vmul.f32 %v551, %v551
    %v763 = vmul.f32 %v554, %v554
    %v764 = vmul.f32 %v559, %v559
    %v765 = vmul.f32 %v562, %v562
    %v766 = vsel %vm567, %v702, 0.0
    %v767 = vsel %vm567, %v703, 0.0
    %v768 = vadd.f32 %v766, %v767
    %v769 = vsel %vm567, %v704, 0.0
    %v770 = vadd.f32 %v768, %v769
    %v771 = vsel %vm567, %v705, 0.0
    %v772 = vadd.f32 %v770, %v771
    %v773 = vsel %vm567, %v706, 0.0
    %v774 = vadd.f32 %v772, %v773
    %v775 = vsel %vm567, %v707, 0.0
    %v776 = vadd.f32 %v774, %v775
    %v777 = vsel %vm567, %v708, 0.0
    %v778 = vadd.f32 %v776, %v777
    %v779 = vsel %vm567, %v709, 0.0
    %v780 = vadd.f32 %v778, %v779
    %v781 = vsel %vm567, %v710, 0.0
    %v782 = vadd.f32 %v780, %v781
    %v783 = vsel %vm567, %v711, 0.0
    %v784 = vadd.f32 %v782, %v783
    %v785 = vsel %vm567, %v712, 0.0
    %v786 = vadd.f32 %v784, %v785
    %v787 = vsel %vm567, %v713, 0.0
    %v788 = vadd.f32 %v786, %v787
    %v789 = vsel %vm567, %v714, 0.0
    %v790 = vadd.f32 %v788, %v789
    %v791 = vsel %vm567, %v715, 0.0
    %v792 = vadd.f32 %v790, %v791
    %v793 = vsel %vm567, %v716, 0.0
    %v794 = vadd.f32 %v792, %v793
    %v795 = vsel %vm567, %v717, 0.0
    %v796 = vadd.f32 %v794, %v795
    %v797 = vsel %vm567, %v718, 0.0
    %v798 = vadd.f32 %v796, %v797
    %v799 = vsel %vm567, %v719, 0.0
    %v800 = vadd.f32 %v798, %v799
    %v801 = vsel %vm567, %v720, 0.0
    %v802 = vadd.f32 %v800, %v801
    %v803 = vsel %vm567, %v721, 0.0
    %v804 = vadd.f32 %v802, %v803
    %v805 = vsel %vm567, %v722, 0.0
    %v806 = vadd.f32 %v804, %v805
    %v807 = vsel %vm567, %v723, 0.0
    %v808 = vadd.f32 %v806, %v807
    %v809 = vsel %vm567, %v724, 0.0
    %v810 = vadd.f32 %v808, %v809
    %v811 = vsel %vm567, %v725, 0.0
    %v812 = vadd.f32 %v810, %v811
    %v813 = vsel %vm567, %v726, 0.0
    %v814 = vadd.f32 %v812, %v813
    %v815 = vsel %vm567, %v727, 0.0
    %v816 = vadd.f32 %v814, %v815
    %v817 = vsel %vm567, %v728, 0.0
    %v818 = vadd.f32 %v816, %v817
    %v819 = vsel %vm567, %v729, 0.0
    %v820 = vadd.f32 %v818, %v819
    %v821 = vsel %vm567, %v730, 0.0
    %v822 = vadd.f32 %v820, %v821
    %v823 = vsel %vm567, %v731, 0.0
    %v824 = vadd.f32 %v822, %v823
    %v825 = vsel %vm567, %v732, 0.0
    %v826 = vadd.f32 %v824, %v825
    %v827 = vsel %vm567, %v733, 0.0
    %v828 = vadd.f32 %v826, %v827
    %v829 = vsel %vm567, %v734, 0.0
    %v830 = vadd.f32 %v828, %v829
    %v831 = vsel %vm567, %v735, 0.0
    %v832 = vadd.f32 %v830, %v831
    %v833 = vsel %vm567, %v736, 0.0
    %v834 = vadd.f32 %v832, %v833
    %v835 = vsel %vm567, %v737, 0.0
    %v836 = vadd.f32 %v834, %v835
    %v837 = vsel %vm567, %v738, 0.0
    %v838 = vadd.f32 %v836, %v837
    %v839 = vsel %vm567, %v739, 0.0
    %v840 = vadd.f32 %v838, %v839
    %v841 = vsel %vm567, %v740, 0.0
    %v842 = vadd.f32 %v840, %v841
    %v843 = vsel %vm567, %v741, 0.0
    %v844 = vadd.f32 %v842, %v843
    %v845 = vsel %vm567, %v742, 0.0
    %v846 = vadd.f32 %v844, %v845
    %v847 = vsel %vm567, %v743, 0.0
    %v848 = vadd.f32 %v846, %v847
    %v849 = vsel %vm567, %v744, 0.0
    %v850 = vadd.f32 %v848, %v849
    %v851 = vsel %vm567, %v745, 0.0
    %v852 = vadd.f32 %v850, %v851
    %v853 = vsel %vm567, %v746, 0.0
    %v854 = vadd.f32 %v852, %v853
    %v855 = vsel %vm567, %v747, 0.0
    %v856 = vadd.f32 %v854, %v855
    %v857 = vsel %vm567, %v748, 0.0
    %v858 = vadd.f32 %v856, %v857
    %v859 = vsel %vm567, %v749, 0.0
    %v860 = vadd.f32 %v858, %v859
    %v861 = vsel %vm567, %v750, 0.0
    %v862 = vadd.f32 %v860, %v861
    %v863 = vsel %vm567, %v751, 0.0
    %v864 = vadd.f32 %v862, %v863
    %v865 = vsel %vm567, %v752, 0.0
    %v866 = vadd.f32 %v864, %v865
    %v867 = vsel %vm567, %v753, 0.0
    %v868 = vadd.f32 %v866, %v867
    %v869 = vsel %vm567, %v754, 0.0
    %v870 = vadd.f32 %v868, %v869
    %v871 = vsel %vm567, %v755, 0.0
    %v872 = vadd.f32 %v870, %v871
    %v873 = vsel %vm567, %v756, 0.0
    %v874 = vadd.f32 %v872, %v873
    %v875 = vsel %vm567, %v757, 0.0
    %v876 = vadd.f32 %v874, %v875
    %v877 = vsel %vm567, %v758, 0.0
    %v878 = vadd.f32 %v876, %v877
    %v879 = vsel %vm567, %v759, 0.0
    %v880 = vadd.f32 %v878, %v879
    %v881 = vsel %vm567, %v760, 0.0
    %v882 = vadd.f32 %v880, %v881
    %v883 = vsel %vm567, %v761, 0.0
    %v884 = vadd.f32 %v882, %v883
    %v885 = vsel %vm567, %v762, 0.0
    %v886 = vadd.f32 %v884, %v885
    %v887 = vsel %vm567, %v763, 0.0
    %v888 = vadd.f32 %v886, %v887
    %v889 = vsel %vm567, %v764, 0.0
    %v890 = vadd.f32 %v888, %v889
    %v891 = vsel %vm567, %v765, 0.0
    %v892 = vadd.f32 %v890, %v891
    %v893 = vrot.slane %v892, 4
    %v894 = vadd.f32 %v892, %v893
    %v895 = vrot.slane %v894, 2
    %v896 = vadd.f32 %v894, %v895
    %v897 = vrot.slane %v896, 1
    %v898 = vadd.f32 %v896, %v897
    %v899 = vmul.f32 %v898, 0.001953125
    %v900 = vmul.f32 %v701, %v701
    %v901 = vsub.f32 %v899, %v900
    %v902 = vmax.f32 %v901, 0.0
    %v903 = vsub.f32 %v311, %v701
    %v904 = vsub.f32 %v314, %v701
    %v905 = vsub.f32 %v319, %v701
    %v906 = vsub.f32 %v322, %v701
    %v907 = vsub.f32 %v327, %v701
    %v908 = vsub.f32 %v330, %v701
    %v909 = vsub.f32 %v335, %v701
    %v910 = vsub.f32 %v338, %v701
    %v911 = vsub.f32 %v343, %v701
    %v912 = vsub.f32 %v346, %v701
    %v913 = vsub.f32 %v351, %v701
    %v914 = vsub.f32 %v354, %v701
    %v915 = vsub.f32 %v359, %v701
    %v916 = vsub.f32 %v362, %v701
    %v917 = vsub.f32 %v367, %v701
    %v918 = vsub.f32 %v370, %v701
    %v919 = vsub.f32 %v375, %v701
    %v920 = vsub.f32 %v378, %v701
    %v921 = vsub.f32 %v383, %v701
    %v922 = vsub.f32 %v386, %v701
    %v923 = vsub.f32 %v391, %v701
    %v924 = vsub.f32 %v394, %v701
    %v925 = vsub.f32 %v399, %v701
    %v926 = vsub.f32 %v402, %v701
    %v927 = vsub.f32 %v407, %v701
    %v928 = vsub.f32 %v410, %v701
    %v929 = vsub.f32 %v415, %v701
    %v930 = vsub.f32 %v418, %v701
    %v931 = vsub.f32 %v423, %v701
    %v932 = vsub.f32 %v426, %v701
    %v933 = vsub.f32 %v431, %v701
    %v934 = vsub.f32 %v434, %v701
    %v935 = vsub.f32 %v439, %v701
    %v936 = vsub.f32 %v442, %v701
    %v937 = vsub.f32 %v447, %v701
    %v938 = vsub.f32 %v450, %v701
    %v939 = vsub.f32 %v455, %v701
    %v940 = vsub.f32 %v458, %v701
    %v941 = vsub.f32 %v463, %v701
    %v942 = vsub.f32 %v466, %v701
    %v943 = vsub.f32 %v471, %v701
    %v944 = vsub.f32 %v474, %v701
    %v945 = vsub.f32 %v479, %v701
    %v946 = vsub.f32 %v482, %v701
    %v947 = vsub.f32 %v487, %v701
    %v948 = vsub.f32 %v490, %v701
    %v949 = vsub.f32 %v495, %v701
    %v950 = vsub.f32 %v498, %v701
    %v951 = vsub.f32 %v503, %v701
    %v952 = vsub.f32 %v506, %v701
    %v953 = vsub.f32 %v511, %v701
    %v954 = vsub.f32 %v514, %v701
    %v955 = vsub.f32 %v519, %v701
    %v956 = vsub.f32 %v522, %v701
    %v957 = vsub.f32 %v527, %v701
    %v958 = vsub.f32 %v530, %v701
    %v959 = vsub.f32 %v535, %v701
    %v960 = vsub.f32 %v538, %v701
    %v961 = vsub.f32 %v543, %v701
    %v962 = vsub.f32 %v546, %v701
    %v963 = vsub.f32 %v551, %v701
    %v964 = vsub.f32 %v554, %v701
    %v965 = vsub.f32 %v559, %v701
    %v966 = vsub.f32 %v562, %v701
    %v967 = vadd.f32 %v902, 1e-05
    %v968 = vrsqrt.pop %v967
    %v969 = vmul.f32 %v903, %v968
    %v970 = vmul.f32 %v904, %v968
    %v971 = vmul.f32 %v905, %v968
    %v972 = vmul.f32 %v906, %v968
    %v973 = vmul.f32 %v907, %v968
    %v974 = vmul.f32 %v908, %v968
    %v975 = vmul.f32 %v909, %v968
    %v976 = vmul.f32 %v910, %v968
    %v977 = vmul.f32 %v911, %v968
    %v978 = vmul.f32 %v912, %v968
    %v979 = vmul.f32 %v913, %v968
    %v980 = vmul.f32 %v914, %v968
    %v981 = vmul.f32 %v915, %v968
    %v982 = vmul.f32 %v916, %v968
    %v983 = vmul.f32 %v917, %v968
    %v984 = vmul.f32 %v918, %v968
    %v985 = vmul.f32 %v919, %v968
    %v986 = vmul.f32 %v920, %v968
    %v987 = vmul.f32 %v921, %v968
    %v988 = vmul.f32 %v922, %v968
    %v989 = vmul.f32 %v923, %v968
    %v990 = vmul.f32 %v924, %v968
    %v991 = vmul.f32 %v925, %v968
    %v992 = vmul.f32 %v926, %v968
    %v993 = vmul.f32 %v927, %v968
    %v994 = vmul.f32 %v928, %v968
    %v995 = vmul.f32 %v929, %v968
    %v996 = vmul.f32 %v930, %v968
    %v997 = vmul.f32 %v931, %v968
    %v998 = vmul.f32 %v932, %v968
    %v999 = vmul.f32 %v933, %v968
    %v1000 = vmul.f32 %v934, %v968
    %v1001 = vmul.f32 %v935, %v968
    %v1002 = vmul.f32 %v936, %v968
    %v1003 = vmul.f32 %v937, %v968
    %v1004 = vmul.f32 %v938, %v968
    %v1005 = vmul.f32 %v939, %v968
    %v1006 = vmul.f32 %v940, %v968
    %v1007 = vmul.f32 %v941, %v968
    %v1008 = vmul.f32 %v942, %v968
    %v1009 = vmul.f32 %v943, %v968
    %v1010 = vmul.f32 %v944, %v968
    %v1011 = vmul.f32 %v945, %v968
    %v1012 = vmul.f32 %v946, %v968
    %v1013 = vmul.f32 %v947, %v968
    %v1014 = vmul.f32 %v948, %v968
    %v1015 = vmul.f32 %v949, %v968
    %v1016 = vmul.f32 %v950, %v968
    %v1017 = vmul.f32 %v951, %v968
    %v1018 = vmul.f32 %v952, %v968
    %v1019 = vmul.f32 %v953, %v968
    %v1020 = vmul.f32 %v954, %v968
    %v1021 = vmul.f32 %v955, %v968
    %v1022 = vmul.f32 %v956, %v968
    %v1023 = vmul.f32 %v957, %v968
    %v1024 = vmul.f32 %v958, %v968
    %v1025 = vmul.f32 %v959, %v968
    %v1026 = vmul.f32 %v960, %v968
    %v1027 = vmul.f32 %v961, %v968
    %v1028 = vmul.f32 %v962, %v968
    %v1029 = vmul.f32 %v963, %v968
    %v1030 = vmul.f32 %v964, %v968
    %v1031 = vmul.f32 %v965, %v968
    %v1032 = vmul.f32 %v966, %v968
    %v1034 = vlaneseq
    %v1035 = vshrl.u32 %v1034, 7
    %v1036 = vsub.s32 0, %v1035
    %v1037 = vrot.slane %v565, %v1036
    %v1039 = vmul.f32 %v969, %v1037
    %v1040 = vmul.f32 %v970, %v1037
    %v1041 = vmul.f32 %v971, %v1037
    %v1042 = vmul.f32 %v972, %v1037
    %v1043 = vmul.f32 %v973, %v1037
    %v1044 = vmul.f32 %v974, %v1037
    %v1045 = vmul.f32 %v975, %v1037
    %v1046 = vmul.f32 %v976, %v1037
    %v1047 = vmul.f32 %v977, %v1037
    %v1048 = vmul.f32 %v978, %v1037
    %v1049 = vmul.f32 %v979, %v1037
    %v1050 = vmul.f32 %v980, %v1037
    %v1051 = vmul.f32 %v981, %v1037
    %v1052 = vmul.f32 %v982, %v1037
    %v1053 = vmul.f32 %v983, %v1037
    %v1054 = vmul.f32 %v984, %v1037
    %v1055 = vmul.f32 %v985, %v1037
    %v1056 = vmul.f32 %v986, %v1037
    %v1057 = vmul.f32 %v987, %v1037
    %v1058 = vmul.f32 %v988, %v1037
    %v1059 = vmul.f32 %v989, %v1037
    %v1060 = vmul.f32 %v990, %v1037
    %v1061 = vmul.f32 %v991, %v1037
    %v1062 = vmul.f32 %v992, %v1037
    %v1063 = vmul.f32 %v993, %v1037
    %v1064 = vmul.f32 %v994, %v1037
    %v1065 = vmul.f32 %v995, %v1037
    %v1066 = vmul.f32 %v996, %v1037
    %v1067 = vmul.f32 %v997, %v1037
    %v1068 = vmul.f32 %v998, %v1037
    %v1069 = vmul.f32 %v999, %v1037
    %v1070 = vmul.f32 %v1000, %v1037
    %v1071 = vmul.f32 %v1001, %v1037
    %v1072 = vmul.f32 %v1002, %v1037
    %v1073 = vmul.f32 %v1003, %v1037
    %v1074 = vmul.f32 %v1004, %v1037
    %v1075 = vmul.f32 %v1005, %v1037
    %v1076 = vmul.f32 %v1006, %v1037
    %v1077 = vmul.f32 %v1007, %v1037
    %v1078 = vmul.f32 %v1008, %v1037
    %v1079 = vmul.f32 %v1009, %v1037
    %v1080 = vmul.f32 %v1010, %v1037
    %v1081 = vmul.f32 %v1011, %v1037
    %v1082 = vmul.f32 %v1012, %v1037
    %v1083 = vmul.f32 %v1013, %v1037
    %v1084 = vmul.f32 %v1014, %v1037
    %v1085 = vmul.f32 %v1015, %v1037
    %v1086 = vmul.f32 %v1016, %v1037
    %v1087 = vmul.f32 %v1017, %v1037
    %v1088 = vmul.f32 %v1018, %v1037
    %v1089 = vmul.f32 %v1019, %v1037
    %v1090 = vmul.f32 %v1020, %v1037
    %v1091 = vmul.f32 %v1021, %v1037
    %v1092 = vmul.f32 %v1022, %v1037
    %v1093 = vmul.f32 %v1023, %v1037
    %v1094 = vmul.f32 %v1024, %v1037
    %v1095 = vmul.f32 %v1025, %v1037
    %v1096 = vmul.f32 %v1026, %v1037
    %v1097 = vmul.f32 %v1027, %v1037
    %v1098 = vmul.f32 %v1028, %v1037
    %v1099 = vmul.f32 %v1029, %v1037
    %v1100 = vmul.f32 %v1030, %v1037
    %v1101 = vmul.f32 %v1031, %v1037
    %v1102 = vmul.f32 %v1032, %v1037
    %v1104 = vlaneseq
    %v1105 = vshrl.u32 %v1104, 7
    %v1106 = vsub.s32 0, %v1105
    %v1107 = vrot.slane %v566, %v1106
    %v1109 = vadd.f32 %v1039, %v1107
    %v1110 = vadd.f32 %v1040, %v1107
    %v1111 = vadd.f32 %v1041, %v1107
    %v1112 = vadd.f32 %v1042, %v1107
    %v1113 = vadd.f32 %v1043, %v1107
    %v1114 = vadd.f32 %v1044, %v1107
    %v1115 = vadd.f32 %v1045, %v1107
    %v1116 = vadd.f32 %v1046, %v1107
    %v1117 = vadd.f32 %v1047, %v1107
    %v1118 = vadd.f32 %v1048, %v1107
    %v1119 = vadd.f32 %v1049, %v1107
    %v1120 = vadd.f32 %v1050, %v1107
    %v1121 = vadd.f32 %v1051, %v1107
    %v1122 = vadd.f32 %v1052, %v1107
    %v1123 = vadd.f32 %v1053, %v1107
    %v1124 = vadd.f32 %v1054, %v1107
    %v1125 = vadd.f32 %v1055, %v1107
    %v1126 = vadd.f32 %v1056, %v1107
    %v1127 = vadd.f32 %v1057, %v1107
    %v1128 = vadd.f32 %v1058, %v1107
    %v1129 = vadd.f32 %v1059, %v1107
    %v1130 = vadd.f32 %v1060, %v1107
    %v1131 = vadd.f32 %v1061, %v1107
    %v1132 = vadd.f32 %v1062, %v1107
    %v1133 = vadd.f32 %v1063, %v1107
    %v1134 = vadd.f32 %v1064, %v1107
    %v1135 = vadd.f32 %v1065, %v1107
    %v1136 = vadd.f32 %v1066, %v1107
    %v1137 = vadd.f32 %v1067, %v1107
    %v1138 = vadd.f32 %v1068, %v1107
    %v1139 = vadd.f32 %v1069, %v1107
    %v1140 = vadd.f32 %v1070, %v1107
    %v1141 = vadd.f32 %v1071, %v1107
    %v1142 = vadd.f32 %v1072, %v1107
    %v1143 = vadd.f32 %v1073, %v1107
    %v1144 = vadd.f32 %v1074, %v1107
    %v1145 = vadd.f32 %v1075, %v1107
    %v1146 = vadd.f32 %v1076, %v1107
    %v1147 = vadd.f32 %v1077, %v1107
    %v1148 = vadd.f32 %v1078, %v1107
    %v1149 = vadd.f32 %v1079, %v1107
    %v1150 = vadd.f32 %v1080, %v1107
    %v1151 = vadd.f32 %v1081, %v1107
    %v1152 = vadd.f32 %v1082, %v1107
    %v1153 = vadd.f32 %v1083, %v1107
    %v1154 = vadd.f32 %v1084, %v1107
    %v1155 = vadd.f32 %v1085, %v1107
    %v1156 = vadd.f32 %v1086, %v1107
    %v1157 = vadd.f32 %v1087, %v1107
    %v1158 = vadd.f32 %v1088, %v1107
    %v1159 = vadd.f32 %v1089, %v1107
    %v1160 = vadd.f32 %v1090, %v1107
    %v1161 = vadd.f32 %v1091, %v1107
    %v1162 = vadd.f32 %v1092, %v1107
    %v1163 = vadd.f32 %v1093, %v1107
    %v1164 = vadd.f32 %v1094, %v1107
    %v1165 = vadd.f32 %v1095, %v1107
    %v1166 = vadd.f32 %v1096, %v1107
    %v1167 = vadd.f32 %v1097, %v1107
    %v1168 = vadd.f32 %v1098, %v1107
    %v1169 = vadd.f32 %v1099, %v1107
    %v1170 = vadd.f32 %v1100, %v1107
    %v1171 = vadd.f32 %v1101, %v1107
    %v1172 = vadd.f32 %v1102, %v1107
    %v1173 = vmax.f32 %v1109, 0.0
    %v1174 = vmax.f32 %v1110, 0.0
    %v1175 = vmax.f32 %v1111, 0.0
    %v1176 = vmax.f32 %v1112, 0.0
    %v1177 = vmax.f32 %v1113, 0.0
    %v1178 = vmax.f32 %v1114, 0.0
    %v1179 = vmax.f32 %v1115, 0.0
    %v1180 = vmax.f32 %v1116, 0.0
    %v1181 = vmax.f32 %v1117, 0.0
    %v1182 = vmax.f32 %v1118, 0.0
    %v1183 = vmax.f32 %v1119, 0.0
    %v1184 = vmax.f32 %v1120, 0.0
    %v1185 = vmax.f32 %v1121, 0.0
    %v1186 = vmax.f32 %v1122, 0.0
    %v1187 = vmax.f32 %v1123, 0.0
    %v1188 = vmax.f32 %v1124, 0.0
    %v1189 = vmax.f32 %v1125, 0.0
    %v1190 = vmax.f32 %v1126, 0.0
    %v1191 = vmax.f32 %v1127, 0.0
    %v1192 = vmax.f32 %v1128, 0.0
    %v1193 = vmax.f32 %v1129, 0.0
    %v1194 = vmax.f32 %v1130, 0.0
    %v1195 = vmax.f32 %v1131, 0.0
    %v1196 = vmax.f32 %v1132, 0.0
    %v1197 = vmax.f32 %v1133, 0.0
    %v1198 = vmax.f32 %v1134, 0.0
    %v1199 = vmax.f32 %v1135, 0.0
    %v1200 = vmax.f32 %v1136, 0.0
    %v1201 = vmax.f32 %v1137, 0.0
    %v1202 = vmax.f32 %v1138, 0.0
    %v1203 = vmax.f32 %v1139, 0.0
    %v1204 = vmax.f32 %v1140, 0.0
    %v1205 = vmax.f32 %v1141, 0.0
    %v1206 = vmax.f32 %v1142, 0.0
    %v1207 = vmax.f32 %v1143, 0.0
    %v1208 = vmax.f32 %v1144, 0.0
    %v1209 = vmax.f32 %v1145, 0.0
    %v1210 = vmax.f32 %v1146, 0.0
    %v1211 = vmax.f32 %v1147, 0.0
    %v1212 = vmax.f32 %v1148, 0.0
    %v1213 = vmax.f32 %v1149, 0.0
    %v1214 = vmax.f32 %v1150, 0.0
    %v1215 = vmax.f32 %v1151, 0.0
    %v1216 = vmax.f32 %v1152, 0.0
    %v1217 = vmax.f32 %v1153, 0.0
    %v1218 = vmax.f32 %v1154, 0.0
    %v1219 = vmax.f32 %v1155, 0.0
    %v1220 = vmax.f32 %v1156, 0.0
    %v1221 = vmax.f32 %v1157, 0.0
    %v1222 = vmax.f32 %v1158, 0.0
    %v1223 = vmax.f32 %v1159, 0.0
    %v1224 = vmax.f32 %v1160, 0.0
    %v1225 = vmax.f32 %v1161, 0.0
    %v1226 = vmax.f32 %v1162, 0.0
    %v1227 = vmax.f32 %v1163, 0.0
    %v1228 = vmax.f32 %v1164, 0.0
    %v1229 = vmax.f32 %v1165, 0.0
    %v1230 = vmax.f32 %v1166, 0.0
    %v1231 = vmax.f32 %v1167, 0.0
    %v1232 = vmax.f32 %v1168, 0.0
    %v1233 = vmax.f32 %v1169, 0.0
    %v1234 = vmax.f32 %v1170, 0.0
    %v1235 = vmax.f32 %v1171, 0.0
    %v1236 = vmax.f32 %v1172, 0.0
    %v1237 = vpack.c.bf16 %v1174, %v1173
    %v1238 = vpack.c.bf16 %v1176, %v1175
    %v1239 = vpack.c.bf16 %v1178, %v1177
    %v1240 = vpack.c.bf16 %v1180, %v1179
    %v1241 = vpack.c.bf16 %v1182, %v1181
    %v1242 = vpack.c.bf16 %v1184, %v1183
    %v1243 = vpack.c.bf16 %v1186, %v1185
    %v1244 = vpack.c.bf16 %v1188, %v1187
    %v1245 = vpack.c.bf16 %v1190, %v1189
    %v1246 = vpack.c.bf16 %v1192, %v1191
    %v1247 = vpack.c.bf16 %v1194, %v1193
    %v1248 = vpack.c.bf16 %v1196, %v1195
    %v1249 = vpack.c.bf16 %v1198, %v1197
    %v1250 = vpack.c.bf16 %v1200, %v1199
    %v1251 = vpack.c.bf16 %v1202, %v1201
    %v1252 = vpack.c.bf16 %v1204, %v1203
    %v1253 = vpack.c.bf16 %v1206, %v1205
    %v1254 = vpack.c.bf16 %v1208, %v1207
    %v1255 = vpack.c.bf16 %v1210, %v1209
    %v1256 = vpack.c.bf16 %v1212, %v1211
    %v1257 = vpack.c.bf16 %v1214, %v1213
    %v1258 = vpack.c.bf16 %v1216, %v1215
    %v1259 = vpack.c.bf16 %v1218, %v1217
    %v1260 = vpack.c.bf16 %v1220, %v1219
    %v1261 = vpack.c.bf16 %v1222, %v1221
    %v1262 = vpack.c.bf16 %v1224, %v1223
    %v1263 = vpack.c.bf16 %v1226, %v1225
    %v1264 = vpack.c.bf16 %v1228, %v1227
    %v1265 = vpack.c.bf16 %v1230, %v1229
    %v1266 = vpack.c.bf16 %v1232, %v1231
    %v1267 = vpack.c.bf16 %v1234, %v1233
    %v1268 = vpack.c.bf16 %v1236, %v1235
    %v1270 = vshrl.u32 %v1237, 16
    %v1272 = vrot.slane %v1270, 7
    %v1273 = vshll.u32 %v1237, 16
    %v1275 = vor.u32 %v1272, %v1273
    %v1277 = vshrl.u32 %v1238, 16
    %v1279 = vrot.slane %v1277, 7
    %v1280 = vshll.u32 %v1238, 16
    %v1282 = vor.u32 %v1279, %v1280
    %v1284 = vshrl.u32 %v1239, 16
    %v1286 = vrot.slane %v1284, 7
    %v1287 = vshll.u32 %v1239, 16
    %v1289 = vor.u32 %v1286, %v1287
    %v1291 = vshrl.u32 %v1240, 16
    %v1293 = vrot.slane %v1291, 7
    %v1294 = vshll.u32 %v1240, 16
    %v1296 = vor.u32 %v1293, %v1294
    %v1298 = vshrl.u32 %v1241, 16
    %v1300 = vrot.slane %v1298, 7
    %v1301 = vshll.u32 %v1241, 16
    %v1303 = vor.u32 %v1300, %v1301
    %v1305 = vshrl.u32 %v1242, 16
    %v1307 = vrot.slane %v1305, 7
    %v1308 = vshll.u32 %v1242, 16
    %v1310 = vor.u32 %v1307, %v1308
    %v1312 = vshrl.u32 %v1243, 16
    %v1314 = vrot.slane %v1312, 7
    %v1315 = vshll.u32 %v1243, 16
    %v1317 = vor.u32 %v1314, %v1315
    %v1319 = vshrl.u32 %v1244, 16
    %v1321 = vrot.slane %v1319, 7
    %v1322 = vshll.u32 %v1244, 16
    %v1324 = vor.u32 %v1321, %v1322
    %v1326 = vshrl.u32 %v1245, 16
    %v1328 = vrot.slane %v1326, 7
    %v1329 = vshll.u32 %v1245, 16
    %v1331 = vor.u32 %v1328, %v1329
    %v1333 = vshrl.u32 %v1246, 16
    %v1335 = vrot.slane %v1333, 7
    %v1336 = vshll.u32 %v1246, 16
    %v1338 = vor.u32 %v1335, %v1336
    %v1340 = vshrl.u32 %v1247, 16
    %v1342 = vrot.slane %v1340, 7
    %v1343 = vshll.u32 %v1247, 16
    %v1345 = vor.u32 %v1342, %v1343
    %v1347 = vshrl.u32 %v1248, 16
    %v1349 = vrot.slane %v1347, 7
    %v1350 = vshll.u32 %v1248, 16
    %v1352 = vor.u32 %v1349, %v1350
    %v1354 = vshrl.u32 %v1249, 16
    %v1356 = vrot.slane %v1354, 7
    %v1357 = vshll.u32 %v1249, 16
    %v1359 = vor.u32 %v1356, %v1357
    %v1361 = vshrl.u32 %v1250, 16
    %v1363 = vrot.slane %v1361, 7
    %v1364 = vshll.u32 %v1250, 16
    %v1366 = vor.u32 %v1363, %v1364
    %v1368 = vshrl.u32 %v1251, 16
    %v1370 = vrot.slane %v1368, 7
    %v1371 = vshll.u32 %v1251, 16
    %v1373 = vor.u32 %v1370, %v1371
    %v1375 = vshrl.u32 %v1252, 16
    %v1377 = vrot.slane %v1375, 7
    %v1378 = vshll.u32 %v1252, 16
    %v1380 = vor.u32 %v1377, %v1378
    %v1382 = vshrl.u32 %v1253, 16
    %v1384 = vrot.slane %v1382, 7
    %v1385 = vshll.u32 %v1253, 16
    %v1387 = vor.u32 %v1384, %v1385
    %v1389 = vshrl.u32 %v1254, 16
    %v1391 = vrot.slane %v1389, 7
    %v1392 = vshll.u32 %v1254, 16
    %v1394 = vor.u32 %v1391, %v1392
    %v1396 = vshrl.u32 %v1255, 16
    %v1398 = vrot.slane %v1396, 7
    %v1399 = vshll.u32 %v1255, 16
    %v1401 = vor.u32 %v1398, %v1399
    %v1403 = vshrl.u32 %v1256, 16
    %v1405 = vrot.slane %v1403, 7
    %v1406 = vshll.u32 %v1256, 16
    %v1408 = vor.u32 %v1405, %v1406
    %v1410 = vshrl.u32 %v1257, 16
    %v1412 = vrot.slane %v1410, 7
    %v1413 = vshll.u32 %v1257, 16
    %v1415 = vor.u32 %v1412, %v1413
    %v1417 = vshrl.u32 %v1258, 16
    %v1419 = vrot.slane %v1417, 7
    %v1420 = vshll.u32 %v1258, 16
    %v1422 = vor.u32 %v1419, %v1420
    %v1424 = vshrl.u32 %v1259, 16
    %v1426 = vrot.slane %v1424, 7
    %v1427 = vshll.u32 %v1259, 16
    %v1429 = vor.u32 %v1426, %v1427
    %v1431 = vshrl.u32 %v1260, 16
    %v1433 = vrot.slane %v1431, 7
    %v1434 = vshll.u32 %v1260, 16
    %v1436 = vor.u32 %v1433, %v1434
    %v1438 = vshrl.u32 %v1261, 16
    %v1440 = vrot.slane %v1438, 7
    %v1441 = vshll.u32 %v1261, 16
    %v1443 = vor.u32 %v1440, %v1441
    %v1445 = vshrl.u32 %v1262, 16
    %v1447 = vrot.slane %v1445, 7
    %v1448 = vshll.u32 %v1262, 16
    %v1450 = vor.u32 %v1447, %v1448
    %v1452 = vshrl.u32 %v1263, 16
    %v1454 = vrot.slane %v1452, 7
    %v1455 = vshll.u32 %v1263, 16
    %v1457 = vor.u32 %v1454, %v1455
    %v1459 = vshrl.u32 %v1264, 16
    %v1461 = vrot.slane %v1459, 7
    %v1462 = vshll.u32 %v1264, 16
    %v1464 = vor.u32 %v1461, %v1462
    %v1466 = vshrl.u32 %v1265, 16
    %v1468 = vrot.slane %v1466, 7
    %v1469 = vshll.u32 %v1265, 16
    %v1471 = vor.u32 %v1468, %v1469
    %v1473 = vshrl.u32 %v1266, 16
    %v1475 = vrot.slane %v1473, 7
    %v1476 = vshll.u32 %v1266, 16
    %v1478 = vor.u32 %v1475, %v1476
    %v1480 = vshrl.u32 %v1267, 16
    %v1482 = vrot.slane %v1480, 7
    %v1483 = vshll.u32 %v1267, 16
    %v1485 = vor.u32 %v1482, %v1483
    %v1487 = vshrl.u32 %v1268, 16
    %v1489 = vrot.slane %v1487, 7
    %v1490 = vshll.u32 %v1268, 16
    %v1492 = vor.u32 %v1489, %v1490
    %vm1525 = vcmask 1040384
    %vm1526 = vsmask.f32 256
    %vm1527 = vmand %vm1525, %vm1526
    %v1528 = vsel %vm1527, 0, %v1275
    %v1529 = vsel %vm1527, 0, %v1282
    %v1530 = vsel %vm1527, 0, %v1289
    %v1531 = vsel %vm1527, 0, %v1296
    %v1532 = vsel %vm1527, 0, %v1303
    %v1533 = vsel %vm1527, 0, %v1310
    %v1534 = vsel %vm1527, 0, %v1317
    %v1535 = vsel %vm1527, 0, %v1324
    %v1536 = vsel %vm1527, 0, %v1331
    %v1537 = vsel %vm1527, 0, %v1338
    %v1538 = vsel %vm1527, 0, %v1345
    %v1539 = vsel %vm1527, 0, %v1352
    %v1540 = vsel %vm1527, 0, %v1359
    %v1541 = vsel %vm1527, 0, %v1366
    %v1542 = vsel %vm1527, 0, %v1373
    %v1543 = vsel %vm1527, 0, %v1380
    %v1544 = vsel %vm1527, 0, %v1387
    %v1545 = vsel %vm1527, 0, %v1394
    %v1546 = vsel %vm1527, 0, %v1401
    %v1547 = vsel %vm1527, 0, %v1408
    %v1548 = vsel %vm1527, 0, %v1415
    %v1549 = vsel %vm1527, 0, %v1422
    %v1550 = vsel %vm1527, 0, %v1429
    %v1551 = vsel %vm1527, 0, %v1436
    %v1552 = vsel %vm1527, 0, %v1443
    %v1553 = vsel %vm1527, 0, %v1450
    %v1554 = vsel %vm1527, 0, %v1457
    %v1555 = vsel %vm1527, 0, %v1464
    %v1556 = vsel %vm1527, 0, %v1471
    %v1557 = vsel %vm1527, 0, %v1478
    %v1558 = vsel %vm1527, 0, %v1485
    %v1559 = vsel %vm1527, 0, %v1492
    %v1560 = vrot.slane %v1273, 1
    %v1561 = vor.u32 %v1270, %v1560
    %v1562 = vrot.slane %v1280, 1
    %v1563 = vor.u32 %v1277, %v1562
    %v1564 = vrot.slane %v1287, 1
    %v1565 = vor.u32 %v1284, %v1564
    %v1566 = vrot.slane %v1294, 1
    %v1567 = vor.u32 %v1291, %v1566
    %v1568 = vrot.slane %v1301, 1
    %v1569 = vor.u32 %v1298, %v1568
    %v1570 = vrot.slane %v1308, 1
    %v1571 = vor.u32 %v1305, %v1570
    %v1572 = vrot.slane %v1315, 1
    %v1573 = vor.u32 %v1312, %v1572
    %v1574 = vrot.slane %v1322, 1
    %v1575 = vor.u32 %v1319, %v1574
    %v1576 = vrot.slane %v1329, 1
    %v1577 = vor.u32 %v1326, %v1576
    %v1578 = vrot.slane %v1336, 1
    %v1579 = vor.u32 %v1333, %v1578
    %v1580 = vrot.slane %v1343, 1
    %v1581 = vor.u32 %v1340, %v1580
    %v1582 = vrot.slane %v1350, 1
    %v1583 = vor.u32 %v1347, %v1582
    %v1584 = vrot.slane %v1357, 1
    %v1585 = vor.u32 %v1354, %v1584
    %v1586 = vrot.slane %v1364, 1
    %v1587 = vor.u32 %v1361, %v1586
    %v1588 = vrot.slane %v1371, 1
    %v1589 = vor.u32 %v1368, %v1588
    %v1590 = vrot.slane %v1378, 1
    %v1591 = vor.u32 %v1375, %v1590
    %v1592 = vrot.slane %v1385, 1
    %v1593 = vor.u32 %v1382, %v1592
    %v1594 = vrot.slane %v1392, 1
    %v1595 = vor.u32 %v1389, %v1594
    %v1596 = vrot.slane %v1399, 1
    %v1597 = vor.u32 %v1396, %v1596
    %v1598 = vrot.slane %v1406, 1
    %v1599 = vor.u32 %v1403, %v1598
    %v1600 = vrot.slane %v1413, 1
    %v1601 = vor.u32 %v1410, %v1600
    %v1602 = vrot.slane %v1420, 1
    %v1603 = vor.u32 %v1417, %v1602
    %v1604 = vrot.slane %v1427, 1
    %v1605 = vor.u32 %v1424, %v1604
    %v1606 = vrot.slane %v1434, 1
    %v1607 = vor.u32 %v1431, %v1606
    %v1608 = vrot.slane %v1441, 1
    %v1609 = vor.u32 %v1438, %v1608
    %v1610 = vrot.slane %v1448, 1
    %v1611 = vor.u32 %v1445, %v1610
    %v1612 = vrot.slane %v1455, 1
    %v1613 = vor.u32 %v1452, %v1612
    %v1614 = vrot.slane %v1462, 1
    %v1615 = vor.u32 %v1459, %v1614
    %v1616 = vrot.slane %v1469, 1
    %v1617 = vor.u32 %v1466, %v1616
    %v1618 = vrot.slane %v1476, 1
    %v1619 = vor.u32 %v1473, %v1618
    %v1620 = vrot.slane %v1483, 1
    %v1621 = vor.u32 %v1480, %v1620
    %v1622 = vrot.slane %v1490, 1
    %v1623 = vor.u32 %v1487, %v1622
    %vm1656 = vcmask 1047552
    %vm1657 = vsmask.f32 7424
    %vm1658 = vmand %vm1656, %vm1657
    %v1659 = vsel %vm1658, %v1561, 0
    %v1660 = vsel %vm1658, %v1563, 0
    %v1661 = vsel %vm1658, %v1565, 0
    %v1662 = vsel %vm1658, %v1567, 0
    %v1663 = vsel %vm1658, %v1569, 0
    %v1664 = vsel %vm1658, %v1571, 0
    %v1665 = vsel %vm1658, %v1573, 0
    %v1666 = vsel %vm1658, %v1575, 0
    %v1667 = vsel %vm1658, %v1577, 0
    %v1668 = vsel %vm1658, %v1579, 0
    %v1669 = vsel %vm1658, %v1581, 0
    %v1670 = vsel %vm1658, %v1583, 0
    %v1671 = vsel %vm1658, %v1585, 0
    %v1672 = vsel %vm1658, %v1587, 0
    %v1673 = vsel %vm1658, %v1589, 0
    %v1674 = vsel %vm1658, %v1591, 0
    %v1675 = vsel %vm1658, %v1593, 0
    %v1676 = vsel %vm1658, %v1595, 0
    %v1677 = vsel %vm1658, %v1597, 0
    %v1678 = vsel %vm1658, %v1599, 0
    %v1679 = vsel %vm1658, %v1601, 0
    %v1680 = vsel %vm1658, %v1603, 0
    %v1681 = vsel %vm1658, %v1605, 0
    %v1682 = vsel %vm1658, %v1607, 0
    %v1683 = vsel %vm1658, %v1609, 0
    %v1684 = vsel %vm1658, %v1611, 0
    %v1685 = vsel %vm1658, %v1613, 0
    %v1686 = vsel %vm1658, %v1615, 0
    %v1687 = vsel %vm1658, %v1617, 0
    %v1688 = vsel %vm1658, %v1619, 0
    %v1689 = vsel %vm1658, %v1621, 0
    %v1690 = vsel %vm1658, %v1623, 0
    %1722 = vrot.lane.b32.xlu0 0, 16
    %v1723 = vpop.permute.xlu0 %1722
    %1724 = vrot.lane.b32.xlu0 %v1237, 16
    %v1725 = vpop.permute.xlu0 %1724
    %1726 = vrot.lane.b32.xlu0 %v1238, 16
    %v1727 = vpop.permute.xlu0 %1726
    %1728 = vrot.lane.b32.xlu0 %v1239, 16
    %v1729 = vpop.permute.xlu0 %1728
    %1730 = vrot.lane.b32.xlu0 %v1240, 16
    %v1731 = vpop.permute.xlu0 %1730
    %1732 = vrot.lane.b32.xlu0 %v1241, 16
    %v1733 = vpop.permute.xlu0 %1732
    %1734 = vrot.lane.b32.xlu0 %v1242, 16
    %v1735 = vpop.permute.xlu0 %1734
    %1736 = vrot.lane.b32.xlu0 %v1243, 16
    %v1737 = vpop.permute.xlu0 %1736
    %1738 = vrot.lane.b32.xlu0 %v1244, 16
    %v1739 = vpop.permute.xlu0 %1738
    %1740 = vrot.lane.b32.xlu0 %v1245, 16
    %v1741 = vpop.permute.xlu0 %1740
    %1742 = vrot.lane.b32.xlu0 %v1246, 16
    %v1743 = vpop.permute.xlu0 %1742
    %1744 = vrot.lane.b32.xlu0 %v1247, 16
    %v1745 = vpop.permute.xlu0 %1744
    %1746 = vrot.lane.b32.xlu0 %v1248, 16
    %v1747 = vpop.permute.xlu0 %1746
    %1748 = vrot.lane.b32.xlu0 %v1249, 16
    %v1749 = vpop.permute.xlu0 %1748
    %1750 = vrot.lane.b32.xlu0 %v1250, 16
    %v1751 = vpop.permute.xlu0 %1750
    %1752 = vrot.lane.b32.xlu0 %v1251, 16
    %v1753 = vpop.permute.xlu0 %1752
    %1754 = vrot.lane.b32.xlu0 %v1253, 16
    %v1755 = vpop.permute.xlu0 %1754
    %1756 = vrot.lane.b32.xlu0 %v1254, 16
    %v1757 = vpop.permute.xlu0 %1756
    %1758 = vrot.lane.b32.xlu0 %v1255, 16
    %v1759 = vpop.permute.xlu0 %1758
    %1760 = vrot.lane.b32.xlu0 %v1256, 16
    %v1761 = vpop.permute.xlu0 %1760
    %1762 = vrot.lane.b32.xlu0 %v1257, 16
    %v1763 = vpop.permute.xlu0 %1762
    %1764 = vrot.lane.b32.xlu0 %v1258, 16
    %v1765 = vpop.permute.xlu0 %1764
    %1766 = vrot.lane.b32.xlu0 %v1259, 16
    %v1767 = vpop.permute.xlu0 %1766
    %1768 = vrot.lane.b32.xlu0 %v1260, 16
    %v1769 = vpop.permute.xlu0 %1768
    %1770 = vrot.lane.b32.xlu0 %v1261, 16
    %v1771 = vpop.permute.xlu0 %1770
    %1772 = vrot.lane.b32.xlu0 %v1262, 16
    %v1773 = vpop.permute.xlu0 %1772
    %1774 = vrot.lane.b32.xlu0 %v1263, 16
    %v1775 = vpop.permute.xlu0 %1774
    %1776 = vrot.lane.b32.xlu0 %v1264, 16
    %v1777 = vpop.permute.xlu0 %1776
    %1778 = vrot.lane.b32.xlu0 %v1265, 16
    %v1779 = vpop.permute.xlu0 %1778
    %1780 = vrot.lane.b32.xlu0 %v1266, 16
    %v1781 = vpop.permute.xlu0 %1780
    %1782 = vrot.lane.b32.xlu0 %v1267, 16
    %v1783 = vpop.permute.xlu0 %1782
    %1814 = vrot.lane.b32.xlu0 0, 32
    %v1815 = vpop.permute.xlu0 %1814
    %1816 = vrot.lane.b32.xlu0 %v1659, 32
    %v1817 = vpop.permute.xlu0 %1816
    %1818 = vrot.lane.b32.xlu0 %v1660, 32
    %v1819 = vpop.permute.xlu0 %1818
    %1820 = vrot.lane.b32.xlu0 %v1661, 32
    %v1821 = vpop.permute.xlu0 %1820
    %1822 = vrot.lane.b32.xlu0 %v1662, 32
    %v1823 = vpop.permute.xlu0 %1822
    %1824 = vrot.lane.b32.xlu0 %v1663, 32
    %v1825 = vpop.permute.xlu0 %1824
    %1826 = vrot.lane.b32.xlu0 %v1664, 32
    %v1827 = vpop.permute.xlu0 %1826
    %1828 = vrot.lane.b32.xlu0 %v1665, 32
    %v1829 = vpop.permute.xlu0 %1828
    %1830 = vrot.lane.b32.xlu0 %v1666, 32
    %v1831 = vpop.permute.xlu0 %1830
    %1832 = vrot.lane.b32.xlu0 %v1667, 32
    %v1833 = vpop.permute.xlu0 %1832
    %1834 = vrot.lane.b32.xlu0 %v1668, 32
    %v1835 = vpop.permute.xlu0 %1834
    %1836 = vrot.lane.b32.xlu0 %v1669, 32
    %v1837 = vpop.permute.xlu0 %1836
    %1838 = vrot.lane.b32.xlu0 %v1670, 32
    %v1839 = vpop.permute.xlu0 %1838
    %1840 = vrot.lane.b32.xlu0 %v1671, 32
    %v1841 = vpop.permute.xlu0 %1840
    %1842 = vrot.lane.b32.xlu0 %v1672, 32
    %v1843 = vpop.permute.xlu0 %1842
    %1844 = vrot.lane.b32.xlu0 %v1673, 32
    %v1845 = vpop.permute.xlu0 %1844
    %1846 = vrot.lane.b32.xlu0 %v1675, 32
    %v1847 = vpop.permute.xlu0 %1846
    %1848 = vrot.lane.b32.xlu0 %v1676, 32
    %v1849 = vpop.permute.xlu0 %1848
    %1850 = vrot.lane.b32.xlu0 %v1677, 32
    %v1851 = vpop.permute.xlu0 %1850
    %1852 = vrot.lane.b32.xlu0 %v1678, 32
    %v1853 = vpop.permute.xlu0 %1852
    %1854 = vrot.lane.b32.xlu0 %v1679, 32
    %v1855 = vpop.permute.xlu0 %1854
    %1856 = vrot.lane.b32.xlu0 %v1680, 32
    %v1857 = vpop.permute.xlu0 %1856
    %1858 = vrot.lane.b32.xlu0 %v1681, 32
    %v1859 = vpop.permute.xlu0 %1858
    %1860 = vrot.lane.b32.xlu0 %v1682, 32
    %v1861 = vpop.permute.xlu0 %1860
    %1862 = vrot.lane.b32.xlu0 %v1683, 32
    %v1863 = vpop.permute.xlu0 %1862
    %1864 = vrot.lane.b32.xlu0 %v1684, 32
    %v1865 = vpop.permute.xlu0 %1864
    %1866 = vrot.lane.b32.xlu0 %v1685, 32
    %v1867 = vpop.permute.xlu0 %1866
    %1868 = vrot.lane.b32.xlu0 %v1686, 32
    %v1869 = vpop.permute.xlu0 %1868
    %1870 = vrot.lane.b32.xlu0 %v1687, 32
    %v1871 = vpop.permute.xlu0 %1870
    %1872 = vrot.lane.b32.xlu0 %v1688, 32
    %v1873 = vpop.permute.xlu0 %1872
    %1874 = vrot.lane.b32.xlu0 %v1689, 32
    %v1875 = vpop.permute.xlu0 %1874
    %1908 = vrot.lane.b32.xlu0 %v1528, 48
    %v1909 = vpop.permute.xlu0 %1908
    %1910 = vrot.lane.b32.xlu0 %v1529, 48
    %v1911 = vpop.permute.xlu0 %1910
    %1912 = vrot.lane.b32.xlu0 %v1530, 48
    %v1913 = vpop.permute.xlu0 %1912
    %1914 = vrot.lane.b32.xlu0 %v1531, 48
    %v1915 = vpop.permute.xlu0 %1914
    %1916 = vrot.lane.b32.xlu0 %v1532, 48
    %v1917 = vpop.permute.xlu0 %1916
    %1918 = vrot.lane.b32.xlu0 %v1533, 48
    %v1919 = vpop.permute.xlu0 %1918
    %1920 = vrot.lane.b32.xlu0 %v1534, 48
    %v1921 = vpop.permute.xlu0 %1920
    %1922 = vrot.lane.b32.xlu0 %v1535, 48
    %v1923 = vpop.permute.xlu0 %1922
    %1924 = vrot.lane.b32.xlu0 %v1536, 48
    %v1925 = vpop.permute.xlu0 %1924
    %1926 = vrot.lane.b32.xlu0 %v1537, 48
    %v1927 = vpop.permute.xlu0 %1926
    %1928 = vrot.lane.b32.xlu0 %v1538, 48
    %v1929 = vpop.permute.xlu0 %1928
    %1930 = vrot.lane.b32.xlu0 %v1539, 48
    %v1931 = vpop.permute.xlu0 %1930
    %1932 = vrot.lane.b32.xlu0 %v1540, 48
    %v1933 = vpop.permute.xlu0 %1932
    %1934 = vrot.lane.b32.xlu0 %v1541, 48
    %v1935 = vpop.permute.xlu0 %1934
    %1936 = vrot.lane.b32.xlu0 %v1542, 48
    %v1937 = vpop.permute.xlu0 %1936
    %1938 = vrot.lane.b32.xlu0 %v1543, 48
    %v1939 = vpop.permute.xlu0 %1938
    %1940 = vrot.lane.b32.xlu0 %v1544, 48
    %v1941 = vpop.permute.xlu0 %1940
    %1942 = vrot.lane.b32.xlu0 %v1545, 48
    %v1943 = vpop.permute.xlu0 %1942
    %1944 = vrot.lane.b32.xlu0 %v1546, 48
    %v1945 = vpop.permute.xlu0 %1944
    %1946 = vrot.lane.b32.xlu0 %v1547, 48
    %v1947 = vpop.permute.xlu0 %1946
    %1948 = vrot.lane.b32.xlu0 %v1548, 48
    %v1949 = vpop.permute.xlu0 %1948
    %1950 = vrot.lane.b32.xlu0 %v1549, 48
    %v1951 = vpop.permute.xlu0 %1950
    %1952 = vrot.lane.b32.xlu0 %v1550, 48
    %v1953 = vpop.permute.xlu0 %1952
    %1954 = vrot.lane.b32.xlu0 %v1551, 48
    %v1955 = vpop.permute.xlu0 %1954
    %1956 = vrot.lane.b32.xlu0 %v1552, 48
    %v1957 = vpop.permute.xlu0 %1956
    %1958 = vrot.lane.b32.xlu0 %v1553, 48
    %v1959 = vpop.permute.xlu0 %1958
    %1960 = vrot.lane.b32.xlu0 %v1554, 48
    %v1961 = vpop.permute.xlu0 %1960
    %1962 = vrot.lane.b32.xlu0 %v1555, 48
    %v1963 = vpop.permute.xlu0 %1962
    %1964 = vrot.lane.b32.xlu0 %v1556, 48
    %v1965 = vpop.permute.xlu0 %1964
    %1966 = vrot.lane.b32.xlu0 %v1557, 48
    %v1967 = vpop.permute.xlu0 %1966
    %1968 = vrot.lane.b32.xlu0 %v1558, 48
    %v1969 = vpop.permute.xlu0 %1968
    %1970 = vrot.lane.b32.xlu0 %v1559, 48
    %v1971 = vpop.permute.xlu0 %1970
    %1974 = vrot.lane.b32.xlu0 %v1237, 64
    %v1975 = vpop.permute.xlu0 %1974
    %1976 = vrot.lane.b32.xlu0 %v1238, 64
    %v1977 = vpop.permute.xlu0 %1976
    %1978 = vrot.lane.b32.xlu0 %v1239, 64
    %v1979 = vpop.permute.xlu0 %1978
    %1980 = vrot.lane.b32.xlu0 %v1240, 64
    %v1981 = vpop.permute.xlu0 %1980
    %1982 = vrot.lane.b32.xlu0 %v1241, 64
    %v1983 = vpop.permute.xlu0 %1982
    %1984 = vrot.lane.b32.xlu0 %v1242, 64
    %v1985 = vpop.permute.xlu0 %1984
    %1986 = vrot.lane.b32.xlu0 %v1243, 64
    %v1987 = vpop.permute.xlu0 %1986
    %1988 = vrot.lane.b32.xlu0 %v1244, 64
    %v1989 = vpop.permute.xlu0 %1988
    %1990 = vrot.lane.b32.xlu0 %v1245, 64
    %v1991 = vpop.permute.xlu0 %1990
    %1992 = vrot.lane.b32.xlu0 %v1246, 64
    %v1993 = vpop.permute.xlu0 %1992
    %1994 = vrot.lane.b32.xlu0 %v1247, 64
    %v1995 = vpop.permute.xlu0 %1994
    %1996 = vrot.lane.b32.xlu0 %v1248, 64
    %v1997 = vpop.permute.xlu0 %1996
    %1998 = vrot.lane.b32.xlu0 %v1249, 64
    %v1999 = vpop.permute.xlu0 %1998
    %2000 = vrot.lane.b32.xlu0 %v1250, 64
    %v2001 = vpop.permute.xlu0 %2000
    %2002 = vrot.lane.b32.xlu0 %v1251, 64
    %v2003 = vpop.permute.xlu0 %2002
    %2004 = vrot.lane.b32.xlu0 %v1252, 64
    %v2005 = vpop.permute.xlu0 %2004
    %2006 = vrot.lane.b32.xlu0 %v1253, 64
    %v2007 = vpop.permute.xlu0 %2006
    %2008 = vrot.lane.b32.xlu0 %v1254, 64
    %v2009 = vpop.permute.xlu0 %2008
    %2010 = vrot.lane.b32.xlu0 %v1255, 64
    %v2011 = vpop.permute.xlu0 %2010
    %2012 = vrot.lane.b32.xlu0 %v1256, 64
    %v2013 = vpop.permute.xlu0 %2012
    %2014 = vrot.lane.b32.xlu0 %v1257, 64
    %v2015 = vpop.permute.xlu0 %2014
    %2016 = vrot.lane.b32.xlu0 %v1258, 64
    %v2017 = vpop.permute.xlu0 %2016
    %2018 = vrot.lane.b32.xlu0 %v1259, 64
    %v2019 = vpop.permute.xlu0 %2018
    %2020 = vrot.lane.b32.xlu0 %v1260, 64
    %v2021 = vpop.permute.xlu0 %2020
    %2022 = vrot.lane.b32.xlu0 %v1261, 64
    %v2023 = vpop.permute.xlu0 %2022
    %2024 = vrot.lane.b32.xlu0 %v1262, 64
    %v2025 = vpop.permute.xlu0 %2024
    %2026 = vrot.lane.b32.xlu0 %v1263, 64
    %v2027 = vpop.permute.xlu0 %2026
    %2028 = vrot.lane.b32.xlu0 %v1264, 64
    %v2029 = vpop.permute.xlu0 %2028
    %2030 = vrot.lane.b32.xlu0 %v1265, 64
    %v2031 = vpop.permute.xlu0 %2030
    %2032 = vrot.lane.b32.xlu0 %v1266, 64
    %v2033 = vpop.permute.xlu0 %2032
    %2034 = vrot.lane.b32.xlu0 %v1267, 64
    %v2035 = vpop.permute.xlu0 %2034
    %2036 = vrot.lane.b32.xlu0 %v1268, 64
    %v2037 = vpop.permute.xlu0 %2036
    %2040 = vrot.lane.b32.xlu0 %v1659, 80
    %v2041 = vpop.permute.xlu0 %2040
    %2042 = vrot.lane.b32.xlu0 %v1660, 80
    %v2043 = vpop.permute.xlu0 %2042
    %2044 = vrot.lane.b32.xlu0 %v1661, 80
    %v2045 = vpop.permute.xlu0 %2044
    %2046 = vrot.lane.b32.xlu0 %v1662, 80
    %v2047 = vpop.permute.xlu0 %2046
    %2048 = vrot.lane.b32.xlu0 %v1663, 80
    %v2049 = vpop.permute.xlu0 %2048
    %2050 = vrot.lane.b32.xlu0 %v1664, 80
    %v2051 = vpop.permute.xlu0 %2050
    %2052 = vrot.lane.b32.xlu0 %v1665, 80
    %v2053 = vpop.permute.xlu0 %2052
    %2054 = vrot.lane.b32.xlu0 %v1666, 80
    %v2055 = vpop.permute.xlu0 %2054
    %2056 = vrot.lane.b32.xlu0 %v1667, 80
    %v2057 = vpop.permute.xlu0 %2056
    %2058 = vrot.lane.b32.xlu0 %v1668, 80
    %v2059 = vpop.permute.xlu0 %2058
    %2060 = vrot.lane.b32.xlu0 %v1669, 80
    %v2061 = vpop.permute.xlu0 %2060
    %2062 = vrot.lane.b32.xlu0 %v1670, 80
    %v2063 = vpop.permute.xlu0 %2062
    %2064 = vrot.lane.b32.xlu0 %v1671, 80
    %v2065 = vpop.permute.xlu0 %2064
    %2066 = vrot.lane.b32.xlu0 %v1672, 80
    %v2067 = vpop.permute.xlu0 %2066
    %2068 = vrot.lane.b32.xlu0 %v1673, 80
    %v2069 = vpop.permute.xlu0 %2068
    %2070 = vrot.lane.b32.xlu0 %v1674, 80
    %v2071 = vpop.permute.xlu0 %2070
    %2072 = vrot.lane.b32.xlu0 %v1675, 80
    %v2073 = vpop.permute.xlu0 %2072
    %2074 = vrot.lane.b32.xlu0 %v1676, 80
    %v2075 = vpop.permute.xlu0 %2074
    %2076 = vrot.lane.b32.xlu0 %v1677, 80
    %v2077 = vpop.permute.xlu0 %2076
    %2078 = vrot.lane.b32.xlu0 %v1678, 80
    %v2079 = vpop.permute.xlu0 %2078
    %2080 = vrot.lane.b32.xlu0 %v1679, 80
    %v2081 = vpop.permute.xlu0 %2080
    %2082 = vrot.lane.b32.xlu0 %v1680, 80
    %v2083 = vpop.permute.xlu0 %2082
    %2084 = vrot.lane.b32.xlu0 %v1681, 80
    %v2085 = vpop.permute.xlu0 %2084
    %2086 = vrot.lane.b32.xlu0 %v1682, 80
    %v2087 = vpop.permute.xlu0 %2086
    %2088 = vrot.lane.b32.xlu0 %v1683, 80
    %v2089 = vpop.permute.xlu0 %2088
    %2090 = vrot.lane.b32.xlu0 %v1684, 80
    %v2091 = vpop.permute.xlu0 %2090
    %2092 = vrot.lane.b32.xlu0 %v1685, 80
    %v2093 = vpop.permute.xlu0 %2092
    %2094 = vrot.lane.b32.xlu0 %v1686, 80
    %v2095 = vpop.permute.xlu0 %2094
    %2096 = vrot.lane.b32.xlu0 %v1687, 80
    %v2097 = vpop.permute.xlu0 %2096
    %2098 = vrot.lane.b32.xlu0 %v1688, 80
    %v2099 = vpop.permute.xlu0 %2098
    %2100 = vrot.lane.b32.xlu0 %v1689, 80
    %v2101 = vpop.permute.xlu0 %2100
    %2102 = vrot.lane.b32.xlu0 %v1690, 80
    %v2103 = vpop.permute.xlu0 %2102
    %2104 = vrot.lane.b32.xlu0 %v1529, 96
    %v2105 = vpop.permute.xlu0 %2104
    %2106 = vrot.lane.b32.xlu0 %v1530, 96
    %v2107 = vpop.permute.xlu0 %2106
    %2108 = vrot.lane.b32.xlu0 %v1531, 96
    %v2109 = vpop.permute.xlu0 %2108
    %2110 = vrot.lane.b32.xlu0 %v1532, 96
    %v2111 = vpop.permute.xlu0 %2110
    %2112 = vrot.lane.b32.xlu0 %v1533, 96
    %v2113 = vpop.permute.xlu0 %2112
    %2114 = vrot.lane.b32.xlu0 %v1534, 96
    %v2115 = vpop.permute.xlu0 %2114
    %2116 = vrot.lane.b32.xlu0 %v1535, 96
    %v2117 = vpop.permute.xlu0 %2116
    %2118 = vrot.lane.b32.xlu0 %v1536, 96
    %v2119 = vpop.permute.xlu0 %2118
    %2120 = vrot.lane.b32.xlu0 %v1537, 96
    %v2121 = vpop.permute.xlu0 %2120
    %2122 = vrot.lane.b32.xlu0 %v1538, 96
    %v2123 = vpop.permute.xlu0 %2122
    %2124 = vrot.lane.b32.xlu0 %v1539, 96
    %v2125 = vpop.permute.xlu0 %2124
    %2126 = vrot.lane.b32.xlu0 %v1540, 96
    %v2127 = vpop.permute.xlu0 %2126
    %2128 = vrot.lane.b32.xlu0 %v1541, 96
    %v2129 = vpop.permute.xlu0 %2128
    %2130 = vrot.lane.b32.xlu0 %v1542, 96
    %v2131 = vpop.permute.xlu0 %2130
    %2132 = vrot.lane.b32.xlu0 %v1543, 96
    %v2133 = vpop.permute.xlu0 %2132
    %2134 = vrot.lane.b32.xlu0 0, 96
    %v2135 = vpop.permute.xlu0 %2134
    %2136 = vrot.lane.b32.xlu0 %v1545, 96
    %v2137 = vpop.permute.xlu0 %2136
    %2138 = vrot.lane.b32.xlu0 %v1546, 96
    %v2139 = vpop.permute.xlu0 %2138
    %2140 = vrot.lane.b32.xlu0 %v1547, 96
    %v2141 = vpop.permute.xlu0 %2140
    %2142 = vrot.lane.b32.xlu0 %v1548, 96
    %v2143 = vpop.permute.xlu0 %2142
    %2144 = vrot.lane.b32.xlu0 %v1549, 96
    %v2145 = vpop.permute.xlu0 %2144
    %2146 = vrot.lane.b32.xlu0 %v1550, 96
    %v2147 = vpop.permute.xlu0 %2146
    %2148 = vrot.lane.b32.xlu0 %v1551, 96
    %v2149 = vpop.permute.xlu0 %2148
    %2150 = vrot.lane.b32.xlu0 %v1552, 96
    %v2151 = vpop.permute.xlu0 %2150
    %2152 = vrot.lane.b32.xlu0 %v1553, 96
    %v2153 = vpop.permute.xlu0 %2152
    %2154 = vrot.lane.b32.xlu0 %v1554, 96
    %v2155 = vpop.permute.xlu0 %2154
    %2156 = vrot.lane.b32.xlu0 %v1555, 96
    %v2157 = vpop.permute.xlu0 %2156
    %2158 = vrot.lane.b32.xlu0 %v1556, 96
    %v2159 = vpop.permute.xlu0 %2158
    %2160 = vrot.lane.b32.xlu0 %v1557, 96
    %v2161 = vpop.permute.xlu0 %2160
    %2162 = vrot.lane.b32.xlu0 %v1558, 96
    %v2163 = vpop.permute.xlu0 %2162
    %2164 = vrot.lane.b32.xlu0 %v1559, 96
    %v2165 = vpop.permute.xlu0 %2164
    %2166 = vrot.lane.b32.xlu0 %v1238, 112
    %v2167 = vpop.permute.xlu0 %2166
    %2168 = vrot.lane.b32.xlu0 %v1239, 112
    %v2169 = vpop.permute.xlu0 %2168
    %2170 = vrot.lane.b32.xlu0 %v1240, 112
    %v2171 = vpop.permute.xlu0 %2170
    %2172 = vrot.lane.b32.xlu0 %v1241, 112
    %v2173 = vpop.permute.xlu0 %2172
    %2174 = vrot.lane.b32.xlu0 %v1242, 112
    %v2175 = vpop.permute.xlu0 %2174
    %2176 = vrot.lane.b32.xlu0 %v1243, 112
    %v2177 = vpop.permute.xlu0 %2176
    %2178 = vrot.lane.b32.xlu0 %v1244, 112
    %v2179 = vpop.permute.xlu0 %2178
    %2180 = vrot.lane.b32.xlu0 %v1245, 112
    %v2181 = vpop.permute.xlu0 %2180
    %2182 = vrot.lane.b32.xlu0 %v1246, 112
    %v2183 = vpop.permute.xlu0 %2182
    %2184 = vrot.lane.b32.xlu0 %v1247, 112
    %v2185 = vpop.permute.xlu0 %2184
    %2186 = vrot.lane.b32.xlu0 %v1248, 112
    %v2187 = vpop.permute.xlu0 %2186
    %2188 = vrot.lane.b32.xlu0 %v1249, 112
    %v2189 = vpop.permute.xlu0 %2188
    %2190 = vrot.lane.b32.xlu0 %v1250, 112
    %v2191 = vpop.permute.xlu0 %2190
    %2192 = vrot.lane.b32.xlu0 %v1251, 112
    %v2193 = vpop.permute.xlu0 %2192
    %2194 = vrot.lane.b32.xlu0 %v1252, 112
    %v2195 = vpop.permute.xlu0 %2194
    %2196 = vrot.lane.b32.xlu0 0, 112
    %v2197 = vpop.permute.xlu0 %2196
    %2198 = vrot.lane.b32.xlu0 %v1254, 112
    %v2199 = vpop.permute.xlu0 %2198
    %2200 = vrot.lane.b32.xlu0 %v1255, 112
    %v2201 = vpop.permute.xlu0 %2200
    %2202 = vrot.lane.b32.xlu0 %v1256, 112
    %v2203 = vpop.permute.xlu0 %2202
    %2204 = vrot.lane.b32.xlu0 %v1257, 112
    %v2205 = vpop.permute.xlu0 %2204
    %2206 = vrot.lane.b32.xlu0 %v1258, 112
    %v2207 = vpop.permute.xlu0 %2206
    %2208 = vrot.lane.b32.xlu0 %v1259, 112
    %v2209 = vpop.permute.xlu0 %2208
    %2210 = vrot.lane.b32.xlu0 %v1260, 112
    %v2211 = vpop.permute.xlu0 %2210
    %2212 = vrot.lane.b32.xlu0 %v1261, 112
    %v2213 = vpop.permute.xlu0 %2212
    %2214 = vrot.lane.b32.xlu0 %v1262, 112
    %v2215 = vpop.permute.xlu0 %2214
    %2216 = vrot.lane.b32.xlu0 %v1263, 112
    %v2217 = vpop.permute.xlu0 %2216
    %2218 = vrot.lane.b32.xlu0 %v1264, 112
    %v2219 = vpop.permute.xlu0 %2218
    %2220 = vrot.lane.b32.xlu0 %v1265, 112
    %v2221 = vpop.permute.xlu0 %2220
    %2222 = vrot.lane.b32.xlu0 %v1266, 112
    %v2223 = vpop.permute.xlu0 %2222
    %2224 = vrot.lane.b32.xlu0 %v1267, 112
    %v2225 = vpop.permute.xlu0 %2224
    %2226 = vrot.lane.b32.xlu0 %v1268, 112
    %v2227 = vpop.permute.xlu0 %2226
    %v2230 = vsel %vm567, 0, %v1723
    %v2233 = vsel %vm567, %v1528, %v1725
    %v2236 = vsel %vm567, %v1529, %v1727
    %v2239 = vsel %vm567, %v1530, %v1729
    %v2242 = vsel %vm567, %v1531, %v1731
    %v2245 = vsel %vm567, %v1532, %v1733
    %v2248 = vsel %vm567, %v1533, %v1735
    %v2251 = vsel %vm567, %v1534, %v1737
    %v2254 = vsel %vm567, %v1535, %v1739
    %v2257 = vsel %vm567, %v1536, %v1741
    %v2260 = vsel %vm567, %v1537, %v1743
    %v2263 = vsel %vm567, %v1538, %v1745
    %v2266 = vsel %vm567, %v1539, %v1747
    %v2269 = vsel %vm567, %v1540, %v1749
    %v2272 = vsel %vm567, %v1541, %v1751
    %v2275 = vsel %vm567, %v1542, %v1753
    %v2278 = vsel %vm567, %v1544, %v1755
    %v2281 = vsel %vm567, %v1545, %v1757
    %v2284 = vsel %vm567, %v1546, %v1759
    %v2287 = vsel %vm567, %v1547, %v1761
    %v2290 = vsel %vm567, %v1548, %v1763
    %v2293 = vsel %vm567, %v1549, %v1765
    %v2296 = vsel %vm567, %v1550, %v1767
    %v2299 = vsel %vm567, %v1551, %v1769
    %v2302 = vsel %vm567, %v1552, %v1771
    %v2305 = vsel %vm567, %v1553, %v1773
    %v2308 = vsel %vm567, %v1554, %v1775
    %v2311 = vsel %vm567, %v1555, %v1777
    %v2314 = vsel %vm567, %v1556, %v1779
    %v2317 = vsel %vm567, %v1557, %v1781
    %v2320 = vsel %vm567, %v1558, %v1783
    %vm2321 = vcmask 261120
    %v2323 = vsel %vm2321, %v2230, %v1815
    %v2325 = vsel %vm2321, %v2233, %v1817
    %v2327 = vsel %vm2321, %v2236, %v1819
    %v2329 = vsel %vm2321, %v2239, %v1821
    %v2331 = vsel %vm2321, %v2242, %v1823
    %v2333 = vsel %vm2321, %v2245, %v1825
    %v2335 = vsel %vm2321, %v2248, %v1827
    %v2337 = vsel %vm2321, %v2251, %v1829
    %v2339 = vsel %vm2321, %v2254, %v1831
    %v2341 = vsel %vm2321, %v2257, %v1833
    %v2343 = vsel %vm2321, %v2260, %v1835
    %v2345 = vsel %vm2321, %v2263, %v1837
    %v2347 = vsel %vm2321, %v2266, %v1839
    %v2349 = vsel %vm2321, %v2269, %v1841
    %v2351 = vsel %vm2321, %v2272, %v1843
    %v2353 = vsel %vm2321, %v2275, %v1845
    %v2355 = vsel %vm2321, %v2278, %v1847
    %v2357 = vsel %vm2321, %v2281, %v1849
    %v2359 = vsel %vm2321, %v2284, %v1851
    %v2361 = vsel %vm2321, %v2287, %v1853
    %v2363 = vsel %vm2321, %v2290, %v1855
    %v2365 = vsel %vm2321, %v2293, %v1857
    %v2367 = vsel %vm2321, %v2296, %v1859
    %v2369 = vsel %vm2321, %v2299, %v1861
    %v2371 = vsel %vm2321, %v2302, %v1863
    %v2373 = vsel %vm2321, %v2305, %v1865
    %v2375 = vsel %vm2321, %v2308, %v1867
    %v2377 = vsel %vm2321, %v2311, %v1869
    %v2379 = vsel %vm2321, %v2314, %v1871
    %v2381 = vsel %vm2321, %v2317, %v1873
    %v2383 = vsel %vm2321, %v2320, %v1875
    %vm2384 = vcmask 392192
    %v2386 = vsel %vm2384, %v2323, %v1909
    %v2388 = vsel %vm2384, %v2325, %v1911
    %v2390 = vsel %vm2384, %v2327, %v1913
    %v2392 = vsel %vm2384, %v2329, %v1915
    %v2394 = vsel %vm2384, %v2331, %v1917
    %v2396 = vsel %vm2384, %v2333, %v1919
    %v2398 = vsel %vm2384, %v2335, %v1921
    %v2400 = vsel %vm2384, %v2337, %v1923
    %v2402 = vsel %vm2384, %v2339, %v1925
    %v2404 = vsel %vm2384, %v2341, %v1927
    %v2406 = vsel %vm2384, %v2343, %v1929
    %v2408 = vsel %vm2384, %v2345, %v1931
    %v2410 = vsel %vm2384, %v2347, %v1933
    %v2412 = vsel %vm2384, %v2349, %v1935
    %v2414 = vsel %vm2384, %v2351, %v1937
    %v2416 = vsel %vm2384, %v2353, %v1939
    %v2418 = vsel %vm2384, %v2323, %v1941
    %v2420 = vsel %vm2384, %v2355, %v1943
    %v2422 = vsel %vm2384, %v2357, %v1945
    %v2424 = vsel %vm2384, %v2359, %v1947
    %v2426 = vsel %vm2384, %v2361, %v1949
    %v2428 = vsel %vm2384, %v2363, %v1951
    %v2430 = vsel %vm2384, %v2365, %v1953
    %v2432 = vsel %vm2384, %v2367, %v1955
    %v2434 = vsel %vm2384, %v2369, %v1957
    %v2436 = vsel %vm2384, %v2371, %v1959
    %v2438 = vsel %vm2384, %v2373, %v1961
    %v2440 = vsel %vm2384, %v2375, %v1963
    %v2442 = vsel %vm2384, %v2377, %v1965
    %v2444 = vsel %vm2384, %v2379, %v1967
    %v2446 = vsel %vm2384, %v2381, %v1969
    %v2448 = vsel %vm2384, %v2383, %v1971
    %v2450 = vsel %vm179, %v2386, %v1975
    %v2452 = vsel %vm179, %v2388, %v1977
    %v2454 = vsel %vm179, %v2390, %v1979
    %v2456 = vsel %vm179, %v2392, %v1981
    %v2458 = vsel %vm179, %v2394, %v1983
    %v2460 = vsel %vm179, %v2396, %v1985
    %v2462 = vsel %vm179, %v2398, %v1987
    %v2464 = vsel %vm179, %v2400, %v1989
    %v2466 = vsel %vm179, %v2402, %v1991
    %v2468 = vsel %vm179, %v2404, %v1993
    %v2470 = vsel %vm179, %v2406, %v1995
    %v2472 = vsel %vm179, %v2408, %v1997
    %v2474 = vsel %vm179, %v2410, %v1999
    %v2476 = vsel %vm179, %v2412, %v2001
    %v2478 = vsel %vm179, %v2414, %v2003
    %v2480 = vsel %vm179, %v2416, %v2005
    %v2482 = vsel %vm179, %v2418, %v2007
    %v2484 = vsel %vm179, %v2420, %v2009
    %v2486 = vsel %vm179, %v2422, %v2011
    %v2488 = vsel %vm179, %v2424, %v2013
    %v2490 = vsel %vm179, %v2426, %v2015
    %v2492 = vsel %vm179, %v2428, %v2017
    %v2494 = vsel %vm179, %v2430, %v2019
    %v2496 = vsel %vm179, %v2432, %v2021
    %v2498 = vsel %vm179, %v2434, %v2023
    %v2500 = vsel %vm179, %v2436, %v2025
    %v2502 = vsel %vm179, %v2438, %v2027
    %v2504 = vsel %vm179, %v2440, %v2029
    %v2506 = vsel %vm179, %v2442, %v2031
    %v2508 = vsel %vm179, %v2444, %v2033
    %v2510 = vsel %vm179, %v2446, %v2035
    %v2512 = vsel %vm179, %v2448, %v2037
    %vm2513 = vcmask 654336
    %v2515 = vsel %vm2513, %v2450, %v2041
    %v2517 = vsel %vm2513, %v2452, %v2043
    %v2519 = vsel %vm2513, %v2454, %v2045
    %v2521 = vsel %vm2513, %v2456, %v2047
    %v2523 = vsel %vm2513, %v2458, %v2049
    %v2525 = vsel %vm2513, %v2460, %v2051
    %v2527 = vsel %vm2513, %v2462, %v2053
    %v2529 = vsel %vm2513, %v2464, %v2055
    %v2531 = vsel %vm2513, %v2466, %v2057
    %v2533 = vsel %vm2513, %v2468, %v2059
    %v2535 = vsel %vm2513, %v2470, %v2061
    %v2537 = vsel %vm2513, %v2472, %v2063
    %v2539 = vsel %vm2513, %v2474, %v2065
    %v2541 = vsel %vm2513, %v2476, %v2067
    %v2543 = vsel %vm2513, %v2478, %v2069
    %v2545 = vsel %vm2513, %v2480, %v2071
    %v2547 = vsel %vm2513, %v2482, %v2073
    %v2549 = vsel %vm2513, %v2484, %v2075
    %v2551 = vsel %vm2513, %v2486, %v2077
    %v2553 = vsel %vm2513, %v2488, %v2079
    %v2555 = vsel %vm2513, %v2490, %v2081
    %v2557 = vsel %vm2513, %v2492, %v2083
    %v2559 = vsel %vm2513, %v2494, %v2085
    %v2561 = vsel %vm2513, %v2496, %v2087
    %v2563 = vsel %vm2513, %v2498, %v2089
    %v2565 = vsel %vm2513, %v2500, %v2091
    %v2567 = vsel %vm2513, %v2502, %v2093
    %v2569 = vsel %vm2513, %v2504, %v2095
    %v2571 = vsel %vm2513, %v2506, %v2097
    %v2573 = vsel %vm2513, %v2508, %v2099
    %v2575 = vsel %vm2513, %v2510, %v2101
    %v2577 = vsel %vm2513, %v2512, %v2103
    %vm2578 = vcmask 785408
    %v2580 = vsel %vm2578, %v2515, %v2105
    %v2582 = vsel %vm2578, %v2517, %v2107
    %v2584 = vsel %vm2578, %v2519, %v2109
    %v2586 = vsel %vm2578, %v2521, %v2111
    %v2588 = vsel %vm2578, %v2523, %v2113
    %v2590 = vsel %vm2578, %v2525, %v2115
    %v2592 = vsel %vm2578, %v2527, %v2117
    %v2594 = vsel %vm2578, %v2529, %v2119
    %v2596 = vsel %vm2578, %v2531, %v2121
    %v2598 = vsel %vm2578, %v2533, %v2123
    %v2600 = vsel %vm2578, %v2535, %v2125
    %v2602 = vsel %vm2578, %v2537, %v2127
    %v2604 = vsel %vm2578, %v2539, %v2129
    %v2606 = vsel %vm2578, %v2541, %v2131
    %v2608 = vsel %vm2578, %v2543, %v2133
    %v2610 = vsel %vm2578, %v2545, %v2135
    %v2612 = vsel %vm2578, %v2547, %v2137
    %v2614 = vsel %vm2578, %v2549, %v2139
    %v2616 = vsel %vm2578, %v2551, %v2141
    %v2618 = vsel %vm2578, %v2553, %v2143
    %v2620 = vsel %vm2578, %v2555, %v2145
    %v2622 = vsel %vm2578, %v2557, %v2147
    %v2624 = vsel %vm2578, %v2559, %v2149
    %v2626 = vsel %vm2578, %v2561, %v2151
    %v2628 = vsel %vm2578, %v2563, %v2153
    %v2630 = vsel %vm2578, %v2565, %v2155
    %v2632 = vsel %vm2578, %v2567, %v2157
    %v2634 = vsel %vm2578, %v2569, %v2159
    %v2636 = vsel %vm2578, %v2571, %v2161
    %v2638 = vsel %vm2578, %v2573, %v2163
    %v2640 = vsel %vm2578, %v2575, %v2165
    %v2641 = vsel %vm2578, %v2577, %v2135
    %vm2642 = vcmask 916480
    %v2644 = vsel %vm2642, %v2580, %v2167
    %v2647 = vsel %vm2642, %v2582, %v2169
    %v2650 = vsel %vm2642, %v2584, %v2171
    %v2653 = vsel %vm2642, %v2586, %v2173
    %v2656 = vsel %vm2642, %v2588, %v2175
    %v2659 = vsel %vm2642, %v2590, %v2177
    %v2662 = vsel %vm2642, %v2592, %v2179
    %v2665 = vsel %vm2642, %v2594, %v2181
    %v2668 = vsel %vm2642, %v2596, %v2183
    %v2671 = vsel %vm2642, %v2598, %v2185
    %v2674 = vsel %vm2642, %v2600, %v2187
    %v2677 = vsel %vm2642, %v2602, %v2189
    %v2680 = vsel %vm2642, %v2604, %v2191
    %v2683 = vsel %vm2642, %v2606, %v2193
    %v2686 = vsel %vm2642, %v2608, %v2195
    %v2689 = vsel %vm2642, %v2610, %v2197
    %v2692 = vsel %vm2642, %v2612, %v2199
    %v2695 = vsel %vm2642, %v2614, %v2201
    %v2698 = vsel %vm2642, %v2616, %v2203
    %v2701 = vsel %vm2642, %v2618, %v2205
    %v2704 = vsel %vm2642, %v2620, %v2207
    %v2707 = vsel %vm2642, %v2622, %v2209
    %v2710 = vsel %vm2642, %v2624, %v2211
    %v2713 = vsel %vm2642, %v2626, %v2213
    %v2716 = vsel %vm2642, %v2628, %v2215
    %v2719 = vsel %vm2642, %v2630, %v2217
    %v2722 = vsel %vm2642, %v2632, %v2219
    %v2725 = vsel %vm2642, %v2634, %v2221
    %v2728 = vsel %vm2642, %v2636, %v2223
    %v2731 = vsel %vm2642, %v2638, %v2225
    %v2734 = vsel %vm2642, %v2640, %v2227
    %v2736 = vsel %vm2642, %v2641, %v2197
    %v2738 = vld [vmem:[%s4] sm:$0xf]
    %v2739 = vld [vmem:[%s4 + $0x4] sm:$0xf]
    %v2740 = vld [vmem:[%s4 + $0x8] sm:$0xf]
    %v2741 = vld [vmem:[%s4 + $0xc] sm:$0xf]
    %v2742 = vld [vmem:[%s4 + $0x10] sm:$0xf]
    %v2743 = vld [vmem:[%s4 + $0x14] sm:$0xf]
    %v2744 = vld [vmem:[%s4 + $0x18] sm:$0xf]
    %v2745 = vld [vmem:[%s4 + $0x1c] sm:$0xf]
    %v2746 = vld [vmem:[%s4 + $0x20] sm:$0xf]
    %v2747 = vld [vmem:[%s4 + $0x24] sm:$0xf]
    %v2748 = vld [vmem:[%s4 + $0x28] sm:$0xf]
    %v2749 = vld [vmem:[%s4 + $0x2c] sm:$0xf]
    %v2750 = vld [vmem:[%s4 + $0x30] sm:$0xf]
    %v2751 = vld [vmem:[%s4 + $0x34] sm:$0xf]
    %v2752 = vld [vmem:[%s4 + $0x38] sm:$0xf]
    %v2753 = vld [vmem:[%s4 + $0x3c] sm:$0xf]
    %v2754 = vld [vmem:[%s4 + $0x40] sm:$0xf]
    %v2755 = vld [vmem:[%s4 + $0x44] sm:$0xf]
    %v2774 = vunpack.c.l.b16 %v2738
    %v2775 = vunpack.c.l.b16 %v2739
    %v2776 = vunpack.c.l.b16 %v2740
    %v2777 = vunpack.c.l.b16 %v2741
    %v2778 = vunpack.c.l.b16 %v2742
    %v2779 = vunpack.c.l.b16 %v2743
    %v2780 = vunpack.c.l.b16 %v2744
    %v2781 = vunpack.c.l.b16 %v2745
    %v2782 = vunpack.c.l.b16 %v2746
    %v2783 = vunpack.c.l.b16 %v2747
    %v2784 = vunpack.c.l.b16 %v2748
    %v2785 = vunpack.c.l.b16 %v2749
    %v2786 = vunpack.c.l.b16 %v2750
    %v2787 = vunpack.c.l.b16 %v2751
    %v2788 = vunpack.c.l.b16 %v2752
    %v2789 = vunpack.c.l.b16 %v2753
    %v2790 = vunpack.c.l.b16 %v2754
    %v2791 = vunpack.c.l.b16 %v2755
    %v2792 = vpack.c.b16 %v2775, %v2774
    %v2793 = vpack.c.b16 %v2777, %v2776
    %v2794 = vpack.c.b16 %v2779, %v2778
    %v2795 = vpack.c.b16 %v2781, %v2780
    %v2796 = vpack.c.b16 %v2783, %v2782
    %v2797 = vpack.c.b16 %v2785, %v2784
    %v2798 = vpack.c.b16 %v2787, %v2786
    %v2799 = vpack.c.b16 %v2789, %v2788
    %v2800 = vpack.c.b16 %v2791, %v2790
    %v2811 = vsel %vm567, %v1660, 0
    %v2814 = vsel %vm567, %v1661, 0
    %v2817 = vsel %vm567, %v1662, 0
    %v2820 = vsel %vm567, %v1663, 0
    %v2823 = vsel %vm567, %v1664, 0
    %v2826 = vsel %vm567, %v1665, 0
    %v2829 = vsel %vm567, %v1666, 0
    %v2832 = vsel %vm567, %v1667, 0
    %v2835 = vsel %vm567, %v1668, 0
    %v2838 = vsel %vm567, %v1669, 0
    %v2841 = vsel %vm567, %v1670, 0
    %v2844 = vsel %vm567, %v1671, 0
    %v2847 = vsel %vm567, %v1672, 0
    %v2850 = vsel %vm567, %v1673, 0
    %v2853 = vsel %vm567, %v1674, 0
    %v2855 = vsel %vm567, 0, 0
    %v2858 = vsel %vm567, %v1676, 0
    %v2861 = vsel %vm567, %v1677, 0
    %v2864 = vsel %vm567, %v1678, 0
    %v2867 = vsel %vm567, %v1679, 0
    %v2870 = vsel %vm567, %v1680, 0
    %v2873 = vsel %vm567, %v1681, 0
    %v2876 = vsel %vm567, %v1682, 0
    %v2879 = vsel %vm567, %v1683, 0
    %v2882 = vsel %vm567, %v1684, 0
    %v2885 = vsel %vm567, %v1685, 0
    %v2888 = vsel %vm567, %v1686, 0
    %v2891 = vsel %vm567, %v1687, 0
    %v2894 = vsel %vm567, %v1688, 0
    %v2897 = vsel %vm567, %v1689, 0
    %v2900 = vsel %vm567, %v1690, 0
    %2902 = vmatprep.subr.bf16.mxu0 0
    %2903 = vmatpush1.bf16.msra.mxu0 %v2792
    %2904 = vmatprep.subr.bf16.mxu0 0
    %2905 = vmatpush1.bf16.msra.mxu0 %v2793
    %2906 = vmatprep.subr.bf16.mxu0 0
    %2907 = vmatpush1.bf16.msra.mxu0 %v2794
    %2908 = vmatprep.subr.bf16.mxu0 0
    %2909 = vmatpush1.bf16.msra.mxu0 %v2795
    %2910 = vmatprep.subr.bf16.mxu0 0
    %2911 = vmatpush1.bf16.msra.mxu0 %v2796
    %2912 = vmatprep.subr.bf16.mxu0 0
    %2913 = vmatpush1.bf16.msra.mxu0 %v2797
    %2914 = vmatprep.subr.bf16.mxu0 0
    %2915 = vmatpush1.bf16.msra.mxu0 %v2798
    %2916 = vmatprep.subr.bf16.mxu0 0
    %2917 = vmatpush1.bf16.msra.mxu0 %v2799
    %2918 = vmatprep.subr.bf16.mxu0 0
    %2919 = vmatpush1.bf16.msra.mxu0 %v2800
    %2920 = vmatprep.subr.bf16.mxu0 0
    %2921 = vmatpush1.bf16.msra.mxu0 0
    %2922 = vmatprep.subr.bf16.mxu0 0
    %2923 = vmatpush1.bf16.msra.mxu0 0
    %2924 = vmatprep.subr.bf16.mxu0 0
    %2925 = vmatpush1.bf16.msra.mxu0 0
    %2926 = vmatprep.subr.bf16.mxu0 0
    %2927 = vmatpush1.bf16.msra.mxu0 0
    %2928 = vmatprep.subr.bf16.mxu0 0
    %2929 = vmatpush1.bf16.msra.mxu0 0
    %2930 = vmatprep.subr.bf16.mxu0 0
    %2931 = vmatpush1.bf16.msra.mxu0 0
    %2932 = vmatprep.subr.bf16.mxu0 0
    %2933 = vmatpush1.bf16.msra.mxu0 0
    %2934 = vmatprep.mubr.bf16.mxu0 %v2811
    %2935 = vmatmul.mubr.bf16.gmra.mrb[0].mxu0 %v2644
    %v2936 = vpop.f32.mrb[0].mxu0
    %v2937 = vadd.f32 0.0, %v2936
    %v2938 = vpop.f32.mrb[0].mxu0
    %v2939 = vpop.f32.mrb[0].mxu0
    %v2940 = vadd.f32 0.0, %v2939
    %v2941 = vpop.f32.mrb[0].mxu0
    %2942 = vmatprep.mubr.bf16.mxu0 %v2814
    %2943 = vmatmul.mubr.bf16.gmra.mrb[0].mxu0 %v2647
    %v2944 = vpop.f32.mrb[0].mxu0
    %v2945 = vadd.f32 0.0, %v2944
    %v2946 = vpop.f32.mrb[0].mxu0
    %v2947 = vpop.f32.mrb[0].mxu0
    %v2948 = vadd.f32 0.0, %v2947
    %v2949 = vpop.f32.mrb[0].mxu0
    %2950 = vmatprep.mubr.bf16.mxu0 %v2817
    %2951 = vmatmul.mubr.bf16.gmra.mrb[0].mxu0 %v2650
    %v2952 = vpop.f32.mrb[0].mxu0
    %v2953 = vadd.f32 0.0, %v2952
    %v2954 = vpop.f32.mrb[0].mxu0
    %v2955 = vpop.f32.mrb[0].mxu0
    %v2956 = vadd.f32 0.0, %v2955
    %v2957 = vpop.f32.mrb[0].mxu0
    %2958 = vmatprep.mubr.bf16.mxu0 %v2820
    %2959 = vmatmul.mubr.bf16.gmra.mrb[0].mxu0 %v2653
    %v2960 = vpop.f32.mrb[0].mxu0
    %v2961 = vadd.f32 0.0, %v2960
    %v2962 = vpop.f32.mrb[0].mxu0
    %v2963 = vpop.f32.mrb[0].mxu0
    %v2964 = vadd.f32 0.0, %v2963
    %v2965 = vpop.f32.mrb[0].mxu0
    %2966 = vmatprep.mubr.bf16.mxu0 %v2823
    %2967 = vmatmul.mubr.bf16.gmra.mrb[0].mxu0 %v2656
    %v2968 = vpop.f32.mrb[0].mxu0
    %v2969 = vadd.f32 0.0, %v2968
    %v2970 = vpop.f32.mrb[0].mxu0
    %v2971 = vpop.f32.mrb[0].mxu0
    %v2972 = vadd.f32 0.0, %v2971
    %v2973 = vpop.f32.mrb[0].mxu0
    %2974 = vmatprep.mubr.bf16.mxu0 %v2826
    %2975 = vmatmul.mubr.bf16.gmra.mrb[0].mxu0 %v2659
    %v2976 = vpop.f32.mrb[0].mxu0
    %v2977 = vadd.f32 0.0, %v2976
    %v2978 = vpop.f32.mrb[0].mxu0
    %v2979 = vpop.f32.mrb[0].mxu0
    %v2980 = vadd.f32 0.0, %v2979
    %v2981 = vpop.f32.mrb[0].mxu0
    %2982 = vmatprep.mubr.bf16.mxu0 %v2829
    %2983 = vmatmul.mubr.bf16.gmra.mrb[0].mxu0 %v2662
    %v2984 = vpop.f32.mrb[0].mxu0
    %v2985 = vadd.f32 0.0, %v2984
    %v2986 = vpop.f32.mrb[0].mxu0
    %v2987 = vpop.f32.mrb[0].mxu0
    %v2988 = vadd.f32 0.0, %v2987
    %v2989 = vpop.f32.mrb[0].mxu0
    %2990 = vmatprep.mubr.bf16.mxu0 %v2832
    %2991 = vmatmul.mubr.bf16.gmra.mrb[0].mxu0 %v2665
    %v2992 = vpop.f32.mrb[0].mxu0
    %v2993 = vadd.f32 0.0, %v2992
    %v2994 = vpop.f32.mrb[0].mxu0
    %v2995 = vpop.f32.mrb[0].mxu0
    %v2996 = vadd.f32 0.0, %v2995
    %v2997 = vpop.f32.mrb[0].mxu0
    %2998 = vmatprep.mubr.bf16.mxu0 %v2835
    %2999 = vmatmul.mubr.bf16.gmra.mrb[0].mxu0 %v2668
    %v3000 = vpop.f32.mrb[0].mxu0
    %v3001 = vadd.f32 0.0, %v3000
    %v3002 = vpop.f32.mrb[0].mxu0
    %v3003 = vpop.f32.mrb[0].mxu0
    %v3004 = vadd.f32 0.0, %v3003
    %v3005 = vpop.f32.mrb[0].mxu0
    %3006 = vmatprep.mubr.bf16.mxu0 %v2838
    %3007 = vmatmul.mubr.bf16.gmra.mrb[0].mxu0 %v2671
    %v3008 = vpop.f32.mrb[0].mxu0
    %v3009 = vadd.f32 0.0, %v3008
    %v3010 = vpop.f32.mrb[0].mxu0
    %v3011 = vpop.f32.mrb[0].mxu0
    %v3012 = vadd.f32 0.0, %v3011
    %v3013 = vpop.f32.mrb[0].mxu0
    %3014 = vmatprep.mubr.bf16.mxu0 %v2841
    %3015 = vmatmul.mubr.bf16.gmra.mrb[0].mxu0 %v2674
    %v3016 = vpop.f32.mrb[0].mxu0
    %v3017 = vadd.f32 0.0, %v3016
    %v3018 = vpop.f32.mrb[0].mxu0
    %v3019 = vpop.f32.mrb[0].mxu0
    %v3020 = vadd.f32 0.0, %v3019
    %v3021 = vpop.f32.mrb[0].mxu0
    %3022 = vmatprep.mubr.bf16.mxu0 %v2844
    %3023 = vmatmul.mubr.bf16.gmra.mrb[0].mxu0 %v2677
    %v3024 = vpop.f32.mrb[0].mxu0
    %v3025 = vadd.f32 0.0, %v3024
    %v3026 = vpop.f32.mrb[0].mxu0
    %v3027 = vpop.f32.mrb[0].mxu0
    %v3028 = vadd.f32 0.0, %v3027
    %v3029 = vpop.f32.mrb[0].mxu0
    %3030 = vmatprep.mubr.bf16.mxu0 %v2847
    %3031 = vmatmul.mubr.bf16.gmra.mrb[0].mxu0 %v2680
    %v3032 = vpop.f32.mrb[0].mxu0
    %v3033 = vadd.f32 0.0, %v3032
    %v3034 = vpop.f32.mrb[0].mxu0
    %v3035 = vpop.f32.mrb[0].mxu0
    %v3036 = vadd.f32 0.0, %v3035
    %v3037 = vpop.f32.mrb[0].mxu0
    %3038 = vmatprep.mubr.bf16.mxu0 %v2850
    %3039 = vmatmul.mubr.bf16.gmra.mrb[0].mxu0 %v2683
    %v3040 = vpop.f32.mrb[0].mxu0
    %v3041 = vadd.f32 0.0, %v3040
    %v3042 = vpop.f32.mrb[0].mxu0
    %v3043 = vpop.f32.mrb[0].mxu0
    %v3044 = vadd.f32 0.0, %v3043
    %v3045 = vpop.f32.mrb[0].mxu0
    %3046 = vmatprep.mubr.bf16.mxu0 %v2853
    %3047 = vmatmul.mubr.bf16.gmra.mrb[0].mxu0 %v2686
    %v3048 = vpop.f32.mrb[0].mxu0
    %v3049 = vadd.f32 0.0, %v3048
    %v3050 = vpop.f32.mrb[0].mxu0
    %v3051 = vpop.f32.mrb[0].mxu0
    %v3052 = vadd.f32 0.0, %v3051
    %v3053 = vpop.f32.mrb[0].mxu0
    %3054 = vmatprep.mubr.bf16.mxu0 %v2855
    %3055 = vmatmul.mubr.bf16.gmra.mrb[0].mxu0 %v2689
    %v3056 = vpop.f32.mrb[0].mxu0
    %v3057 = vadd.f32 0.0, %v3056
    %v3058 = vpop.f32.mrb[0].mxu0
    %v3059 = vpop.f32.mrb[0].mxu0
    %v3060 = vadd.f32 0.0, %v3059
    %v3061 = vpop.f32.mrb[0].mxu0
    %3062 = vmatprep.mubr.bf16.mxu0 %v2858
    %3063 = vmatmul.mubr.bf16.gmra.mrb[0].mxu0 %v2692
    %v3064 = vpop.f32.mrb[0].mxu0
    %v3065 = vadd.f32 0.0, %v3064
    %v3066 = vpop.f32.mrb[0].mxu0
    %v3067 = vpop.f32.mrb[0].mxu0
    %v3068 = vadd.f32 0.0, %v3067
    %v3069 = vpop.f32.mrb[0].mxu0
    %3070 = vmatprep.mubr.bf16.mxu0 %v2861
    %3071 = vmatmul.mubr.bf16.gmra.mrb[0].mxu0 %v2695
    %v3072 = vpop.f32.mrb[0].mxu0
    %v3073 = vadd.f32 0.0, %v3072
    %v3074 = vpop.f32.mrb[0].mxu0
    %v3075 = vpop.f32.mrb[0].mxu0
    %v3076 = vadd.f32 0.0, %v3075
    %v3077 = vpop.f32.mrb[0].mxu0
    %3078 = vmatprep.mubr.bf16.mxu0 %v2864
    %3079 = vmatmul.mubr.bf16.gmra.mrb[0].mxu0 %v2698
    %v3080 = vpop.f32.mrb[0].mxu0
    %v3081 = vadd.f32 0.0, %v3080
    %v3082 = vpop.f32.mrb[0].mxu0
    %v3083 = vpop.f32.mrb[0].mxu0
    %v3084 = vadd.f32 0.0, %v3083
    %v3085 = vpop.f32.mrb[0].mxu0
    %3086 = vmatprep.mubr.bf16.mxu0 %v2867
    %3087 = vmatmul.mubr.bf16.gmra.mrb[0].mxu0 %v2701
    %v3088 = vpop.f32.mrb[0].mxu0
    %v3089 = vadd.f32 0.0, %v3088
    %v3090 = vpop.f32.mrb[0].mxu0
    %v3091 = vpop.f32.mrb[0].mxu0
    %v3092 = vadd.f32 0.0, %v3091
    %v3093 = vpop.f32.mrb[0].mxu0
    %3094 = vmatprep.mubr.bf16.mxu0 %v2870
    %3095 = vmatmul.mubr.bf16.gmra.mrb[0].mxu0 %v2704
    %v3096 = vpop.f32.mrb[0].mxu0
    %v3097 = vadd.f32 0.0, %v3096
    %v3098 = vpop.f32.mrb[0].mxu0
    %v3099 = vpop.f32.mrb[0].mxu0
    %v3100 = vadd.f32 0.0, %v3099
    %v3101 = vpop.f32.mrb[0].mxu0
    %3102 = vmatprep.mubr.bf16.mxu0 %v2873
    %3103 = vmatmul.mubr.bf16.gmra.mrb[0].mxu0 %v2707
    %v3104 = vpop.f32.mrb[0].mxu0
    %v3105 = vadd.f32 0.0, %v3104
    %v3106 = vpop.f32.mrb[0].mxu0
    %v3107 = vpop.f32.mrb[0].mxu0
    %v3108 = vadd.f32 0.0, %v3107
    %v3109 = vpop.f32.mrb[0].mxu0
    %3110 = vmatprep.mubr.bf16.mxu0 %v2876
    %3111 = vmatmul.mubr.bf16.gmra.mrb[0].mxu0 %v2710
    %v3112 = vpop.f32.mrb[0].mxu0
    %v3113 = vadd.f32 0.0, %v3112
    %v3114 = vpop.f32.mrb[0].mxu0
    %v3115 = vpop.f32.mrb[0].mxu0
    %v3116 = vadd.f32 0.0, %v3115
    %v3117 = vpop.f32.mrb[0].mxu0
    %3118 = vmatprep.mubr.bf16.mxu0 %v2879
    %3119 = vmatmul.mubr.bf16.gmra.mrb[0].mxu0 %v2713
    %v3120 = vpop.f32.mrb[0].mxu0
    %v3121 = vadd.f32 0.0, %v3120
    %v3122 = vpop.f32.mrb[0].mxu0
    %v3123 = vpop.f32.mrb[0].mxu0
    %v3124 = vadd.f32 0.0, %v3123
    %v3125 = vpop.f32.mrb[0].mxu0
    %3126 = vmatprep.mubr.bf16.mxu0 %v2882
    %3127 = vmatmul.mubr.bf16.gmra.mrb[0].mxu0 %v2716
    %v3128 = vpop.f32.mrb[0].mxu0
    %v3129 = vadd.f32 0.0, %v3128
    %v3130 = vpop.f32.mrb[0].mxu0
    %v3131 = vpop.f32.mrb[0].mxu0
    %v3132 = vadd.f32 0.0, %v3131
    %v3133 = vpop.f32.mrb[0].mxu0
    %3134 = vmatprep.mubr.bf16.mxu0 %v2885
    %3135 = vmatmul.mubr.bf16.gmra.mrb[0].mxu0 %v2719
    %v3136 = vpop.f32.mrb[0].mxu0
    %v3137 = vadd.f32 0.0, %v3136
    %v3138 = vpop.f32.mrb[0].mxu0
    %v3139 = vpop.f32.mrb[0].mxu0
    %v3140 = vadd.f32 0.0, %v3139
    %v3141 = vpop.f32.mrb[0].mxu0
    %3142 = vmatprep.mubr.bf16.mxu0 %v2888
    %3143 = vmatmul.mubr.bf16.gmra.mrb[0].mxu0 %v2722
    %v3144 = vpop.f32.mrb[0].mxu0
    %v3145 = vadd.f32 0.0, %v3144
    %v3146 = vpop.f32.mrb[0].mxu0
    %v3147 = vpop.f32.mrb[0].mxu0
    %v3148 = vadd.f32 0.0, %v3147
    %v3149 = vpop.f32.mrb[0].mxu0
    %3150 = vmatprep.mubr.bf16.mxu0 %v2891
    %3151 = vmatmul.mubr.bf16.gmra.mrb[0].mxu0 %v2725
    %v3152 = vpop.f32.mrb[0].mxu0
    %v3153 = vadd.f32 0.0, %v3152
    %v3154 = vpop.f32.mrb[0].mxu0
    %v3155 = vpop.f32.mrb[0].mxu0
    %v3156 = vadd.f32 0.0, %v3155
    %v3157 = vpop.f32.mrb[0].mxu0
    %3158 = vmatprep.mubr.bf16.mxu0 %v2894
    %3159 = vmatmul.mubr.bf16.gmra.mrb[0].mxu0 %v2728
    %v3160 = vpop.f32.mrb[0].mxu0
    %v3161 = vadd.f32 0.0, %v3160
    %v3162 = vpop.f32.mrb[0].mxu0
    %v3163 = vpop.f32.mrb[0].mxu0
    %v3164 = vadd.f32 0.0, %v3163
    %v3165 = vpop.f32.mrb[0].mxu0
    %3166 = vmatprep.mubr.bf16.mxu0 %v2897
    %3167 = vmatmul.mubr.bf16.gmra.mrb[0].mxu0 %v2731
    %v3168 = vpop.f32.mrb[0].mxu0
    %v3169 = vadd.f32 0.0, %v3168
    %v3170 = vpop.f32.mrb[0].mxu0
    %v3171 = vpop.f32.mrb[0].mxu0
    %v3172 = vadd.f32 0.0, %v3171
    %v3173 = vpop.f32.mrb[0].mxu0
    %3174 = vmatprep.mubr.bf16.mxu0 %v2900
    %3175 = vmatmul.mubr.bf16.gmra.mrb[0].mxu0 %v2734
    %v3176 = vpop.f32.mrb[0].mxu0
    %v3177 = vadd.f32 0.0, %v3176
    %v3178 = vpop.f32.mrb[0].mxu0
    %v3179 = vpop.f32.mrb[0].mxu0
    %v3180 = vadd.f32 0.0, %v3179
    %v3181 = vpop.f32.mrb[0].mxu0
    %3182 = vmatprep.mubr.bf16.mxu0 %v2855
    %3183 = vmatmul.mubr.bf16.gmra.mrb[0].mxu0 %v2736
    %v3184 = vpop.f32.mrb[0].mxu0
    %v3185 = vadd.f32 0.0, %v3184
    %v3186 = vpop.f32.mrb[0].mxu0
    %v3187 = vpop.f32.mrb[0].mxu0
    %v3188 = vadd.f32 0.0, %v3187
    %v3189 = vpop.f32.mrb[0].mxu0
    %3190 = vdwg.mxu0
    %v3191 = vld [vmem:[%s5] sm:$0x1]
    %v3192 = vld [vmem:[%s6] sm:$0x1]
    %v3193 = vsel %vm567, %v2937, 0.0
    %v3194 = vsel %vm567, %v2940, 0.0
    %v3195 = vadd.f32 %v3193, %v3194
    %v3196 = vsel %vm567, %v2945, 0.0
    %v3197 = vadd.f32 %v3195, %v3196
    %v3198 = vsel %vm567, %v2948, 0.0
    %v3199 = vadd.f32 %v3197, %v3198
    %v3200 = vsel %vm567, %v2953, 0.0
    %v3201 = vadd.f32 %v3199, %v3200
    %v3202 = vsel %vm567, %v2956, 0.0
    %v3203 = vadd.f32 %v3201, %v3202
    %v3204 = vsel %vm567, %v2961, 0.0
    %v3205 = vadd.f32 %v3203, %v3204
    %v3206 = vsel %vm567, %v2964, 0.0
    %v3207 = vadd.f32 %v3205, %v3206
    %v3208 = vsel %vm567, %v2969, 0.0
    %v3209 = vadd.f32 %v3207, %v3208
    %v3210 = vsel %vm567, %v2972, 0.0
    %v3211 = vadd.f32 %v3209, %v3210
    %v3212 = vsel %vm567, %v2977, 0.0
    %v3213 = vadd.f32 %v3211, %v3212
    %v3214 = vsel %vm567, %v2980, 0.0
    %v3215 = vadd.f32 %v3213, %v3214
    %v3216 = vsel %vm567, %v2985, 0.0
    %v3217 = vadd.f32 %v3215, %v3216
    %v3218 = vsel %vm567, %v2988, 0.0
    %v3219 = vadd.f32 %v3217, %v3218
    %v3220 = vsel %vm567, %v2993, 0.0
    %v3221 = vadd.f32 %v3219, %v3220
    %v3222 = vsel %vm567, %v2996, 0.0
    %v3223 = vadd.f32 %v3221, %v3222
    %v3224 = vsel %vm567, %v3001, 0.0
    %v3225 = vadd.f32 %v3223, %v3224
    %v3226 = vsel %vm567, %v3004, 0.0
    %v3227 = vadd.f32 %v3225, %v3226
    %v3228 = vsel %vm567, %v3009, 0.0
    %v3229 = vadd.f32 %v3227, %v3228
    %v3230 = vsel %vm567, %v3012, 0.0
    %v3231 = vadd.f32 %v3229, %v3230
    %v3232 = vsel %vm567, %v3017, 0.0
    %v3233 = vadd.f32 %v3231, %v3232
    %v3234 = vsel %vm567, %v3020, 0.0
    %v3235 = vadd.f32 %v3233, %v3234
    %v3236 = vsel %vm567, %v3025, 0.0
    %v3237 = vadd.f32 %v3235, %v3236
    %v3238 = vsel %vm567, %v3028, 0.0
    %v3239 = vadd.f32 %v3237, %v3238
    %v3240 = vsel %vm567, %v3033, 0.0
    %v3241 = vadd.f32 %v3239, %v3240
    %v3242 = vsel %vm567, %v3036, 0.0
    %v3243 = vadd.f32 %v3241, %v3242
    %v3244 = vsel %vm567, %v3041, 0.0
    %v3245 = vadd.f32 %v3243, %v3244
    %v3246 = vsel %vm567, %v3044, 0.0
    %v3247 = vadd.f32 %v3245, %v3246
    %v3248 = vsel %vm567, %v3049, 0.0
    %v3249 = vadd.f32 %v3247, %v3248
    %v3250 = vsel %vm567, %v3052, 0.0
    %v3251 = vadd.f32 %v3249, %v3250
    %v3252 = vsel %vm567, %v3057, 0.0
    %v3253 = vadd.f32 %v3251, %v3252
    %v3254 = vsel %vm567, %v3060, 0.0
    %v3255 = vadd.f32 %v3253, %v3254
    %v3256 = vsel %vm567, %v3065, 0.0
    %v3257 = vadd.f32 %v3255, %v3256
    %v3258 = vsel %vm567, %v3068, 0.0
    %v3259 = vadd.f32 %v3257, %v3258
    %v3260 = vsel %vm567, %v3073, 0.0
    %v3261 = vadd.f32 %v3259, %v3260
    %v3262 = vsel %vm567, %v3076, 0.0
    %v3263 = vadd.f32 %v3261, %v3262
    %v3264 = vsel %vm567, %v3081, 0.0
    %v3265 = vadd.f32 %v3263, %v3264
    %v3266 = vsel %vm567, %v3084, 0.0
    %v3267 = vadd.f32 %v3265, %v3266
    %v3268 = vsel %vm567, %v3089, 0.0
    %v3269 = vadd.f32 %v3267, %v3268
    %v3270 = vsel %vm567, %v3092, 0.0
    %v3271 = vadd.f32 %v3269, %v3270
    %v3272 = vsel %vm567, %v3097, 0.0
    %v3273 = vadd.f32 %v3271, %v3272
    %v3274 = vsel %vm567, %v3100, 0.0
    %v3275 = vadd.f32 %v3273, %v3274
    %v3276 = vsel %vm567, %v3105, 0.0
    %v3277 = vadd.f32 %v3275, %v3276
    %v3278 = vsel %vm567, %v3108, 0.0
    %v3279 = vadd.f32 %v3277, %v3278
    %v3280 = vsel %vm567, %v3113, 0.0
    %v3281 = vadd.f32 %v3279, %v3280
    %v3282 = vsel %vm567, %v3116, 0.0
    %v3283 = vadd.f32 %v3281, %v3282
    %v3284 = vsel %vm567, %v3121, 0.0
    %v3285 = vadd.f32 %v3283, %v3284
    %v3286 = vsel %vm567, %v3124, 0.0
    %v3287 = vadd.f32 %v3285, %v3286
    %v3288 = vsel %vm567, %v3129, 0.0
    %v3289 = vadd.f32 %v3287, %v3288
    %v3290 = vsel %vm567, %v3132, 0.0
    %v3291 = vadd.f32 %v3289, %v3290
    %v3292 = vsel %vm567, %v3137, 0.0
    %v3293 = vadd.f32 %v3291, %v3292
    %v3294 = vsel %vm567, %v3140, 0.0
    %v3295 = vadd.f32 %v3293, %v3294
    %v3296 = vsel %vm567, %v3145, 0.0
    %v3297 = vadd.f32 %v3295, %v3296
    %v3298 = vsel %vm567, %v3148, 0.0
    %v3299 = vadd.f32 %v3297, %v3298
    %v3300 = vsel %vm567, %v3153, 0.0
    %v3301 = vadd.f32 %v3299, %v3300
    %v3302 = vsel %vm567, %v3156, 0.0
    %v3303 = vadd.f32 %v3301, %v3302
    %v3304 = vsel %vm567, %v3161, 0.0
    %v3305 = vadd.f32 %v3303, %v3304
    %v3306 = vsel %vm567, %v3164, 0.0
    %v3307 = vadd.f32 %v3305, %v3306
    %v3308 = vsel %vm567, %v3169, 0.0
    %v3309 = vadd.f32 %v3307, %v3308
    %v3310 = vsel %vm567, %v3172, 0.0
    %v3311 = vadd.f32 %v3309, %v3310
    %v3312 = vsel %vm567, %v3177, 0.0
    %v3313 = vadd.f32 %v3311, %v3312
    %v3314 = vsel %vm567, %v3180, 0.0
    %v3315 = vadd.f32 %v3313, %v3314
    %v3316 = vsel %vm567, %v3185, 0.0
    %v3317 = vadd.f32 %v3315, %v3316
    %v3318 = vsel %vm567, %v3188, 0.0
    %v3319 = vadd.f32 %v3317, %v3318
    %v3320 = vrot.slane %v3319, 4
    %v3321 = vadd.f32 %v3319, %v3320
    %v3322 = vrot.slane %v3321, 2
    %v3323 = vadd.f32 %v3321, %v3322
    %v3324 = vrot.slane %v3323, 1
    %v3325 = vadd.f32 %v3323, %v3324
    %v3326 = vmul.f32 %v3325, 0.001953125
    %v3327 = vmul.f32 %v2937, %v2937
    %v3328 = vmul.f32 %v2940, %v2940
    %v3329 = vmul.f32 %v2945, %v2945
    %v3330 = vmul.f32 %v2948, %v2948
    %v3331 = vmul.f32 %v2953, %v2953
    %v3332 = vmul.f32 %v2956, %v2956
    %v3333 = vmul.f32 %v2961, %v2961
    %v3334 = vmul.f32 %v2964, %v2964
    %v3335 = vmul.f32 %v2969, %v2969
    %v3336 = vmul.f32 %v2972, %v2972
    %v3337 = vmul.f32 %v2977, %v2977
    %v3338 = vmul.f32 %v2980, %v2980
    %v3339 = vmul.f32 %v2985, %v2985
    %v3340 = vmul.f32 %v2988, %v2988
    %v3341 = vmul.f32 %v2993, %v2993
    %v3342 = vmul.f32 %v2996, %v2996
    %v3343 = vmul.f32 %v3001, %v3001
    %v3344 = vmul.f32 %v3004, %v3004
    %v3345 = vmul.f32 %v3009, %v3009
    %v3346 = vmul.f32 %v3012, %v3012
    %v3347 = vmul.f32 %v3017, %v3017
    %v3348 = vmul.f32 %v3020, %v3020
    %v3349 = vmul.f32 %v3025, %v3025
    %v3350 = vmul.f32 %v3028, %v3028
    %v3351 = vmul.f32 %v3033, %v3033
    %v3352 = vmul.f32 %v3036, %v3036
    %v3353 = vmul.f32 %v3041, %v3041
    %v3354 = vmul.f32 %v3044, %v3044
    %v3355 = vmul.f32 %v3049, %v3049
    %v3356 = vmul.f32 %v3052, %v3052
    %v3357 = vmul.f32 %v3057, %v3057
    %v3358 = vmul.f32 %v3060, %v3060
    %v3359 = vmul.f32 %v3065, %v3065
    %v3360 = vmul.f32 %v3068, %v3068
    %v3361 = vmul.f32 %v3073, %v3073
    %v3362 = vmul.f32 %v3076, %v3076
    %v3363 = vmul.f32 %v3081, %v3081
    %v3364 = vmul.f32 %v3084, %v3084
    %v3365 = vmul.f32 %v3089, %v3089
    %v3366 = vmul.f32 %v3092, %v3092
    %v3367 = vmul.f32 %v3097, %v3097
    %v3368 = vmul.f32 %v3100, %v3100
    %v3369 = vmul.f32 %v3105, %v3105
    %v3370 = vmul.f32 %v3108, %v3108
    %v3371 = vmul.f32 %v3113, %v3113
    %v3372 = vmul.f32 %v3116, %v3116
    %v3373 = vmul.f32 %v3121, %v3121
    %v3374 = vmul.f32 %v3124, %v3124
    %v3375 = vmul.f32 %v3129, %v3129
    %v3376 = vmul.f32 %v3132, %v3132
    %v3377 = vmul.f32 %v3137, %v3137
    %v3378 = vmul.f32 %v3140, %v3140
    %v3379 = vmul.f32 %v3145, %v3145
    %v3380 = vmul.f32 %v3148, %v3148
    %v3381 = vmul.f32 %v3153, %v3153
    %v3382 = vmul.f32 %v3156, %v3156
    %v3383 = vmul.f32 %v3161, %v3161
    %v3384 = vmul.f32 %v3164, %v3164
    %v3385 = vmul.f32 %v3169, %v3169
    %v3386 = vmul.f32 %v3172, %v3172
    %v3387 = vmul.f32 %v3177, %v3177
    %v3388 = vmul.f32 %v3180, %v3180
    %v3389 = vmul.f32 %v3185, %v3185
    %v3390 = vmul.f32 %v3188, %v3188
    %v3391 = vsel %vm567, %v3327, 0.0
    %v3392 = vsel %vm567, %v3328, 0.0
    %v3393 = vadd.f32 %v3391, %v3392
    %v3394 = vsel %vm567, %v3329, 0.0
    %v3395 = vadd.f32 %v3393, %v3394
    %v3396 = vsel %vm567, %v3330, 0.0
    %v3397 = vadd.f32 %v3395, %v3396
    %v3398 = vsel %vm567, %v3331, 0.0
    %v3399 = vadd.f32 %v3397, %v3398
    %v3400 = vsel %vm567, %v3332, 0.0
    %v3401 = vadd.f32 %v3399, %v3400
    %v3402 = vsel %vm567, %v3333, 0.0
    %v3403 = vadd.f32 %v3401, %v3402
    %v3404 = vsel %vm567, %v3334, 0.0
    %v3405 = vadd.f32 %v3403, %v3404
    %v3406 = vsel %vm567, %v3335, 0.0
    %v3407 = vadd.f32 %v3405, %v3406
    %v3408 = vsel %vm567, %v3336, 0.0
    %v3409 = vadd.f32 %v3407, %v3408
    %v3410 = vsel %vm567, %v3337, 0.0
    %v3411 = vadd.f32 %v3409, %v3410
    %v3412 = vsel %vm567, %v3338, 0.0
    %v3413 = vadd.f32 %v3411, %v3412
    %v3414 = vsel %vm567, %v3339, 0.0
    %v3415 = vadd.f32 %v3413, %v3414
    %v3416 = vsel %vm567, %v3340, 0.0
    %v3417 = vadd.f32 %v3415, %v3416
    %v3418 = vsel %vm567, %v3341, 0.0
    %v3419 = vadd.f32 %v3417, %v3418
    %v3420 = vsel %vm567, %v3342, 0.0
    %v3421 = vadd.f32 %v3419, %v3420
    %v3422 = vsel %vm567, %v3343, 0.0
    %v3423 = vadd.f32 %v3421, %v3422
    %v3424 = vsel %vm567, %v3344, 0.0
    %v3425 = vadd.f32 %v3423, %v3424
    %v3426 = vsel %vm567, %v3345, 0.0
    %v3427 = vadd.f32 %v3425, %v3426
    %v3428 = vsel %vm567, %v3346, 0.0
    %v3429 = vadd.f32 %v3427, %v3428
    %v3430 = vsel %vm567, %v3347, 0.0
    %v3431 = vadd.f32 %v3429, %v3430
    %v3432 = vsel %vm567, %v3348, 0.0
    %v3433 = vadd.f32 %v3431, %v3432
    %v3434 = vsel %vm567, %v3349, 0.0
    %v3435 = vadd.f32 %v3433, %v3434
    %v3436 = vsel %vm567, %v3350, 0.0
    %v3437 = vadd.f32 %v3435, %v3436
    %v3438 = vsel %vm567, %v3351, 0.0
    %v3439 = vadd.f32 %v3437, %v3438
    %v3440 = vsel %vm567, %v3352, 0.0
    %v3441 = vadd.f32 %v3439, %v3440
    %v3442 = vsel %vm567, %v3353, 0.0
    %v3443 = vadd.f32 %v3441, %v3442
    %v3444 = vsel %vm567, %v3354, 0.0
    %v3445 = vadd.f32 %v3443, %v3444
    %v3446 = vsel %vm567, %v3355, 0.0
    %v3447 = vadd.f32 %v3445, %v3446
    %v3448 = vsel %vm567, %v3356, 0.0
    %v3449 = vadd.f32 %v3447, %v3448
    %v3450 = vsel %vm567, %v3357, 0.0
    %v3451 = vadd.f32 %v3449, %v3450
    %v3452 = vsel %vm567, %v3358, 0.0
    %v3453 = vadd.f32 %v3451, %v3452
    %v3454 = vsel %vm567, %v3359, 0.0
    %v3455 = vadd.f32 %v3453, %v3454
    %v3456 = vsel %vm567, %v3360, 0.0
    %v3457 = vadd.f32 %v3455, %v3456
    %v3458 = vsel %vm567, %v3361, 0.0
    %v3459 = vadd.f32 %v3457, %v3458
    %v3460 = vsel %vm567, %v3362, 0.0
    %v3461 = vadd.f32 %v3459, %v3460
    %v3462 = vsel %vm567, %v3363, 0.0
    %v3463 = vadd.f32 %v3461, %v3462
    %v3464 = vsel %vm567, %v3364, 0.0
    %v3465 = vadd.f32 %v3463, %v3464
    %v3466 = vsel %vm567, %v3365, 0.0
    %v3467 = vadd.f32 %v3465, %v3466
    %v3468 = vsel %vm567, %v3366, 0.0
    %v3469 = vadd.f32 %v3467, %v3468
    %v3470 = vsel %vm567, %v3367, 0.0
    %v3471 = vadd.f32 %v3469, %v3470
    %v3472 = vsel %vm567, %v3368, 0.0
    %v3473 = vadd.f32 %v3471, %v3472
    %v3474 = vsel %vm567, %v3369, 0.0
    %v3475 = vadd.f32 %v3473, %v3474
    %v3476 = vsel %vm567, %v3370, 0.0
    %v3477 = vadd.f32 %v3475, %v3476
    %v3478 = vsel %vm567, %v3371, 0.0
    %v3479 = vadd.f32 %v3477, %v3478
    %v3480 = vsel %vm567, %v3372, 0.0
    %v3481 = vadd.f32 %v3479, %v3480
    %v3482 = vsel %vm567, %v3373, 0.0
    %v3483 = vadd.f32 %v3481, %v3482
    %v3484 = vsel %vm567, %v3374, 0.0
    %v3485 = vadd.f32 %v3483, %v3484
    %v3486 = vsel %vm567, %v3375, 0.0
    %v3487 = vadd.f32 %v3485, %v3486
    %v3488 = vsel %vm567, %v3376, 0.0
    %v3489 = vadd.f32 %v3487, %v3488
    %v3490 = vsel %vm567, %v3377, 0.0
    %v3491 = vadd.f32 %v3489, %v3490
    %v3492 = vsel %vm567, %v3378, 0.0
    %v3493 = vadd.f32 %v3491, %v3492
    %v3494 = vsel %vm567, %v3379, 0.0
    %v3495 = vadd.f32 %v3493, %v3494
    %v3496 = vsel %vm567, %v3380, 0.0
    %v3497 = vadd.f32 %v3495, %v3496
    %v3498 = vsel %vm567, %v3381, 0.0
    %v3499 = vadd.f32 %v3497, %v3498
    %v3500 = vsel %vm567, %v3382, 0.0
    %v3501 = vadd.f32 %v3499, %v3500
    %v3502 = vsel %vm567, %v3383, 0.0
    %v3503 = vadd.f32 %v3501, %v3502
    %v3504 = vsel %vm567, %v3384, 0.0
    %v3505 = vadd.f32 %v3503, %v3504
    %v3506 = vsel %vm567, %v3385, 0.0
    %v3507 = vadd.f32 %v3505, %v3506
    %v3508 = vsel %vm567, %v3386, 0.0
    %v3509 = vadd.f32 %v3507, %v3508
    %v3510 = vsel %vm567, %v3387, 0.0
    %v3511 = vadd.f32 %v3509, %v3510
    %v3512 = vsel %vm567, %v3388, 0.0
    %v3513 = vadd.f32 %v3511, %v3512
    %v3514 = vsel %vm567, %v3389, 0.0
    %v3515 = vadd.f32 %v3513, %v3514
    %v3516 = vsel %vm567, %v3390, 0.0
    %v3517 = vadd.f32 %v3515, %v3516
    %v3518 = vrot.slane %v3517, 4
    %v3519 = vadd.f32 %v3517, %v3518
    %v3520 = vrot.slane %v3519, 2
    %v3521 = vadd.f32 %v3519, %v3520
    %v3522 = vrot.slane %v3521, 1
    %v3523 = vadd.f32 %v3521, %v3522
    %v3524 = vmul.f32 %v3523, 0.001953125
    %v3525 = vmul.f32 %v3326, %v3326
    %v3526 = vsub.f32 %v3524, %v3525
    %v3527 = vmax.f32 %v3526, 0.0
    %v3528 = vsub.f32 %v2937, %v3326
    %v3529 = vsub.f32 %v2940, %v3326
    %v3530 = vsub.f32 %v2945, %v3326
    %v3531 = vsub.f32 %v2948, %v3326
    %v3532 = vsub.f32 %v2953, %v3326
    %v3533 = vsub.f32 %v2956, %v3326
    %v3534 = vsub.f32 %v2961, %v3326
    %v3535 = vsub.f32 %v2964, %v3326
    %v3536 = vsub.f32 %v2969, %v3326
    %v3537 = vsub.f32 %v2972, %v3326
    %v3538 = vsub.f32 %v2977, %v3326
    %v3539 = vsub.f32 %v2980, %v3326
    %v3540 = vsub.f32 %v2985, %v3326
    %v3541 = vsub.f32 %v2988, %v3326
    %v3542 = vsub.f32 %v2993, %v3326
    %v3543 = vsub.f32 %v2996, %v3326
    %v3544 = vsub.f32 %v3001, %v3326
    %v3545 = vsub.f32 %v3004, %v3326
    %v3546 = vsub.f32 %v3009, %v3326
    %v3547 = vsub.f32 %v3012, %v3326
    %v3548 = vsub.f32 %v3017, %v3326
    %v3549 = vsub.f32 %v3020, %v3326
    %v3550 = vsub.f32 %v3025, %v3326
    %v3551 = vsub.f32 %v3028, %v3326
    %v3552 = vsub.f32 %v3033, %v3326
    %v3553 = vsub.f32 %v3036, %v3326
    %v3554 = vsub.f32 %v3041, %v3326
    %v3555 = vsub.f32 %v3044, %v3326
    %v3556 = vsub.f32 %v3049, %v3326
    %v3557 = vsub.f32 %v3052, %v3326
    %v3558 = vsub.f32 %v3057, %v3326
    %v3559 = vsub.f32 %v3060, %v3326
    %v3560 = vsub.f32 %v3065, %v3326
    %v3561 = vsub.f32 %v3068, %v3326
    %v3562 = vsub.f32 %v3073, %v3326
    %v3563 = vsub.f32 %v3076, %v3326
    %v3564 = vsub.f32 %v3081, %v3326
    %v3565 = vsub.f32 %v3084, %v3326
    %v3566 = vsub.f32 %v3089, %v3326
    %v3567 = vsub.f32 %v3092, %v3326
    %v3568 = vsub.f32 %v3097, %v3326
    %v3569 = vsub.f32 %v3100, %v3326
    %v3570 = vsub.f32 %v3105, %v3326
    %v3571 = vsub.f32 %v3108, %v3326
    %v3572 = vsub.f32 %v3113, %v3326
    %v3573 = vsub.f32 %v3116, %v3326
    %v3574 = vsub.f32 %v3121, %v3326
    %v3575 = vsub.f32 %v3124, %v3326
    %v3576 = vsub.f32 %v3129, %v3326
    %v3577 = vsub.f32 %v3132, %v3326
    %v3578 = vsub.f32 %v3137, %v3326
    %v3579 = vsub.f32 %v3140, %v3326
    %v3580 = vsub.f32 %v3145, %v3326
    %v3581 = vsub.f32 %v3148, %v3326
    %v3582 = vsub.f32 %v3153, %v3326
    %v3583 = vsub.f32 %v3156, %v3326
    %v3584 = vsub.f32 %v3161, %v3326
    %v3585 = vsub.f32 %v3164, %v3326
    %v3586 = vsub.f32 %v3169, %v3326
    %v3587 = vsub.f32 %v3172, %v3326
    %v3588 = vsub.f32 %v3177, %v3326
    %v3589 = vsub.f32 %v3180, %v3326
    %v3590 = vsub.f32 %v3185, %v3326
    %v3591 = vsub.f32 %v3188, %v3326
    %v3592 = vadd.f32 %v3527, 1e-05
    %v3593 = vrsqrt.pop %v3592
    %v3594 = vmul.f32 %v3528, %v3593
    %v3595 = vmul.f32 %v3529, %v3593
    %v3596 = vmul.f32 %v3530, %v3593
    %v3597 = vmul.f32 %v3531, %v3593
    %v3598 = vmul.f32 %v3532, %v3593
    %v3599 = vmul.f32 %v3533, %v3593
    %v3600 = vmul.f32 %v3534, %v3593
    %v3601 = vmul.f32 %v3535, %v3593
    %v3602 = vmul.f32 %v3536, %v3593
    %v3603 = vmul.f32 %v3537, %v3593
    %v3604 = vmul.f32 %v3538, %v3593
    %v3605 = vmul.f32 %v3539, %v3593
    %v3606 = vmul.f32 %v3540, %v3593
    %v3607 = vmul.f32 %v3541, %v3593
    %v3608 = vmul.f32 %v3542, %v3593
    %v3609 = vmul.f32 %v3543, %v3593
    %v3610 = vmul.f32 %v3544, %v3593
    %v3611 = vmul.f32 %v3545, %v3593
    %v3612 = vmul.f32 %v3546, %v3593
    %v3613 = vmul.f32 %v3547, %v3593
    %v3614 = vmul.f32 %v3548, %v3593
    %v3615 = vmul.f32 %v3549, %v3593
    %v3616 = vmul.f32 %v3550, %v3593
    %v3617 = vmul.f32 %v3551, %v3593
    %v3618 = vmul.f32 %v3552, %v3593
    %v3619 = vmul.f32 %v3553, %v3593
    %v3620 = vmul.f32 %v3554, %v3593
    %v3621 = vmul.f32 %v3555, %v3593
    %v3622 = vmul.f32 %v3556, %v3593
    %v3623 = vmul.f32 %v3557, %v3593
    %v3624 = vmul.f32 %v3558, %v3593
    %v3625 = vmul.f32 %v3559, %v3593
    %v3626 = vmul.f32 %v3560, %v3593
    %v3627 = vmul.f32 %v3561, %v3593
    %v3628 = vmul.f32 %v3562, %v3593
    %v3629 = vmul.f32 %v3563, %v3593
    %v3630 = vmul.f32 %v3564, %v3593
    %v3631 = vmul.f32 %v3565, %v3593
    %v3632 = vmul.f32 %v3566, %v3593
    %v3633 = vmul.f32 %v3567, %v3593
    %v3634 = vmul.f32 %v3568, %v3593
    %v3635 = vmul.f32 %v3569, %v3593
    %v3636 = vmul.f32 %v3570, %v3593
    %v3637 = vmul.f32 %v3571, %v3593
    %v3638 = vmul.f32 %v3572, %v3593
    %v3639 = vmul.f32 %v3573, %v3593
    %v3640 = vmul.f32 %v3574, %v3593
    %v3641 = vmul.f32 %v3575, %v3593
    %v3642 = vmul.f32 %v3576, %v3593
    %v3643 = vmul.f32 %v3577, %v3593
    %v3644 = vmul.f32 %v3578, %v3593
    %v3645 = vmul.f32 %v3579, %v3593
    %v3646 = vmul.f32 %v3580, %v3593
    %v3647 = vmul.f32 %v3581, %v3593
    %v3648 = vmul.f32 %v3582, %v3593
    %v3649 = vmul.f32 %v3583, %v3593
    %v3650 = vmul.f32 %v3584, %v3593
    %v3651 = vmul.f32 %v3585, %v3593
    %v3652 = vmul.f32 %v3586, %v3593
    %v3653 = vmul.f32 %v3587, %v3593
    %v3654 = vmul.f32 %v3588, %v3593
    %v3655 = vmul.f32 %v3589, %v3593
    %v3656 = vmul.f32 %v3590, %v3593
    %v3657 = vmul.f32 %v3591, %v3593
    %v3659 = vlaneseq
    %v3660 = vshrl.u32 %v3659, 7
    %v3661 = vsub.s32 0, %v3660
    %v3662 = vrot.slane %v3191, %v3661
    %v3664 = vmul.f32 %v3594, %v3662
    %v3665 = vmul.f32 %v3595, %v3662
    %v3666 = vmul.f32 %v3596, %v3662
    %v3667 = vmul.f32 %v3597, %v3662
    %v3668 = vmul.f32 %v3598, %v3662
    %v3669 = vmul.f32 %v3599, %v3662
    %v3670 = vmul.f32 %v3600, %v3662
    %v3671 = vmul.f32 %v3601, %v3662
    %v3672 = vmul.f32 %v3602, %v3662
    %v3673 = vmul.f32 %v3603, %v3662
    %v3674 = vmul.f32 %v3604, %v3662
    %v3675 = vmul.f32 %v3605, %v3662
    %v3676 = vmul.f32 %v3606, %v3662
    %v3677 = vmul.f32 %v3607, %v3662
    %v3678 = vmul.f32 %v3608, %v3662
    %v3679 = vmul.f32 %v3609, %v3662
    %v3680 = vmul.f32 %v3610, %v3662
    %v3681 = vmul.f32 %v3611, %v3662
    %v3682 = vmul.f32 %v3612, %v3662
    %v3683 = vmul.f32 %v3613, %v3662
    %v3684 = vmul.f32 %v3614, %v3662
    %v3685 = vmul.f32 %v3615, %v3662
    %v3686 = vmul.f32 %v3616, %v3662
    %v3687 = vmul.f32 %v3617, %v3662
    %v3688 = vmul.f32 %v3618, %v3662
    %v3689 = vmul.f32 %v3619, %v3662
    %v3690 = vmul.f32 %v3620, %v3662
    %v3691 = vmul.f32 %v3621, %v3662
    %v3692 = vmul.f32 %v3622, %v3662
    %v3693 = vmul.f32 %v3623, %v3662
    %v3694 = vmul.f32 %v3624, %v3662
    %v3695 = vmul.f32 %v3625, %v3662
    %v3696 = vmul.f32 %v3626, %v3662
    %v3697 = vmul.f32 %v3627, %v3662
    %v3698 = vmul.f32 %v3628, %v3662
    %v3699 = vmul.f32 %v3629, %v3662
    %v3700 = vmul.f32 %v3630, %v3662
    %v3701 = vmul.f32 %v3631, %v3662
    %v3702 = vmul.f32 %v3632, %v3662
    %v3703 = vmul.f32 %v3633, %v3662
    %v3704 = vmul.f32 %v3634, %v3662
    %v3705 = vmul.f32 %v3635, %v3662
    %v3706 = vmul.f32 %v3636, %v3662
    %v3707 = vmul.f32 %v3637, %v3662
    %v3708 = vmul.f32 %v3638, %v3662
    %v3709 = vmul.f32 %v3639, %v3662
    %v3710 = vmul.f32 %v3640, %v3662
    %v3711 = vmul.f32 %v3641, %v3662
    %v3712 = vmul.f32 %v3642, %v3662
    %v3713 = vmul.f32 %v3643, %v3662
    %v3714 = vmul.f32 %v3644, %v3662
    %v3715 = vmul.f32 %v3645, %v3662
    %v3716 = vmul.f32 %v3646, %v3662
    %v3717 = vmul.f32 %v3647, %v3662
    %v3718 = vmul.f32 %v3648, %v3662
    %v3719 = vmul.f32 %v3649, %v3662
    %v3720 = vmul.f32 %v3650, %v3662
    %v3721 = vmul.f32 %v3651, %v3662
    %v3722 = vmul.f32 %v3652, %v3662
    %v3723 = vmul.f32 %v3653, %v3662
    %v3724 = vmul.f32 %v3654, %v3662
    %v3725 = vmul.f32 %v3655, %v3662
    %v3726 = vmul.f32 %v3656, %v3662
    %v3727 = vmul.f32 %v3657, %v3662
    %v3729 = vlaneseq
    %v3730 = vshrl.u32 %v3729, 7
    %v3731 = vsub.s32 0, %v3730
    %v3732 = vrot.slane %v3192, %v3731
    %v3734 = vadd.f32 %v3664, %v3732
    %v3735 = vadd.f32 %v3665, %v3732
    %v3736 = vadd.f32 %v3666, %v3732
    %v3737 = vadd.f32 %v3667, %v3732
    %v3738 = vadd.f32 %v3668, %v3732
    %v3739 = vadd.f32 %v3669, %v3732
    %v3740 = vadd.f32 %v3670, %v3732
    %v3741 = vadd.f32 %v3671, %v3732
    %v3742 = vadd.f32 %v3672, %v3732
    %v3743 = vadd.f32 %v3673, %v3732
    %v3744 = vadd.f32 %v3674, %v3732
    %v3745 = vadd.f32 %v3675, %v3732
    %v3746 = vadd.f32 %v3676, %v3732
    %v3747 = vadd.f32 %v3677, %v3732
    %v3748 = vadd.f32 %v3678, %v3732
    %v3749 = vadd.f32 %v3679, %v3732
    %v3750 = vadd.f32 %v3680, %v3732
    %v3751 = vadd.f32 %v3681, %v3732
    %v3752 = vadd.f32 %v3682, %v3732
    %v3753 = vadd.f32 %v3683, %v3732
    %v3754 = vadd.f32 %v3684, %v3732
    %v3755 = vadd.f32 %v3685, %v3732
    %v3756 = vadd.f32 %v3686, %v3732
    %v3757 = vadd.f32 %v3687, %v3732
    %v3758 = vadd.f32 %v3688, %v3732
    %v3759 = vadd.f32 %v3689, %v3732
    %v3760 = vadd.f32 %v3690, %v3732
    %v3761 = vadd.f32 %v3691, %v3732
    %v3762 = vadd.f32 %v3692, %v3732
    %v3763 = vadd.f32 %v3693, %v3732
    %v3764 = vadd.f32 %v3694, %v3732
    %v3765 = vadd.f32 %v3695, %v3732
    %v3766 = vadd.f32 %v3696, %v3732
    %v3767 = vadd.f32 %v3697, %v3732
    %v3768 = vadd.f32 %v3698, %v3732
    %v3769 = vadd.f32 %v3699, %v3732
    %v3770 = vadd.f32 %v3700, %v3732
    %v3771 = vadd.f32 %v3701, %v3732
    %v3772 = vadd.f32 %v3702, %v3732
    %v3773 = vadd.f32 %v3703, %v3732
    %v3774 = vadd.f32 %v3704, %v3732
    %v3775 = vadd.f32 %v3705, %v3732
    %v3776 = vadd.f32 %v3706, %v3732
    %v3777 = vadd.f32 %v3707, %v3732
    %v3778 = vadd.f32 %v3708, %v3732
    %v3779 = vadd.f32 %v3709, %v3732
    %v3780 = vadd.f32 %v3710, %v3732
    %v3781 = vadd.f32 %v3711, %v3732
    %v3782 = vadd.f32 %v3712, %v3732
    %v3783 = vadd.f32 %v3713, %v3732
    %v3784 = vadd.f32 %v3714, %v3732
    %v3785 = vadd.f32 %v3715, %v3732
    %v3786 = vadd.f32 %v3716, %v3732
    %v3787 = vadd.f32 %v3717, %v3732
    %v3788 = vadd.f32 %v3718, %v3732
    %v3789 = vadd.f32 %v3719, %v3732
    %v3790 = vadd.f32 %v3720, %v3732
    %v3791 = vadd.f32 %v3721, %v3732
    %v3792 = vadd.f32 %v3722, %v3732
    %v3793 = vadd.f32 %v3723, %v3732
    %v3794 = vadd.f32 %v3724, %v3732
    %v3795 = vadd.f32 %v3725, %v3732
    %v3796 = vadd.f32 %v3726, %v3732
    %v3797 = vadd.f32 %v3727, %v3732
    %v3798 = vmax.f32 %v3734, 0.0
    %v3799 = vmax.f32 %v3735, 0.0
    %v3800 = vmax.f32 %v3736, 0.0
    %v3801 = vmax.f32 %v3737, 0.0
    %v3802 = vmax.f32 %v3738, 0.0
    %v3803 = vmax.f32 %v3739, 0.0
    %v3804 = vmax.f32 %v3740, 0.0
    %v3805 = vmax.f32 %v3741, 0.0
    %v3806 = vmax.f32 %v3742, 0.0
    %v3807 = vmax.f32 %v3743, 0.0
    %v3808 = vmax.f32 %v3744, 0.0
    %v3809 = vmax.f32 %v3745, 0.0
    %v3810 = vmax.f32 %v3746, 0.0
    %v3811 = vmax.f32 %v3747, 0.0
    %v3812 = vmax.f32 %v3748, 0.0
    %v3813 = vmax.f32 %v3749, 0.0
    %v3814 = vmax.f32 %v3750, 0.0
    %v3815 = vmax.f32 %v3751, 0.0
    %v3816 = vmax.f32 %v3752, 0.0
    %v3817 = vmax.f32 %v3753, 0.0
    %v3818 = vmax.f32 %v3754, 0.0
    %v3819 = vmax.f32 %v3755, 0.0
    %v3820 = vmax.f32 %v3756, 0.0
    %v3821 = vmax.f32 %v3757, 0.0
    %v3822 = vmax.f32 %v3758, 0.0
    %v3823 = vmax.f32 %v3759, 0.0
    %v3824 = vmax.f32 %v3760, 0.0
    %v3825 = vmax.f32 %v3761, 0.0
    %v3826 = vmax.f32 %v3762, 0.0
    %v3827 = vmax.f32 %v3763, 0.0
    %v3828 = vmax.f32 %v3764, 0.0
    %v3829 = vmax.f32 %v3765, 0.0
    %v3830 = vmax.f32 %v3766, 0.0
    %v3831 = vmax.f32 %v3767, 0.0
    %v3832 = vmax.f32 %v3768, 0.0
    %v3833 = vmax.f32 %v3769, 0.0
    %v3834 = vmax.f32 %v3770, 0.0
    %v3835 = vmax.f32 %v3771, 0.0
    %v3836 = vmax.f32 %v3772, 0.0
    %v3837 = vmax.f32 %v3773, 0.0
    %v3838 = vmax.f32 %v3774, 0.0
    %v3839 = vmax.f32 %v3775, 0.0
    %v3840 = vmax.f32 %v3776, 0.0
    %v3841 = vmax.f32 %v3777, 0.0
    %v3842 = vmax.f32 %v3778, 0.0
    %v3843 = vmax.f32 %v3779, 0.0
    %v3844 = vmax.f32 %v3780, 0.0
    %v3845 = vmax.f32 %v3781, 0.0
    %v3846 = vmax.f32 %v3782, 0.0
    %v3847 = vmax.f32 %v3783, 0.0
    %v3848 = vmax.f32 %v3784, 0.0
    %v3849 = vmax.f32 %v3785, 0.0
    %v3850 = vmax.f32 %v3786, 0.0
    %v3851 = vmax.f32 %v3787, 0.0
    %v3852 = vmax.f32 %v3788, 0.0
    %v3853 = vmax.f32 %v3789, 0.0
    %v3854 = vmax.f32 %v3790, 0.0
    %v3855 = vmax.f32 %v3791, 0.0
    %v3856 = vmax.f32 %v3792, 0.0
    %v3857 = vmax.f32 %v3793, 0.0
    %v3858 = vmax.f32 %v3794, 0.0
    %v3859 = vmax.f32 %v3795, 0.0
    %v3860 = vmax.f32 %v3796, 0.0
    %v3861 = vmax.f32 %v3797, 0.0
    %v3862 = vpack.c.bf16 %v3799, %v3798
    %v3863 = vpack.c.bf16 %v3801, %v3800
    %v3864 = vpack.c.bf16 %v3803, %v3802
    %v3865 = vpack.c.bf16 %v3805, %v3804
    %v3866 = vpack.c.bf16 %v3807, %v3806
    %v3867 = vpack.c.bf16 %v3809, %v3808
    %v3868 = vpack.c.bf16 %v3811, %v3810
    %v3869 = vpack.c.bf16 %v3813, %v3812
    %v3870 = vpack.c.bf16 %v3815, %v3814
    %v3871 = vpack.c.bf16 %v3817, %v3816
    %v3872 = vpack.c.bf16 %v3819, %v3818
    %v3873 = vpack.c.bf16 %v3821, %v3820
    %v3874 = vpack.c.bf16 %v3823, %v3822
    %v3875 = vpack.c.bf16 %v3825, %v3824
    %v3876 = vpack.c.bf16 %v3827, %v3826
    %v3877 = vpack.c.bf16 %v3829, %v3828
    %v3878 = vpack.c.bf16 %v3831, %v3830
    %v3879 = vpack.c.bf16 %v3833, %v3832
    %v3880 = vpack.c.bf16 %v3835, %v3834
    %v3881 = vpack.c.bf16 %v3837, %v3836
    %v3882 = vpack.c.bf16 %v3839, %v3838
    %v3883 = vpack.c.bf16 %v3841, %v3840
    %v3884 = vpack.c.bf16 %v3843, %v3842
    %v3885 = vpack.c.bf16 %v3845, %v3844
    %v3886 = vpack.c.bf16 %v3847, %v3846
    %v3887 = vpack.c.bf16 %v3849, %v3848
    %v3888 = vpack.c.bf16 %v3851, %v3850
    %v3889 = vpack.c.bf16 %v3853, %v3852
    %v3890 = vpack.c.bf16 %v3855, %v3854
    %v3891 = vpack.c.bf16 %v3857, %v3856
    %v3892 = vpack.c.bf16 %v3859, %v3858
    %v3893 = vpack.c.bf16 %v3861, %v3860
    %v3894 = vld [vmem:[%s7] sm:$0xf]
    %v3895 = vld [vmem:[%s7 + $0x4] sm:$0xf]
    %v3898 = vunpack.c.l.b16 %v3894
    %v3899 = vunpack.c.l.b16 %v3895
    %v3900 = vpack.c.b16 %v3899, %v3898
    %v3903 = vsel %vm567, %v3862, 0
    %v3906 = vsel %vm567, %v3863, 0
    %v3909 = vsel %vm567, %v3864, 0
    %v3912 = vsel %vm567, %v3865, 0
    %v3915 = vsel %vm567, %v3866, 0
    %v3918 = vsel %vm567, %v3867, 0
    %v3921 = vsel %vm567, %v3868, 0
    %v3924 = vsel %vm567, %v3869, 0
    %v3927 = vsel %vm567, %v3870, 0
    %v3930 = vsel %vm567, %v3871, 0
    %v3933 = vsel %vm567, %v3872, 0
    %v3936 = vsel %vm567, %v3873, 0
    %v3939 = vsel %vm567, %v3874, 0
    %v3942 = vsel %vm567, %v3875, 0
    %v3945 = vsel %vm567, %v3876, 0
    %v3948 = vsel %vm567, %v3877, 0
    %v3951 = vsel %vm567, %v3878, 0
    %v3954 = vsel %vm567, %v3879, 0
    %v3957 = vsel %vm567, %v3880, 0
    %v3960 = vsel %vm567, %v3881, 0
    %v3963 = vsel %vm567, %v3882, 0
    %v3966 = vsel %vm567, %v3883, 0
    %v3969 = vsel %vm567, %v3884, 0
    %v3972 = vsel %vm567, %v3885, 0
    %v3975 = vsel %vm567, %v3886, 0
    %v3978 = vsel %vm567, %v3887, 0
    %v3981 = vsel %vm567, %v3888, 0
    %v3984 = vsel %vm567, %v3889, 0
    %v3987 = vsel %vm567, %v3890, 0
    %v3990 = vsel %vm567, %v3891, 0
    %v3993 = vsel %vm567, %v3892, 0
    %v3996 = vsel %vm567, %v3893, 0
    %3998 = vmatprep.subr.bf16.mxu0 0
    %3999 = vmatpush1.bf16.msra.mxu0 %v3900
    %4000 = vmatprep.subr.bf16.mxu0 0
    %4001 = vmatpush1.bf16.msra.mxu0 0
    %4002 = vmatprep.subr.bf16.mxu0 0
    %4003 = vmatpush1.bf16.msra.mxu0 0
    %4004 = vmatprep.subr.bf16.mxu0 0
    %4005 = vmatpush1.bf16.msra.mxu0 0
    %4006 = vmatprep.subr.bf16.mxu0 0
    %4007 = vmatpush1.bf16.msra.mxu0 0
    %4008 = vmatprep.subr.bf16.mxu0 0
    %4009 = vmatpush1.bf16.msra.mxu0 0
    %4010 = vmatprep.subr.bf16.mxu0 0
    %4011 = vmatpush1.bf16.msra.mxu0 0
    %4012 = vmatprep.subr.bf16.mxu0 0
    %4013 = vmatpush1.bf16.msra.mxu0 0
    %4014 = vmatprep.subr.bf16.mxu0 0
    %4015 = vmatpush1.bf16.msra.mxu0 0
    %4016 = vmatprep.subr.bf16.mxu0 0
    %4017 = vmatpush1.bf16.msra.mxu0 0
    %4018 = vmatprep.subr.bf16.mxu0 0
    %4019 = vmatpush1.bf16.msra.mxu0 0
    %4020 = vmatprep.subr.bf16.mxu0 0
    %4021 = vmatpush1.bf16.msra.mxu0 0
    %4022 = vmatprep.subr.bf16.mxu0 0
    %4023 = vmatpush1.bf16.msra.mxu0 0
    %4024 = vmatprep.subr.bf16.mxu0 0
    %4025 = vmatpush1.bf16.msra.mxu0 0
    %4026 = vmatprep.subr.bf16.mxu0 0
    %4027 = vmatpush1.bf16.msra.mxu0 0
    %4028 = vmatprep.subr.bf16.mxu0 0
    %4029 = vmatpush1.bf16.msra.mxu0 0
    %4030 = vmatprep.mubr.bf16.mxu0 0
    %4031 = vmatmul.mubr.bf16.gmra.mrb[0].mxu0 %v3903
    %v4032 = vpop.f32.mrb[0].mxu0
    %v4033 = vadd.f32 0.0, %v4032
    %v4034 = vpop.f32.mrb[0].mxu0
    %v4035 = vpop.f32.mrb[0].mxu0
    %v4036 = vadd.f32 0.0, %v4035
    %v4037 = vpop.f32.mrb[0].mxu0
    %4038 = vmatprep.mubr.bf16.mxu0 0
    %4039 = vmatmul.mubr.bf16.gmra.mrb[0].mxu0 %v3906
    %v4040 = vpop.f32.mrb[0].mxu0
    %v4041 = vadd.f32 0.0, %v4040
    %v4042 = vpop.f32.mrb[0].mxu0
    %v4043 = vpop.f32.mrb[0].mxu0
    %v4044 = vadd.f32 0.0, %v4043
    %v4045 = vpop.f32.mrb[0].mxu0
    %4046 = vmatprep.mubr.bf16.mxu0 0
    %4047 = vmatmul.mubr.bf16.gmra.mrb[0].mxu0 %v3909
    %v4048 = vpop.f32.mrb[0].mxu0
    %v4049 = vadd.f32 0.0, %v4048
    %v4050 = vpop.f32.mrb[0].mxu0
    %v4051 = vpop.f32.mrb[0].mxu0
    %v4052 = vadd.f32 0.0, %v4051
    %v4053 = vpop.f32.mrb[0].mxu0
    %4054 = vmatprep.mubr.bf16.mxu0 0
    %4055 = vmatmul.mubr.bf16.gmra.mrb[0].mxu0 %v3912
    %v4056 = vpop.f32.mrb[0].mxu0
    %v4057 = vadd.f32 0.0, %v4056
    %v4058 = vpop.f32.mrb[0].mxu0
    %v4059 = vpop.f32.mrb[0].mxu0
    %v4060 = vadd.f32 0.0, %v4059
    %v4061 = vpop.f32.mrb[0].mxu0
    %4062 = vmatprep.mubr.bf16.mxu0 0
    %4063 = vmatmul.mubr.bf16.gmra.mrb[0].mxu0 %v3915
    %v4064 = vpop.f32.mrb[0].mxu0
    %v4065 = vadd.f32 0.0, %v4064
    %v4066 = vpop.f32.mrb[0].mxu0
    %v4067 = vpop.f32.mrb[0].mxu0
    %v4068 = vadd.f32 0.0, %v4067
    %v4069 = vpop.f32.mrb[0].mxu0
    %4070 = vmatprep.mubr.bf16.mxu0 0
    %4071 = vmatmul.mubr.bf16.gmra.mrb[0].mxu0 %v3918
    %v4072 = vpop.f32.mrb[0].mxu0
    %v4073 = vadd.f32 0.0, %v4072
    %v4074 = vpop.f32.mrb[0].mxu0
    %v4075 = vpop.f32.mrb[0].mxu0
    %v4076 = vadd.f32 0.0, %v4075
    %v4077 = vpop.f32.mrb[0].mxu0
    %4078 = vmatprep.mubr.bf16.mxu0 0
    %4079 = vmatmul.mubr.bf16.gmra.mrb[0].mxu0 %v3921
    %v4080 = vpop.f32.mrb[0].mxu0
    %v4081 = vadd.f32 0.0, %v4080
    %v4082 = vpop.f32.mrb[0].mxu0
    %v4083 = vpop.f32.mrb[0].mxu0
    %v4084 = vadd.f32 0.0, %v4083
    %v4085 = vpop.f32.mrb[0].mxu0
    %4086 = vmatprep.mubr.bf16.mxu0 0
    %4087 = vmatmul.mubr.bf16.gmra.mrb[0].mxu0 %v3924
    %v4088 = vpop.f32.mrb[0].mxu0
    %v4089 = vadd.f32 0.0, %v4088
    %v4090 = vpop.f32.mrb[0].mxu0
    %v4091 = vpop.f32.mrb[0].mxu0
    %v4092 = vadd.f32 0.0, %v4091
    %v4093 = vpop.f32.mrb[0].mxu0
    %4094 = vmatprep.mubr.bf16.mxu0 0
    %4095 = vmatmul.mubr.bf16.gmra.mrb[0].mxu0 %v3927
    %v4096 = vpop.f32.mrb[0].mxu0
    %v4097 = vadd.f32 0.0, %v4096
    %v4098 = vpop.f32.mrb[0].mxu0
    %v4099 = vpop.f32.mrb[0].mxu0
    %v4100 = vadd.f32 0.0, %v4099
    %v4101 = vpop.f32.mrb[0].mxu0
    %4102 = vmatprep.mubr.bf16.mxu0 0
    %4103 = vmatmul.mubr.bf16.gmra.mrb[0].mxu0 %v3930
    %v4104 = vpop.f32.mrb[0].mxu0
    %v4105 = vadd.f32 0.0, %v4104
    %v4106 = vpop.f32.mrb[0].mxu0
    %v4107 = vpop.f32.mrb[0].mxu0
    %v4108 = vadd.f32 0.0, %v4107
    %v4109 = vpop.f32.mrb[0].mxu0
    %4110 = vmatprep.mubr.bf16.mxu0 0
    %4111 = vmatmul.mubr.bf16.gmra.mrb[0].mxu0 %v3933
    %v4112 = vpop.f32.mrb[0].mxu0
    %v4113 = vadd.f32 0.0, %v4112
    %v4114 = vpop.f32.mrb[0].mxu0
    %v4115 = vpop.f32.mrb[0].mxu0
    %v4116 = vadd.f32 0.0, %v4115
    %v4117 = vpop.f32.mrb[0].mxu0
    %4118 = vmatprep.mubr.bf16.mxu0 0
    %4119 = vmatmul.mubr.bf16.gmra.mrb[0].mxu0 %v3936
    %v4120 = vpop.f32.mrb[0].mxu0
    %v4121 = vadd.f32 0.0, %v4120
    %v4122 = vpop.f32.mrb[0].mxu0
    %v4123 = vpop.f32.mrb[0].mxu0
    %v4124 = vadd.f32 0.0, %v4123
    %v4125 = vpop.f32.mrb[0].mxu0
    %4126 = vmatprep.mubr.bf16.mxu0 0
    %4127 = vmatmul.mubr.bf16.gmra.mrb[0].mxu0 %v3939
    %v4128 = vpop.f32.mrb[0].mxu0
    %v4129 = vadd.f32 0.0, %v4128
    %v4130 = vpop.f32.mrb[0].mxu0
    %v4131 = vpop.f32.mrb[0].mxu0
    %v4132 = vadd.f32 0.0, %v4131
    %v4133 = vpop.f32.mrb[0].mxu0
    %4134 = vmatprep.mubr.bf16.mxu0 0
    %4135 = vmatmul.mubr.bf16.gmra.mrb[0].mxu0 %v3942
    %v4136 = vpop.f32.mrb[0].mxu0
    %v4137 = vadd.f32 0.0, %v4136
    %v4138 = vpop.f32.mrb[0].mxu0
    %v4139 = vpop.f32.mrb[0].mxu0
    %v4140 = vadd.f32 0.0, %v4139
    %v4141 = vpop.f32.mrb[0].mxu0
    %4142 = vmatprep.mubr.bf16.mxu0 0
    %4143 = vmatmul.mubr.bf16.gmra.mrb[0].mxu0 %v3945
    %v4144 = vpop.f32.mrb[0].mxu0
    %v4145 = vadd.f32 0.0, %v4144
    %v4146 = vpop.f32.mrb[0].mxu0
    %v4147 = vpop.f32.mrb[0].mxu0
    %v4148 = vadd.f32 0.0, %v4147
    %v4149 = vpop.f32.mrb[0].mxu0
    %4150 = vmatprep.mubr.bf16.mxu0 0
    %4151 = vmatmul.mubr.bf16.gmra.mrb[0].mxu0 %v3948
    %v4152 = vpop.f32.mrb[0].mxu0
    %v4153 = vadd.f32 0.0, %v4152
    %v4154 = vpop.f32.mrb[0].mxu0
    %v4155 = vpop.f32.mrb[0].mxu0
    %v4156 = vadd.f32 0.0, %v4155
    %v4157 = vpop.f32.mrb[0].mxu0
    %4158 = vmatprep.mubr.bf16.mxu0 0
    %4159 = vmatmul.mubr.bf16.gmra.mrb[0].mxu0 %v3951
    %v4160 = vpop.f32.mrb[0].mxu0
    %v4161 = vadd.f32 0.0, %v4160
    %v4162 = vpop.f32.mrb[0].mxu0
    %v4163 = vpop.f32.mrb[0].mxu0
    %v4164 = vadd.f32 0.0, %v4163
    %v4165 = vpop.f32.mrb[0].mxu0
    %4166 = vmatprep.mubr.bf16.mxu0 0
    %4167 = vmatmul.mubr.bf16.gmra.mrb[0].mxu0 %v3954
    %v4168 = vpop.f32.mrb[0].mxu0
    %v4169 = vadd.f32 0.0, %v4168
    %v4170 = vpop.f32.mrb[0].mxu0
    %v4171 = vpop.f32.mrb[0].mxu0
    %v4172 = vadd.f32 0.0, %v4171
    %v4173 = vpop.f32.mrb[0].mxu0
    %4174 = vmatprep.mubr.bf16.mxu0 0
    %4175 = vmatmul.mubr.bf16.gmra.mrb[0].mxu0 %v3957
    %v4176 = vpop.f32.mrb[0].mxu0
    %v4177 = vadd.f32 0.0, %v4176
    %v4178 = vpop.f32.mrb[0].mxu0
    %v4179 = vpop.f32.mrb[0].mxu0
    %v4180 = vadd.f32 0.0, %v4179
    %v4181 = vpop.f32.mrb[0].mxu0
    %4182 = vmatprep.mubr.bf16.mxu0 0
    %4183 = vmatmul.mubr.bf16.gmra.mrb[0].mxu0 %v3960
    %v4184 = vpop.f32.mrb[0].mxu0
    %v4185 = vadd.f32 0.0, %v4184
    %v4186 = vpop.f32.mrb[0].mxu0
    %v4187 = vpop.f32.mrb[0].mxu0
    %v4188 = vadd.f32 0.0, %v4187
    %v4189 = vpop.f32.mrb[0].mxu0
    %4190 = vmatprep.mubr.bf16.mxu0 0
    %4191 = vmatmul.mubr.bf16.gmra.mrb[0].mxu0 %v3963
    %v4192 = vpop.f32.mrb[0].mxu0
    %v4193 = vadd.f32 0.0, %v4192
    %v4194 = vpop.f32.mrb[0].mxu0
    %v4195 = vpop.f32.mrb[0].mxu0
    %v4196 = vadd.f32 0.0, %v4195
    %v4197 = vpop.f32.mrb[0].mxu0
    %4198 = vmatprep.mubr.bf16.mxu0 0
    %4199 = vmatmul.mubr.bf16.gmra.mrb[0].mxu0 %v3966
    %v4200 = vpop.f32.mrb[0].mxu0
    %v4201 = vadd.f32 0.0, %v4200
    %v4202 = vpop.f32.mrb[0].mxu0
    %v4203 = vpop.f32.mrb[0].mxu0
    %v4204 = vadd.f32 0.0, %v4203
    %v4205 = vpop.f32.mrb[0].mxu0
    %4206 = vmatprep.mubr.bf16.mxu0 0
    %4207 = vmatmul.mubr.bf16.gmra.mrb[0].mxu0 %v3969
    %v4208 = vpop.f32.mrb[0].mxu0
    %v4209 = vadd.f32 0.0, %v4208
    %v4210 = vpop.f32.mrb[0].mxu0
    %v4211 = vpop.f32.mrb[0].mxu0
    %v4212 = vadd.f32 0.0, %v4211
    %v4213 = vpop.f32.mrb[0].mxu0
    %4214 = vmatprep.mubr.bf16.mxu0 0
    %4215 = vmatmul.mubr.bf16.gmra.mrb[0].mxu0 %v3972
    %v4216 = vpop.f32.mrb[0].mxu0
    %v4217 = vadd.f32 0.0, %v4216
    %v4218 = vpop.f32.mrb[0].mxu0
    %v4219 = vpop.f32.mrb[0].mxu0
    %v4220 = vadd.f32 0.0, %v4219
    %v4221 = vpop.f32.mrb[0].mxu0
    %4222 = vmatprep.mubr.bf16.mxu0 0
    %4223 = vmatmul.mubr.bf16.gmra.mrb[0].mxu0 %v3975
    %v4224 = vpop.f32.mrb[0].mxu0
    %v4225 = vadd.f32 0.0, %v4224
    %v4226 = vpop.f32.mrb[0].mxu0
    %v4227 = vpop.f32.mrb[0].mxu0
    %v4228 = vadd.f32 0.0, %v4227
    %v4229 = vpop.f32.mrb[0].mxu0
    %4230 = vmatprep.mubr.bf16.mxu0 0
    %4231 = vmatmul.mubr.bf16.gmra.mrb[0].mxu0 %v3978
    %v4232 = vpop.f32.mrb[0].mxu0
    %v4233 = vadd.f32 0.0, %v4232
    %v4234 = vpop.f32.mrb[0].mxu0
    %v4235 = vpop.f32.mrb[0].mxu0
    %v4236 = vadd.f32 0.0, %v4235
    %v4237 = vpop.f32.mrb[0].mxu0
    %4238 = vmatprep.mubr.bf16.mxu0 0
    %4239 = vmatmul.mubr.bf16.gmra.mrb[0].mxu0 %v3981
    %v4240 = vpop.f32.mrb[0].mxu0
    %v4241 = vadd.f32 0.0, %v4240
    %v4242 = vpop.f32.mrb[0].mxu0
    %v4243 = vpop.f32.mrb[0].mxu0
    %v4244 = vadd.f32 0.0, %v4243
    %v4245 = vpop.f32.mrb[0].mxu0
    %4246 = vmatprep.mubr.bf16.mxu0 0
    %4247 = vmatmul.mubr.bf16.gmra.mrb[0].mxu0 %v3984
    %v4248 = vpop.f32.mrb[0].mxu0
    %v4249 = vadd.f32 0.0, %v4248
    %v4250 = vpop.f32.mrb[0].mxu0
    %v4251 = vpop.f32.mrb[0].mxu0
    %v4252 = vadd.f32 0.0, %v4251
    %v4253 = vpop.f32.mrb[0].mxu0
    %4254 = vmatprep.mubr.bf16.mxu0 0
    %4255 = vmatmul.mubr.bf16.gmra.mrb[0].mxu0 %v3987
    %v4256 = vpop.f32.mrb[0].mxu0
    %v4257 = vadd.f32 0.0, %v4256
    %v4258 = vpop.f32.mrb[0].mxu0
    %v4259 = vpop.f32.mrb[0].mxu0
    %v4260 = vadd.f32 0.0, %v4259
    %v4261 = vpop.f32.mrb[0].mxu0
    %4262 = vmatprep.mubr.bf16.mxu0 0
    %4263 = vmatmul.mubr.bf16.gmra.mrb[0].mxu0 %v3990
    %v4264 = vpop.f32.mrb[0].mxu0
    %v4265 = vadd.f32 0.0, %v4264
    %v4266 = vpop.f32.mrb[0].mxu0
    %v4267 = vpop.f32.mrb[0].mxu0
    %v4268 = vadd.f32 0.0, %v4267
    %v4269 = vpop.f32.mrb[0].mxu0
    %4270 = vmatprep.mubr.bf16.mxu0 0
    %4271 = vmatmul.mubr.bf16.gmra.mrb[0].mxu0 %v3993
    %v4272 = vpop.f32.mrb[0].mxu0
    %v4273 = vadd.f32 0.0, %v4272
    %v4274 = vpop.f32.mrb[0].mxu0
    %v4275 = vpop.f32.mrb[0].mxu0
    %v4276 = vadd.f32 0.0, %v4275
    %v4277 = vpop.f32.mrb[0].mxu0
    %4278 = vmatprep.mubr.bf16.mxu0 0
    %4279 = vmatmul.mubr.bf16.gmra.mrb[0].mxu0 %v3996
    %v4280 = vpop.f32.mrb[0].mxu0
    %v4281 = vadd.f32 0.0, %v4280
    %v4282 = vpop.f32.mrb[0].mxu0
    %v4283 = vpop.f32.mrb[0].mxu0
    %v4284 = vadd.f32 0.0, %v4283
    %v4285 = vpop.f32.mrb[0].mxu0
    %4286 = vdwg.mxu0
    %v4287 = vld [vmem:[%s8] sm:$0x1]
    %v4288 = vld [vmem:[%s9] sm:$0x1]
    %v4289 = vsel %vm179, %v4033, 0.0
    %v4290 = vsel %vm179, %v4036, 0.0
    %v4291 = vadd.f32 %v4289, %v4290
    %v4292 = vsel %vm179, %v4041, 0.0
    %v4293 = vadd.f32 %v4291, %v4292
    %v4294 = vsel %vm179, %v4044, 0.0
    %v4295 = vadd.f32 %v4293, %v4294
    %v4296 = vsel %vm179, %v4049, 0.0
    %v4297 = vadd.f32 %v4295, %v4296
    %v4298 = vsel %vm179, %v4052, 0.0
    %v4299 = vadd.f32 %v4297, %v4298
    %v4300 = vsel %vm179, %v4057, 0.0
    %v4301 = vadd.f32 %v4299, %v4300
    %v4302 = vsel %vm179, %v4060, 0.0
    %v4303 = vadd.f32 %v4301, %v4302
    %v4304 = vsel %vm179, %v4065, 0.0
    %v4305 = vadd.f32 %v4303, %v4304
    %v4306 = vsel %vm179, %v4068, 0.0
    %v4307 = vadd.f32 %v4305, %v4306
    %v4308 = vsel %vm179, %v4073, 0.0
    %v4309 = vadd.f32 %v4307, %v4308
    %v4310 = vsel %vm179, %v4076, 0.0
    %v4311 = vadd.f32 %v4309, %v4310
    %v4312 = vsel %vm179, %v4081, 0.0
    %v4313 = vadd.f32 %v4311, %v4312
    %v4314 = vsel %vm179, %v4084, 0.0
    %v4315 = vadd.f32 %v4313, %v4314
    %v4316 = vsel %vm179, %v4089, 0.0
    %v4317 = vadd.f32 %v4315, %v4316
    %v4318 = vsel %vm179, %v4092, 0.0
    %v4319 = vadd.f32 %v4317, %v4318
    %v4320 = vsel %vm179, %v4097, 0.0
    %v4321 = vadd.f32 %v4319, %v4320
    %v4322 = vsel %vm179, %v4100, 0.0
    %v4323 = vadd.f32 %v4321, %v4322
    %v4324 = vsel %vm179, %v4105, 0.0
    %v4325 = vadd.f32 %v4323, %v4324
    %v4326 = vsel %vm179, %v4108, 0.0
    %v4327 = vadd.f32 %v4325, %v4326
    %v4328 = vsel %vm179, %v4113, 0.0
    %v4329 = vadd.f32 %v4327, %v4328
    %v4330 = vsel %vm179, %v4116, 0.0
    %v4331 = vadd.f32 %v4329, %v4330
    %v4332 = vsel %vm179, %v4121, 0.0
    %v4333 = vadd.f32 %v4331, %v4332
    %v4334 = vsel %vm179, %v4124, 0.0
    %v4335 = vadd.f32 %v4333, %v4334
    %v4336 = vsel %vm179, %v4129, 0.0
    %v4337 = vadd.f32 %v4335, %v4336
    %v4338 = vsel %vm179, %v4132, 0.0
    %v4339 = vadd.f32 %v4337, %v4338
    %v4340 = vsel %vm179, %v4137, 0.0
    %v4341 = vadd.f32 %v4339, %v4340
    %v4342 = vsel %vm179, %v4140, 0.0
    %v4343 = vadd.f32 %v4341, %v4342
    %v4344 = vsel %vm179, %v4145, 0.0
    %v4345 = vadd.f32 %v4343, %v4344
    %v4346 = vsel %vm179, %v4148, 0.0
    %v4347 = vadd.f32 %v4345, %v4346
    %v4348 = vsel %vm179, %v4153, 0.0
    %v4349 = vadd.f32 %v4347, %v4348
    %v4350 = vsel %vm179, %v4156, 0.0
    %v4351 = vadd.f32 %v4349, %v4350
    %v4352 = vsel %vm179, %v4161, 0.0
    %v4353 = vadd.f32 %v4351, %v4352
    %v4354 = vsel %vm179, %v4164, 0.0
    %v4355 = vadd.f32 %v4353, %v4354
    %v4356 = vsel %vm179, %v4169, 0.0
    %v4357 = vadd.f32 %v4355, %v4356
    %v4358 = vsel %vm179, %v4172, 0.0
    %v4359 = vadd.f32 %v4357, %v4358
    %v4360 = vsel %vm179, %v4177, 0.0
    %v4361 = vadd.f32 %v4359, %v4360
    %v4362 = vsel %vm179, %v4180, 0.0
    %v4363 = vadd.f32 %v4361, %v4362
    %v4364 = vsel %vm179, %v4185, 0.0
    %v4365 = vadd.f32 %v4363, %v4364
    %v4366 = vsel %vm179, %v4188, 0.0
    %v4367 = vadd.f32 %v4365, %v4366
    %v4368 = vsel %vm179, %v4193, 0.0
    %v4369 = vadd.f32 %v4367, %v4368
    %v4370 = vsel %vm179, %v4196, 0.0
    %v4371 = vadd.f32 %v4369, %v4370
    %v4372 = vsel %vm179, %v4201, 0.0
    %v4373 = vadd.f32 %v4371, %v4372
    %v4374 = vsel %vm179, %v4204, 0.0
    %v4375 = vadd.f32 %v4373, %v4374
    %v4376 = vsel %vm179, %v4209, 0.0
    %v4377 = vadd.f32 %v4375, %v4376
    %v4378 = vsel %vm179, %v4212, 0.0
    %v4379 = vadd.f32 %v4377, %v4378
    %v4380 = vsel %vm179, %v4217, 0.0
    %v4381 = vadd.f32 %v4379, %v4380
    %v4382 = vsel %vm179, %v4220, 0.0
    %v4383 = vadd.f32 %v4381, %v4382
    %v4384 = vsel %vm179, %v4225, 0.0
    %v4385 = vadd.f32 %v4383, %v4384
    %v4386 = vsel %vm179, %v4228, 0.0
    %v4387 = vadd.f32 %v4385, %v4386
    %v4388 = vsel %vm179, %v4233, 0.0
    %v4389 = vadd.f32 %v4387, %v4388
    %v4390 = vsel %vm179, %v4236, 0.0
    %v4391 = vadd.f32 %v4389, %v4390
    %v4392 = vsel %vm179, %v4241, 0.0
    %v4393 = vadd.f32 %v4391, %v4392
    %v4394 = vsel %vm179, %v4244, 0.0
    %v4395 = vadd.f32 %v4393, %v4394
    %v4396 = vsel %vm179, %v4249, 0.0
    %v4397 = vadd.f32 %v4395, %v4396
    %v4398 = vsel %vm179, %v4252, 0.0
    %v4399 = vadd.f32 %v4397, %v4398
    %v4400 = vsel %vm179, %v4257, 0.0
    %v4401 = vadd.f32 %v4399, %v4400
    %v4402 = vsel %vm179, %v4260, 0.0
    %v4403 = vadd.f32 %v4401, %v4402
    %v4404 = vsel %vm179, %v4265, 0.0
    %v4405 = vadd.f32 %v4403, %v4404
    %v4406 = vsel %vm179, %v4268, 0.0
    %v4407 = vadd.f32 %v4405, %v4406
    %v4408 = vsel %vm179, %v4273, 0.0
    %v4409 = vadd.f32 %v4407, %v4408
    %v4410 = vsel %vm179, %v4276, 0.0
    %v4411 = vadd.f32 %v4409, %v4410
    %v4412 = vsel %vm179, %v4281, 0.0
    %v4413 = vadd.f32 %v4411, %v4412
    %v4414 = vsel %vm179, %v4284, 0.0
    %v4415 = vadd.f32 %v4413, %v4414
    %v4416 = vrot.slane %v4415, 4
    %v4417 = vadd.f32 %v4415, %v4416
    %v4418 = vrot.slane %v4417, 2
    %v4419 = vadd.f32 %v4417, %v4418
    %v4420 = vrot.slane %v4419, 1
    %v4421 = vadd.f32 %v4419, %v4420
    %v4422 = vmul.f32 %v4421, 0.001953125
    %v4423 = vmul.f32 %v4033, %v4033
    %v4424 = vmul.f32 %v4036, %v4036
    %v4425 = vmul.f32 %v4041, %v4041
    %v4426 = vmul.f32 %v4044, %v4044
    %v4427 = vmul.f32 %v4049, %v4049
    %v4428 = vmul.f32 %v4052, %v4052
    %v4429 = vmul.f32 %v4057, %v4057
    %v4430 = vmul.f32 %v4060, %v4060
    %v4431 = vmul.f32 %v4065, %v4065
    %v4432 = vmul.f32 %v4068, %v4068
    %v4433 = vmul.f32 %v4073, %v4073
    %v4434 = vmul.f32 %v4076, %v4076
    %v4435 = vmul.f32 %v4081, %v4081
    %v4436 = vmul.f32 %v4084, %v4084
    %v4437 = vmul.f32 %v4089, %v4089
    %v4438 = vmul.f32 %v4092, %v4092
    %v4439 = vmul.f32 %v4097, %v4097
    %v4440 = vmul.f32 %v4100, %v4100
    %v4441 = vmul.f32 %v4105, %v4105
    %v4442 = vmul.f32 %v4108, %v4108
    %v4443 = vmul.f32 %v4113, %v4113
    %v4444 = vmul.f32 %v4116, %v4116
    %v4445 = vmul.f32 %v4121, %v4121
    %v4446 = vmul.f32 %v4124, %v4124
    %v4447 = vmul.f32 %v4129, %v4129
    %v4448 = vmul.f32 %v4132, %v4132
    %v4449 = vmul.f32 %v4137, %v4137
    %v4450 = vmul.f32 %v4140, %v4140
    %v4451 = vmul.f32 %v4145, %v4145
    %v4452 = vmul.f32 %v4148, %v4148
    %v4453 = vmul.f32 %v4153, %v4153
    %v4454 = vmul.f32 %v4156, %v4156
    %v4455 = vmul.f32 %v4161, %v4161
    %v4456 = vmul.f32 %v4164, %v4164
    %v4457 = vmul.f32 %v4169, %v4169
    %v4458 = vmul.f32 %v4172, %v4172
    %v4459 = vmul.f32 %v4177, %v4177
    %v4460 = vmul.f32 %v4180, %v4180
    %v4461 = vmul.f32 %v4185, %v4185
    %v4462 = vmul.f32 %v4188, %v4188
    %v4463 = vmul.f32 %v4193, %v4193
    %v4464 = vmul.f32 %v4196, %v4196
    %v4465 = vmul.f32 %v4201, %v4201
    %v4466 = vmul.f32 %v4204, %v4204
    %v4467 = vmul.f32 %v4209, %v4209
    %v4468 = vmul.f32 %v4212, %v4212
    %v4469 = vmul.f32 %v4217, %v4217
    %v4470 = vmul.f32 %v4220, %v4220
    %v4471 = vmul.f32 %v4225, %v4225
    %v4472 = vmul.f32 %v4228, %v4228
    %v4473 = vmul.f32 %v4233, %v4233
    %v4474 = vmul.f32 %v4236, %v4236
    %v4475 = vmul.f32 %v4241, %v4241
    %v4476 = vmul.f32 %v4244, %v4244
    %v4477 = vmul.f32 %v4249, %v4249
    %v4478 = vmul.f32 %v4252, %v4252
    %v4479 = vmul.f32 %v4257, %v4257
    %v4480 = vmul.f32 %v4260, %v4260
    %v4481 = vmul.f32 %v4265, %v4265
    %v4482 = vmul.f32 %v4268, %v4268
    %v4483 = vmul.f32 %v4273, %v4273
    %v4484 = vmul.f32 %v4276, %v4276
    %v4485 = vmul.f32 %v4281, %v4281
    %v4486 = vmul.f32 %v4284, %v4284
    %v4487 = vsel %vm179, %v4423, 0.0
    %v4488 = vsel %vm179, %v4424, 0.0
    %v4489 = vadd.f32 %v4487, %v4488
    %v4490 = vsel %vm179, %v4425, 0.0
    %v4491 = vadd.f32 %v4489, %v4490
    %v4492 = vsel %vm179, %v4426, 0.0
    %v4493 = vadd.f32 %v4491, %v4492
    %v4494 = vsel %vm179, %v4427, 0.0
    %v4495 = vadd.f32 %v4493, %v4494
    %v4496 = vsel %vm179, %v4428, 0.0
    %v4497 = vadd.f32 %v4495, %v4496
    %v4498 = vsel %vm179, %v4429, 0.0
    %v4499 = vadd.f32 %v4497, %v4498
    %v4500 = vsel %vm179, %v4430, 0.0
    %v4501 = vadd.f32 %v4499, %v4500
    %v4502 = vsel %vm179, %v4431, 0.0
    %v4503 = vadd.f32 %v4501, %v4502
    %v4504 = vsel %vm179, %v4432, 0.0
    %v4505 = vadd.f32 %v4503, %v4504
    %v4506 = vsel %vm179, %v4433, 0.0
    %v4507 = vadd.f32 %v4505, %v4506
    %v4508 = vsel %vm179, %v4434, 0.0
    %v4509 = vadd.f32 %v4507, %v4508
    %v4510 = vsel %vm179, %v4435, 0.0
    %v4511 = vadd.f32 %v4509, %v4510
    %v4512 = vsel %vm179, %v4436, 0.0
    %v4513 = vadd.f32 %v4511, %v4512
    %v4514 = vsel %vm179, %v4437, 0.0
    %v4515 = vadd.f32 %v4513, %v4514
    %v4516 = vsel %vm179, %v4438, 0.0
    %v4517 = vadd.f32 %v4515, %v4516
    %v4518 = vsel %vm179, %v4439, 0.0
    %v4519 = vadd.f32 %v4517, %v4518
    %v4520 = vsel %vm179, %v4440, 0.0
    %v4521 = vadd.f32 %v4519, %v4520
    %v4522 = vsel %vm179, %v4441, 0.0
    %v4523 = vadd.f32 %v4521, %v4522
    %v4524 = vsel %vm179, %v4442, 0.0
    %v4525 = vadd.f32 %v4523, %v4524
    %v4526 = vsel %vm179, %v4443, 0.0
    %v4527 = vadd.f32 %v4525, %v4526
    %v4528 = vsel %vm179, %v4444, 0.0
    %v4529 = vadd.f32 %v4527, %v4528
    %v4530 = vsel %vm179, %v4445, 0.0
    %v4531 = vadd.f32 %v4529, %v4530
    %v4532 = vsel %vm179, %v4446, 0.0
    %v4533 = vadd.f32 %v4531, %v4532
    %v4534 = vsel %vm179, %v4447, 0.0
    %v4535 = vadd.f32 %v4533, %v4534
    %v4536 = vsel %vm179, %v4448, 0.0
    %v4537 = vadd.f32 %v4535, %v4536
    %v4538 = vsel %vm179, %v4449, 0.0
    %v4539 = vadd.f32 %v4537, %v4538
    %v4540 = vsel %vm179, %v4450, 0.0
    %v4541 = vadd.f32 %v4539, %v4540
    %v4542 = vsel %vm179, %v4451, 0.0
    %v4543 = vadd.f32 %v4541, %v4542
    %v4544 = vsel %vm179, %v4452, 0.0
    %v4545 = vadd.f32 %v4543, %v4544
    %v4546 = vsel %vm179, %v4453, 0.0
    %v4547 = vadd.f32 %v4545, %v4546
    %v4548 = vsel %vm179, %v4454, 0.0
    %v4549 = vadd.f32 %v4547, %v4548
    %v4550 = vsel %vm179, %v4455, 0.0
    %v4551 = vadd.f32 %v4549, %v4550
    %v4552 = vsel %vm179, %v4456, 0.0
    %v4553 = vadd.f32 %v4551, %v4552
    %v4554 = vsel %vm179, %v4457, 0.0
    %v4555 = vadd.f32 %v4553, %v4554
    %v4556 = vsel %vm179, %v4458, 0.0
    %v4557 = vadd.f32 %v4555, %v4556
    %v4558 = vsel %vm179, %v4459, 0.0
    %v4559 = vadd.f32 %v4557, %v4558
    %v4560 = vsel %vm179, %v4460, 0.0
    %v4561 = vadd.f32 %v4559, %v4560
    %v4562 = vsel %vm179, %v4461, 0.0
    %v4563 = vadd.f32 %v4561, %v4562
    %v4564 = vsel %vm179, %v4462, 0.0
    %v4565 = vadd.f32 %v4563, %v4564
    %v4566 = vsel %vm179, %v4463, 0.0
    %v4567 = vadd.f32 %v4565, %v4566
    %v4568 = vsel %vm179, %v4464, 0.0
    %v4569 = vadd.f32 %v4567, %v4568
    %v4570 = vsel %vm179, %v4465, 0.0
    %v4571 = vadd.f32 %v4569, %v4570
    %v4572 = vsel %vm179, %v4466, 0.0
    %v4573 = vadd.f32 %v4571, %v4572
    %v4574 = vsel %vm179, %v4467, 0.0
    %v4575 = vadd.f32 %v4573, %v4574
    %v4576 = vsel %vm179, %v4468, 0.0
    %v4577 = vadd.f32 %v4575, %v4576
    %v4578 = vsel %vm179, %v4469, 0.0
    %v4579 = vadd.f32 %v4577, %v4578
    %v4580 = vsel %vm179, %v4470, 0.0
    %v4581 = vadd.f32 %v4579, %v4580
    %v4582 = vsel %vm179, %v4471, 0.0
    %v4583 = vadd.f32 %v4581, %v4582
    %v4584 = vsel %vm179, %v4472, 0.0
    %v4585 = vadd.f32 %v4583, %v4584
    %v4586 = vsel %vm179, %v4473, 0.0
    %v4587 = vadd.f32 %v4585, %v4586
    %v4588 = vsel %vm179, %v4474, 0.0
    %v4589 = vadd.f32 %v4587, %v4588
    %v4590 = vsel %vm179, %v4475, 0.0
    %v4591 = vadd.f32 %v4589, %v4590
    %v4592 = vsel %vm179, %v4476, 0.0
    %v4593 = vadd.f32 %v4591, %v4592
    %v4594 = vsel %vm179, %v4477, 0.0
    %v4595 = vadd.f32 %v4593, %v4594
    %v4596 = vsel %vm179, %v4478, 0.0
    %v4597 = vadd.f32 %v4595, %v4596
    %v4598 = vsel %vm179, %v4479, 0.0
    %v4599 = vadd.f32 %v4597, %v4598
    %v4600 = vsel %vm179, %v4480, 0.0
    %v4601 = vadd.f32 %v4599, %v4600
    %v4602 = vsel %vm179, %v4481, 0.0
    %v4603 = vadd.f32 %v4601, %v4602
    %v4604 = vsel %vm179, %v4482, 0.0
    %v4605 = vadd.f32 %v4603, %v4604
    %v4606 = vsel %vm179, %v4483, 0.0
    %v4607 = vadd.f32 %v4605, %v4606
    %v4608 = vsel %vm179, %v4484, 0.0
    %v4609 = vadd.f32 %v4607, %v4608
    %v4610 = vsel %vm179, %v4485, 0.0
    %v4611 = vadd.f32 %v4609, %v4610
    %v4612 = vsel %vm179, %v4486, 0.0
    %v4613 = vadd.f32 %v4611, %v4612
    %v4614 = vrot.slane %v4613, 4
    %v4615 = vadd.f32 %v4613, %v4614
    %v4616 = vrot.slane %v4615, 2
    %v4617 = vadd.f32 %v4615, %v4616
    %v4618 = vrot.slane %v4617, 1
    %v4619 = vadd.f32 %v4617, %v4618
    %v4620 = vmul.f32 %v4619, 0.001953125
    %v4621 = vmul.f32 %v4422, %v4422
    %v4622 = vsub.f32 %v4620, %v4621
    %v4623 = vmax.f32 %v4622, 0.0
    %v4624 = vsub.f32 %v4033, %v4422
    %v4625 = vsub.f32 %v4036, %v4422
    %v4626 = vsub.f32 %v4041, %v4422
    %v4627 = vsub.f32 %v4044, %v4422
    %v4628 = vsub.f32 %v4049, %v4422
    %v4629 = vsub.f32 %v4052, %v4422
    %v4630 = vsub.f32 %v4057, %v4422
    %v4631 = vsub.f32 %v4060, %v4422
    %v4632 = vsub.f32 %v4065, %v4422
    %v4633 = vsub.f32 %v4068, %v4422
    %v4634 = vsub.f32 %v4073, %v4422
    %v4635 = vsub.f32 %v4076, %v4422
    %v4636 = vsub.f32 %v4081, %v4422
    %v4637 = vsub.f32 %v4084, %v4422
    %v4638 = vsub.f32 %v4089, %v4422
    %v4639 = vsub.f32 %v4092, %v4422
    %v4640 = vsub.f32 %v4097, %v4422
    %v4641 = vsub.f32 %v4100, %v4422
    %v4642 = vsub.f32 %v4105, %v4422
    %v4643 = vsub.f32 %v4108, %v4422
    %v4644 = vsub.f32 %v4113, %v4422
    %v4645 = vsub.f32 %v4116, %v4422
    %v4646 = vsub.f32 %v4121, %v4422
    %v4647 = vsub.f32 %v4124, %v4422
    %v4648 = vsub.f32 %v4129, %v4422
    %v4649 = vsub.f32 %v4132, %v4422
    %v4650 = vsub.f32 %v4137, %v4422
    %v4651 = vsub.f32 %v4140, %v4422
    %v4652 = vsub.f32 %v4145, %v4422
    %v4653 = vsub.f32 %v4148, %v4422
    %v4654 = vsub.f32 %v4153, %v4422
    %v4655 = vsub.f32 %v4156, %v4422
    %v4656 = vsub.f32 %v4161, %v4422
    %v4657 = vsub.f32 %v4164, %v4422
    %v4658 = vsub.f32 %v4169, %v4422
    %v4659 = vsub.f32 %v4172, %v4422
    %v4660 = vsub.f32 %v4177, %v4422
    %v4661 = vsub.f32 %v4180, %v4422
    %v4662 = vsub.f32 %v4185, %v4422
    %v4663 = vsub.f32 %v4188, %v4422
    %v4664 = vsub.f32 %v4193, %v4422
    %v4665 = vsub.f32 %v4196, %v4422
    %v4666 = vsub.f32 %v4201, %v4422
    %v4667 = vsub.f32 %v4204, %v4422
    %v4668 = vsub.f32 %v4209, %v4422
    %v4669 = vsub.f32 %v4212, %v4422
    %v4670 = vsub.f32 %v4217, %v4422
    %v4671 = vsub.f32 %v4220, %v4422
    %v4672 = vsub.f32 %v4225, %v4422
    %v4673 = vsub.f32 %v4228, %v4422
    %v4674 = vsub.f32 %v4233, %v4422
    %v4675 = vsub.f32 %v4236, %v4422
    %v4676 = vsub.f32 %v4241, %v4422
    %v4677 = vsub.f32 %v4244, %v4422
    %v4678 = vsub.f32 %v4249, %v4422
    %v4679 = vsub.f32 %v4252, %v4422
    %v4680 = vsub.f32 %v4257, %v4422
    %v4681 = vsub.f32 %v4260, %v4422
    %v4682 = vsub.f32 %v4265, %v4422
    %v4683 = vsub.f32 %v4268, %v4422
    %v4684 = vsub.f32 %v4273, %v4422
    %v4685 = vsub.f32 %v4276, %v4422
    %v4686 = vsub.f32 %v4281, %v4422
    %v4687 = vsub.f32 %v4284, %v4422
    %v4688 = vadd.f32 %v4623, 1e-05
    %v4689 = vrsqrt.pop %v4688
    %v4690 = vmul.f32 %v4624, %v4689
    %v4691 = vmul.f32 %v4625, %v4689
    %v4692 = vmul.f32 %v4626, %v4689
    %v4693 = vmul.f32 %v4627, %v4689
    %v4694 = vmul.f32 %v4628, %v4689
    %v4695 = vmul.f32 %v4629, %v4689
    %v4696 = vmul.f32 %v4630, %v4689
    %v4697 = vmul.f32 %v4631, %v4689
    %v4698 = vmul.f32 %v4632, %v4689
    %v4699 = vmul.f32 %v4633, %v4689
    %v4700 = vmul.f32 %v4634, %v4689
    %v4701 = vmul.f32 %v4635, %v4689
    %v4702 = vmul.f32 %v4636, %v4689
    %v4703 = vmul.f32 %v4637, %v4689
    %v4704 = vmul.f32 %v4638, %v4689
    %v4705 = vmul.f32 %v4639, %v4689
    %v4706 = vmul.f32 %v4640, %v4689
    %v4707 = vmul.f32 %v4641, %v4689
    %v4708 = vmul.f32 %v4642, %v4689
    %v4709 = vmul.f32 %v4643, %v4689
    %v4710 = vmul.f32 %v4644, %v4689
    %v4711 = vmul.f32 %v4645, %v4689
    %v4712 = vmul.f32 %v4646, %v4689
    %v4713 = vmul.f32 %v4647, %v4689
    %v4714 = vmul.f32 %v4648, %v4689
    %v4715 = vmul.f32 %v4649, %v4689
    %v4716 = vmul.f32 %v4650, %v4689
    %v4717 = vmul.f32 %v4651, %v4689
    %v4718 = vmul.f32 %v4652, %v4689
    %v4719 = vmul.f32 %v4653, %v4689
    %v4720 = vmul.f32 %v4654, %v4689
    %v4721 = vmul.f32 %v4655, %v4689
    %v4722 = vmul.f32 %v4656, %v4689
    %v4723 = vmul.f32 %v4657, %v4689
    %v4724 = vmul.f32 %v4658, %v4689
    %v4725 = vmul.f32 %v4659, %v4689
    %v4726 = vmul.f32 %v4660, %v4689
    %v4727 = vmul.f32 %v4661, %v4689
    %v4728 = vmul.f32 %v4662, %v4689
    %v4729 = vmul.f32 %v4663, %v4689
    %v4730 = vmul.f32 %v4664, %v4689
    %v4731 = vmul.f32 %v4665, %v4689
    %v4732 = vmul.f32 %v4666, %v4689
    %v4733 = vmul.f32 %v4667, %v4689
    %v4734 = vmul.f32 %v4668, %v4689
    %v4735 = vmul.f32 %v4669, %v4689
    %v4736 = vmul.f32 %v4670, %v4689
    %v4737 = vmul.f32 %v4671, %v4689
    %v4738 = vmul.f32 %v4672, %v4689
    %v4739 = vmul.f32 %v4673, %v4689
    %v4740 = vmul.f32 %v4674, %v4689
    %v4741 = vmul.f32 %v4675, %v4689
    %v4742 = vmul.f32 %v4676, %v4689
    %v4743 = vmul.f32 %v4677, %v4689
    %v4744 = vmul.f32 %v4678, %v4689
    %v4745 = vmul.f32 %v4679, %v4689
    %v4746 = vmul.f32 %v4680, %v4689
    %v4747 = vmul.f32 %v4681, %v4689
    %v4748 = vmul.f32 %v4682, %v4689
    %v4749 = vmul.f32 %v4683, %v4689
    %v4750 = vmul.f32 %v4684, %v4689
    %v4751 = vmul.f32 %v4685, %v4689
    %v4752 = vmul.f32 %v4686, %v4689
    %v4753 = vmul.f32 %v4687, %v4689
    %v4755 = vlaneseq
    %v4756 = vshrl.u32 %v4755, 7
    %v4757 = vsub.s32 0, %v4756
    %v4758 = vrot.slane %v4287, %v4757
    %v4760 = vmul.f32 %v4690, %v4758
    %v4761 = vmul.f32 %v4691, %v4758
    %v4762 = vmul.f32 %v4692, %v4758
    %v4763 = vmul.f32 %v4693, %v4758
    %v4764 = vmul.f32 %v4694, %v4758
    %v4765 = vmul.f32 %v4695, %v4758
    %v4766 = vmul.f32 %v4696, %v4758
    %v4767 = vmul.f32 %v4697, %v4758
    %v4768 = vmul.f32 %v4698, %v4758
    %v4769 = vmul.f32 %v4699, %v4758
    %v4770 = vmul.f32 %v4700, %v4758
    %v4771 = vmul.f32 %v4701, %v4758
    %v4772 = vmul.f32 %v4702, %v4758
    %v4773 = vmul.f32 %v4703, %v4758
    %v4774 = vmul.f32 %v4704, %v4758
    %v4775 = vmul.f32 %v4705, %v4758
    %v4776 = vmul.f32 %v4706, %v4758
    %v4777 = vmul.f32 %v4707, %v4758
    %v4778 = vmul.f32 %v4708, %v4758
    %v4779 = vmul.f32 %v4709, %v4758
    %v4780 = vmul.f32 %v4710, %v4758
    %v4781 = vmul.f32 %v4711, %v4758
    %v4782 = vmul.f32 %v4712, %v4758
    %v4783 = vmul.f32 %v4713, %v4758
    %v4784 = vmul.f32 %v4714, %v4758
    %v4785 = vmul.f32 %v4715, %v4758
    %v4786 = vmul.f32 %v4716, %v4758
    %v4787 = vmul.f32 %v4717, %v4758
    %v4788 = vmul.f32 %v4718, %v4758
    %v4789 = vmul.f32 %v4719, %v4758
    %v4790 = vmul.f32 %v4720, %v4758
    %v4791 = vmul.f32 %v4721, %v4758
    %v4792 = vmul.f32 %v4722, %v4758
    %v4793 = vmul.f32 %v4723, %v4758
    %v4794 = vmul.f32 %v4724, %v4758
    %v4795 = vmul.f32 %v4725, %v4758
    %v4796 = vmul.f32 %v4726, %v4758
    %v4797 = vmul.f32 %v4727, %v4758
    %v4798 = vmul.f32 %v4728, %v4758
    %v4799 = vmul.f32 %v4729, %v4758
    %v4800 = vmul.f32 %v4730, %v4758
    %v4801 = vmul.f32 %v4731, %v4758
    %v4802 = vmul.f32 %v4732, %v4758
    %v4803 = vmul.f32 %v4733, %v4758
    %v4804 = vmul.f32 %v4734, %v4758
    %v4805 = vmul.f32 %v4735, %v4758
    %v4806 = vmul.f32 %v4736, %v4758
    %v4807 = vmul.f32 %v4737, %v4758
    %v4808 = vmul.f32 %v4738, %v4758
    %v4809 = vmul.f32 %v4739, %v4758
    %v4810 = vmul.f32 %v4740, %v4758
    %v4811 = vmul.f32 %v4741, %v4758
    %v4812 = vmul.f32 %v4742, %v4758
    %v4813 = vmul.f32 %v4743, %v4758
    %v4814 = vmul.f32 %v4744, %v4758
    %v4815 = vmul.f32 %v4745, %v4758
    %v4816 = vmul.f32 %v4746, %v4758
    %v4817 = vmul.f32 %v4747, %v4758
    %v4818 = vmul.f32 %v4748, %v4758
    %v4819 = vmul.f32 %v4749, %v4758
    %v4820 = vmul.f32 %v4750, %v4758
    %v4821 = vmul.f32 %v4751, %v4758
    %v4822 = vmul.f32 %v4752, %v4758
    %v4823 = vmul.f32 %v4753, %v4758
    %v4825 = vlaneseq
    %v4826 = vshrl.u32 %v4825, 7
    %v4827 = vsub.s32 0, %v4826
    %v4828 = vrot.slane %v4288, %v4827
    %v4830 = vadd.f32 %v4760, %v4828
    %v4831 = vadd.f32 %v4761, %v4828
    %v4832 = vadd.f32 %v4762, %v4828
    %v4833 = vadd.f32 %v4763, %v4828
    %v4834 = vadd.f32 %v4764, %v4828
    %v4835 = vadd.f32 %v4765, %v4828
    %v4836 = vadd.f32 %v4766, %v4828
    %v4837 = vadd.f32 %v4767, %v4828
    %v4838 = vadd.f32 %v4768, %v4828
    %v4839 = vadd.f32 %v4769, %v4828
    %v4840 = vadd.f32 %v4770, %v4828
    %v4841 = vadd.f32 %v4771, %v4828
    %v4842 = vadd.f32 %v4772, %v4828
    %v4843 = vadd.f32 %v4773, %v4828
    %v4844 = vadd.f32 %v4774, %v4828
    %v4845 = vadd.f32 %v4775, %v4828
    %v4846 = vadd.f32 %v4776, %v4828
    %v4847 = vadd.f32 %v4777, %v4828
    %v4848 = vadd.f32 %v4778, %v4828
    %v4849 = vadd.f32 %v4779, %v4828
    %v4850 = vadd.f32 %v4780, %v4828
    %v4851 = vadd.f32 %v4781, %v4828
    %v4852 = vadd.f32 %v4782, %v4828
    %v4853 = vadd.f32 %v4783, %v4828
    %v4854 = vadd.f32 %v4784, %v4828
    %v4855 = vadd.f32 %v4785, %v4828
    %v4856 = vadd.f32 %v4786, %v4828
    %v4857 = vadd.f32 %v4787, %v4828
    %v4858 = vadd.f32 %v4788, %v4828
    %v4859 = vadd.f32 %v4789, %v4828
    %v4860 = vadd.f32 %v4790, %v4828
    %v4861 = vadd.f32 %v4791, %v4828
    %v4862 = vadd.f32 %v4792, %v4828
    %v4863 = vadd.f32 %v4793, %v4828
    %v4864 = vadd.f32 %v4794, %v4828
    %v4865 = vadd.f32 %v4795, %v4828
    %v4866 = vadd.f32 %v4796, %v4828
    %v4867 = vadd.f32 %v4797, %v4828
    %v4868 = vadd.f32 %v4798, %v4828
    %v4869 = vadd.f32 %v4799, %v4828
    %v4870 = vadd.f32 %v4800, %v4828
    %v4871 = vadd.f32 %v4801, %v4828
    %v4872 = vadd.f32 %v4802, %v4828
    %v4873 = vadd.f32 %v4803, %v4828
    %v4874 = vadd.f32 %v4804, %v4828
    %v4875 = vadd.f32 %v4805, %v4828
    %v4876 = vadd.f32 %v4806, %v4828
    %v4877 = vadd.f32 %v4807, %v4828
    %v4878 = vadd.f32 %v4808, %v4828
    %v4879 = vadd.f32 %v4809, %v4828
    %v4880 = vadd.f32 %v4810, %v4828
    %v4881 = vadd.f32 %v4811, %v4828
    %v4882 = vadd.f32 %v4812, %v4828
    %v4883 = vadd.f32 %v4813, %v4828
    %v4884 = vadd.f32 %v4814, %v4828
    %v4885 = vadd.f32 %v4815, %v4828
    %v4886 = vadd.f32 %v4816, %v4828
    %v4887 = vadd.f32 %v4817, %v4828
    %v4888 = vadd.f32 %v4818, %v4828
    %v4889 = vadd.f32 %v4819, %v4828
    %v4890 = vadd.f32 %v4820, %v4828
    %v4891 = vadd.f32 %v4821, %v4828
    %v4892 = vadd.f32 %v4822, %v4828
    %v4893 = vadd.f32 %v4823, %v4828
    %v4894 = vadd.f32 %v4830, %v51
    %v4895 = vadd.f32 %v4831, %v52
    %v4896 = vadd.f32 %v4832, %v53
    %v4897 = vadd.f32 %v4833, %v54
    %v4898 = vadd.f32 %v4834, %v55
    %v4899 = vadd.f32 %v4835, %v56
    %v4900 = vadd.f32 %v4836, %v57
    %v4901 = vadd.f32 %v4837, %v58
    %v4902 = vadd.f32 %v4838, %v59
    %v4903 = vadd.f32 %v4839, %v60
    %v4904 = vadd.f32 %v4840, %v61
    %v4905 = vadd.f32 %v4841, %v62
    %v4906 = vadd.f32 %v4842, %v63
    %v4907 = vadd.f32 %v4843, %v64
    %v4908 = vadd.f32 %v4844, %v65
    %v4909 = vadd.f32 %v4845, %v66
    %v4910 = vadd.f32 %v4846, %v67
    %v4911 = vadd.f32 %v4847, %v68
    %v4912 = vadd.f32 %v4848, %v69
    %v4913 = vadd.f32 %v4849, %v70
    %v4914 = vadd.f32 %v4850, %v71
    %v4915 = vadd.f32 %v4851, %v72
    %v4916 = vadd.f32 %v4852, %v73
    %v4917 = vadd.f32 %v4853, %v74
    %v4918 = vadd.f32 %v4854, %v75
    %v4919 = vadd.f32 %v4855, %v76
    %v4920 = vadd.f32 %v4856, %v77
    %v4921 = vadd.f32 %v4857, %v78
    %v4922 = vadd.f32 %v4858, %v79
    %v4923 = vadd.f32 %v4859, %v80
    %v4924 = vadd.f32 %v4860, %v81
    %v4925 = vadd.f32 %v4861, %v82
    %v4926 = vadd.f32 %v4862, %v83
    %v4927 = vadd.f32 %v4863, %v84
    %v4928 = vadd.f32 %v4864, %v85
    %v4929 = vadd.f32 %v4865, %v86
    %v4930 = vadd.f32 %v4866, %v87
    %v4931 = vadd.f32 %v4867, %v88
    %v4932 = vadd.f32 %v4868, %v89
    %v4933 = vadd.f32 %v4869, %v90
    %v4934 = vadd.f32 %v4870, %v91
    %v4935 = vadd.f32 %v4871, %v92
    %v4936 = vadd.f32 %v4872, %v93
    %v4937 = vadd.f32 %v4873, %v94
    %v4938 = vadd.f32 %v4874, %v95
    %v4939 = vadd.f32 %v4875, %v96
    %v4940 = vadd.f32 %v4876, %v97
    %v4941 = vadd.f32 %v4877, %v98
    %v4942 = vadd.f32 %v4878, %v99
    %v4943 = vadd.f32 %v4879, %v100
    %v4944 = vadd.f32 %v4880, %v101
    %v4945 = vadd.f32 %v4881, %v102
    %v4946 = vadd.f32 %v4882, %v103
    %v4947 = vadd.f32 %v4883, %v104
    %v4948 = vadd.f32 %v4884, %v105
    %v4949 = vadd.f32 %v4885, %v106
    %v4950 = vadd.f32 %v4886, %v107
    %v4951 = vadd.f32 %v4887, %v108
    %v4952 = vadd.f32 %v4888, %v109
    %v4953 = vadd.f32 %v4889, %v110
    %v4954 = vadd.f32 %v4890, %v111
    %v4955 = vadd.f32 %v4891, %v112
    %v4956 = vadd.f32 %v4892, %v113
    %v4957 = vadd.f32 %v4893, %v114
    %v4958 = vmax.f32 %v4894, 0.0
    %v4959 = vmax.f32 %v4895, 0.0
    %v4960 = vmax.f32 %v4896, 0.0
    %v4961 = vmax.f32 %v4897, 0.0
    %v4962 = vmax.f32 %v4898, 0.0
    %v4963 = vmax.f32 %v4899, 0.0
    %v4964 = vmax.f32 %v4900, 0.0
    %v4965 = vmax.f32 %v4901, 0.0
    %v4966 = vmax.f32 %v4902, 0.0
    %v4967 = vmax.f32 %v4903, 0.0
    %v4968 = vmax.f32 %v4904, 0.0
    %v4969 = vmax.f32 %v4905, 0.0
    %v4970 = vmax.f32 %v4906, 0.0
    %v4971 = vmax.f32 %v4907, 0.0
    %v4972 = vmax.f32 %v4908, 0.0
    %v4973 = vmax.f32 %v4909, 0.0
    %v4974 = vmax.f32 %v4910, 0.0
    %v4975 = vmax.f32 %v4911, 0.0
    %v4976 = vmax.f32 %v4912, 0.0
    %v4977 = vmax.f32 %v4913, 0.0
    %v4978 = vmax.f32 %v4914, 0.0
    %v4979 = vmax.f32 %v4915, 0.0
    %v4980 = vmax.f32 %v4916, 0.0
    %v4981 = vmax.f32 %v4917, 0.0
    %v4982 = vmax.f32 %v4918, 0.0
    %v4983 = vmax.f32 %v4919, 0.0
    %v4984 = vmax.f32 %v4920, 0.0
    %v4985 = vmax.f32 %v4921, 0.0
    %v4986 = vmax.f32 %v4922, 0.0
    %v4987 = vmax.f32 %v4923, 0.0
    %v4988 = vmax.f32 %v4924, 0.0
    %v4989 = vmax.f32 %v4925, 0.0
    %v4990 = vmax.f32 %v4926, 0.0
    %v4991 = vmax.f32 %v4927, 0.0
    %v4992 = vmax.f32 %v4928, 0.0
    %v4993 = vmax.f32 %v4929, 0.0
    %v4994 = vmax.f32 %v4930, 0.0
    %v4995 = vmax.f32 %v4931, 0.0
    %v4996 = vmax.f32 %v4932, 0.0
    %v4997 = vmax.f32 %v4933, 0.0
    %v4998 = vmax.f32 %v4934, 0.0
    %v4999 = vmax.f32 %v4935, 0.0
    %v5000 = vmax.f32 %v4936, 0.0
    %v5001 = vmax.f32 %v4937, 0.0
    %v5002 = vmax.f32 %v4938, 0.0
    %v5003 = vmax.f32 %v4939, 0.0
    %v5004 = vmax.f32 %v4940, 0.0
    %v5005 = vmax.f32 %v4941, 0.0
    %v5006 = vmax.f32 %v4942, 0.0
    %v5007 = vmax.f32 %v4943, 0.0
    %v5008 = vmax.f32 %v4944, 0.0
    %v5009 = vmax.f32 %v4945, 0.0
    %v5010 = vmax.f32 %v4946, 0.0
    %v5011 = vmax.f32 %v4947, 0.0
    %v5012 = vmax.f32 %v4948, 0.0
    %v5013 = vmax.f32 %v4949, 0.0
    %v5014 = vmax.f32 %v4950, 0.0
    %v5015 = vmax.f32 %v4951, 0.0
    %v5016 = vmax.f32 %v4952, 0.0
    %v5017 = vmax.f32 %v4953, 0.0
    %v5018 = vmax.f32 %v4954, 0.0
    %v5019 = vmax.f32 %v4955, 0.0
    %v5020 = vmax.f32 %v4956, 0.0
    %v5021 = vmax.f32 %v4957, 0.0
    %5022 = vst.msk [vmem:[#allocation5] sm:$0xff] %vm179, %v4958
    %5023 = vst.msk [vmem:[#allocation5 + $0x8] sm:$0xff] %vm179, %v4959
    %5024 = vst.msk [vmem:[#allocation5 + $0x10] sm:$0xff] %vm179, %v4960
    %5025 = vst.msk [vmem:[#allocation5 + $0x18] sm:$0xff] %vm179, %v4961
    %5026 = vst.msk [vmem:[#allocation5 + $0x20] sm:$0xff] %vm179, %v4962
    %5027 = vst.msk [vmem:[#allocation5 + $0x28] sm:$0xff] %vm179, %v4963
    %5028 = vst.msk [vmem:[#allocation5 + $0x30] sm:$0xff] %vm179, %v4964
    %5029 = vst.msk [vmem:[#allocation5 + $0x38] sm:$0xff] %vm179, %v4965
    %5030 = vst.msk [vmem:[#allocation5 + $0x40] sm:$0xff] %vm179, %v4966
    %5031 = vst.msk [vmem:[#allocation5 + $0x48] sm:$0xff] %vm179, %v4967
    %5032 = vst.msk [vmem:[#allocation5 + $0x50] sm:$0xff] %vm179, %v4968
    %5033 = vst.msk [vmem:[#allocation5 + $0x58] sm:$0xff] %vm179, %v4969
    %5034 = vst.msk [vmem:[#allocation5 + $0x60] sm:$0xff] %vm179, %v4970
    %5035 = vst.msk [vmem:[#allocation5 + $0x68] sm:$0xff] %vm179, %v4971
    %5036 = vst.msk [vmem:[#allocation5 + $0x70] sm:$0xff] %vm179, %v4972
    %5037 = vst.msk [vmem:[#allocation5 + $0x78] sm:$0xff] %vm179, %v4973
    %5038 = vst.msk [vmem:[#allocation5 + $0x80] sm:$0xff] %vm179, %v4974
    %5039 = vst.msk [vmem:[#allocation5 + $0x88] sm:$0xff] %vm179, %v4975
    %5040 = vst.msk [vmem:[#allocation5 + $0x90] sm:$0xff] %vm179, %v4976
    %5041 = vst.msk [vmem:[#allocation5 + $0x98] sm:$0xff] %vm179, %v4977
    %5042 = vst.msk [vmem:[#allocation5 + $0xa0] sm:$0xff] %vm179, %v4978
    %5043 = vst.msk [vmem:[#allocation5 + $0xa8] sm:$0xff] %vm179, %v4979
    %5044 = vst.msk [vmem:[#allocation5 + $0xb0] sm:$0xff] %vm179, %v4980
    %5045 = vst.msk [vmem:[#allocation5 + $0xb8] sm:$0xff] %vm179, %v4981
    %5046 = vst.msk [vmem:[#allocation5 + $0xc0] sm:$0xff] %vm179, %v4982
    %5047 = vst.msk [vmem:[#allocation5 + $0xc8] sm:$0xff] %vm179, %v4983
    %5048 = vst.msk [vmem:[#allocation5 + $0xd0] sm:$0xff] %vm179, %v4984
    %5049 = vst.msk [vmem:[#allocation5 + $0xd8] sm:$0xff] %vm179, %v4985
    %5050 = vst.msk [vmem:[#allocation5 + $0xe0] sm:$0xff] %vm179, %v4986
    %5051 = vst.msk [vmem:[#allocation5 + $0xe8] sm:$0xff] %vm179, %v4987
    %5052 = vst.msk [vmem:[#allocation5 + $0xf0] sm:$0xff] %vm179, %v4988
    %5053 = vst.msk [vmem:[#allocation5 + $0xf8] sm:$0xff] %vm179, %v4989
    %5054 = vst.msk [vmem:[#allocation5 + $0x100] sm:$0xff] %vm179, %v4990
    %5055 = vst.msk [vmem:[#allocation5 + $0x108] sm:$0xff] %vm179, %v4991
    %5056 = vst.msk [vmem:[#allocation5 + $0x110] sm:$0xff] %vm179, %v4992
    %5057 = vst.msk [vmem:[#allocation5 + $0x118] sm:$0xff] %vm179, %v4993
    %5058 = vst.msk [vmem:[#allocation5 + $0x120] sm:$0xff] %vm179, %v4994
    %5059 = vst.msk [vmem:[#allocation5 + $0x128] sm:$0xff] %vm179, %v4995
    %5060 = vst.msk [vmem:[#allocation5 + $0x130] sm:$0xff] %vm179, %v4996
    %5061 = vst.msk [vmem:[#allocation5 + $0x138] sm:$0xff] %vm179, %v4997
    %5062 = vst.msk [vmem:[#allocation5 + $0x140] sm:$0xff] %vm179, %v4998
    %5063 = vst.msk [vmem:[#allocation5 + $0x148] sm:$0xff] %vm179, %v4999
    %5064 = vst.msk [vmem:[#allocation5 + $0x150] sm:$0xff] %vm179, %v5000
    %5065 = vst.msk [vmem:[#allocation5 + $0x158] sm:$0xff] %vm179, %v5001
    %5066 = vst.msk [vmem:[#allocation5 + $0x160] sm:$0xff] %vm179, %v5002
    %5067 = vst.msk [vmem:[#allocation5 + $0x168] sm:$0xff] %vm179, %v5003
    %5068 = vst.msk [vmem:[#allocation5 + $0x170] sm:$0xff] %vm179, %v5004
    %5069 = vst.msk [vmem:[#allocation5 + $0x178] sm:$0xff] %vm179, %v5005
    %5070 = vst.msk [vmem:[#allocation5 + $0x180] sm:$0xff] %vm179, %v5006
    %5071 = vst.msk [vmem:[#allocation5 + $0x188] sm:$0xff] %vm179, %v5007
    %5072 = vst.msk [vmem:[#allocation5 + $0x190] sm:$0xff] %vm179, %v5008
    %5073 = vst.msk [vmem:[#allocation5 + $0x198] sm:$0xff] %vm179, %v5009
    %5074 = vst.msk [vmem:[#allocation5 + $0x1a0] sm:$0xff] %vm179, %v5010
    %5075 = vst.msk [vmem:[#allocation5 + $0x1a8] sm:$0xff] %vm179, %v5011
    %5076 = vst.msk [vmem:[#allocation5 + $0x1b0] sm:$0xff] %vm179, %v5012
    %5077 = vst.msk [vmem:[#allocation5 + $0x1b8] sm:$0xff] %vm179, %v5013
    %5078 = vst.msk [vmem:[#allocation5 + $0x1c0] sm:$0xff] %vm179, %v5014
    %5079 = vst.msk [vmem:[#allocation5 + $0x1c8] sm:$0xff] %vm179, %v5015
    %5080 = vst.msk [vmem:[#allocation5 + $0x1d0] sm:$0xff] %vm179, %v5016
    %5081 = vst.msk [vmem:[#allocation5 + $0x1d8] sm:$0xff] %vm179, %v5017
    %5082 = vst.msk [vmem:[#allocation5 + $0x1e0] sm:$0xff] %vm179, %v5018
    %5083 = vst.msk [vmem:[#allocation5 + $0x1e8] sm:$0xff] %vm179, %v5019
    %5084 = vst.msk [vmem:[#allocation5 + $0x1f0] sm:$0xff] %vm179, %v5020
    %5085 = vst.msk [vmem:[#allocation5 + $0x1f8] sm:$0xff] %vm179, %v5021
    // Predicated region
    $region46: #{bottleneck_forward.1} parent=1 // pred_check
      _
    $region47: #{bottleneck_forward.1} parent=1 // pred_check_branch
      %5087 = sbr.rel (0) target = $region49
    $region48: #{bottleneck_forward.1} parent=1 // pred_region
      %s5089 = ssub.s32 8192, 8192
      %5090 = vsyncadd [#allocation4], %s5089
      %s5091 = sshll.u32 [#allocation5], 4
      %s5092 = int_to_ptr.vmem [resolvable:$true] %s5091
      %5097 = dma.vmem_to_hbm [thread:$0]  %s5092, 8192, %s10, [#allocation4], 128, 128, 8
    $region49: #{bottleneck_forward.1} parent=1 // pred_fallthru
      _
    // Predicated region
    $region50: #{bottleneck_forward.1} parent=1 // pred_check
      _
    $region51: #{bottleneck_forward.1} parent=1 // pred_check_branch
      %5099 = sbr.rel (0) target = $region53
    $region52: #{bottleneck_forward.1} parent=1 // pred_region
      %5100 = dma.done [#allocation4], 8192
    $region53: #{bottleneck_forward.1} parent=1 // pred_fallthru
      _
    %5101 = vsyncpa [#allocation3], 1
    %5102 = vsyncpa [#allocation4], 1

</llo_original>
